<compile_context>
chip_gen: v7x
topology: tpu7x:2x2x1
jax: 0.10.0
libtpu: 0.0.40
codegen_flags: <defaults>
</compile_context>

<pallas_src>
import functools

import jax
import jax.numpy as jnp
from jax import lax
from jax.experimental import pallas as pl
from jax.experimental.pallas import tpu as pltpu

EPS = 1e-5


# ---------------------------------------------------------------------------
# Generation-aware sizing.
# ---------------------------------------------------------------------------
def _hw_budget():
    """(vmem_limit_bytes, per-tile activation byte budget)."""
    cap = None
    try:
        cap = int(pltpu.get_tpu_info().vmem_capacity_bytes)
    except Exception:
        cap = None
    if cap is not None and cap >= 128 * 1024 * 1024:
        # v5e / v6e: 128 MiB physical VMEM -> raise the scoped limit, bigger tiles.
        return 96 * 1024 * 1024, 8 * 1024 * 1024
    # v7x (64 MiB physical) or unknown: stay conservative.
    return 32 * 1024 * 1024, 3 * 1024 * 1024


def _pick_tile_h(h, w, max_c, block_budget_bytes):
    """Largest divisor of h whose (th, W, max_c) f32 tile fits the block budget."""
    best = 1
    for th in range(1, h + 1):
        if h % th == 0 and th * w * max_c * 4 <= block_budget_bytes:
            best = th
    return best


# ---------------------------------------------------------------------------
# BN helpers (one-pass sum / sum-of-squares partials, reduced in the wrapper).
# ---------------------------------------------------------------------------
def _partial_stats(h):
    """(2, C) [sum; sum-of-squares] of an (rows, C) f32 tile."""
    s = jnp.sum(h, axis=0, keepdims=True)
    ss = jnp.sum(h * h, axis=0, keepdims=True)
    return jnp.concatenate([s, ss], axis=0)


def _finalize_bn(pstats, count, gamma, beta):
    """Reduce per-tile partials; fold BN + affine into per-channel scale/shift."""
    c = pstats.shape[-1]
    ps = pstats.reshape(-1, 2, c)
    s = jnp.sum(ps[:, 0, :], axis=0)
    ss = jnp.sum(ps[:, 1, :], axis=0)
    mean = s / count
    var = jnp.maximum(ss / count - mean * mean, 0.0)   # guard tiny cancellation
    scale = gamma.reshape(1, -1) * lax.rsqrt(var.reshape(1, -1) + EPS)
    shift = beta.reshape(1, -1) - mean.reshape(1, -1) * scale
    return scale.astype(jnp.float32), shift.astype(jnp.float32)


# ---------------------------------------------------------------------------
# Pass 0: per-channel sum / sum-of-squares of x (for bn1).
# TODO(synk): when composing blocks, emit these partials from the producer of x
# (previous block's pass 3) and drop this extra M x Cin HBM read.
# ---------------------------------------------------------------------------
def _stats_kernel(x_ref, pstat_ref):
    c = x_ref.shape[-1]
    x = x_ref[...].reshape(-1, c)
    pstat_ref[...] = _partial_stats(x)[None, None]


# ---------------------------------------------------------------------------
# Pass 1: a1 = relu(bn1(x)); h1 = a1 @ w1 (stored bf16); bn2 partial stats.
# ---------------------------------------------------------------------------
def _stage1_kernel(x_ref, s1_ref, t1_ref, w1_ref, h1_ref, pstat_ref):
    cin = x_ref.shape[-1]
    x = x_ref[...].reshape(-1, cin)
    a1 = jnp.maximum(x * s1_ref[...] + t1_ref[...], 0.0)          # f32 VPU math
    h1 = jnp.dot(a1.astype(jnp.bfloat16), w1_ref[...],
                 preferred_element_type=jnp.float32)
    h1_ref[...] = h1.astype(jnp.bfloat16).reshape(h1_ref.shape)   # bf16 storage
    pstat_ref[...] = _partial_stats(h1)[None, None]               # f32 pre-round stats


# ---------------------------------------------------------------------------
# Pass 2: a2 = relu(bn2(h1)); h2 = conv3x3(a2, pad=1) as NINE accumulating
# K=P dots into one f32 (HW, P) buffer; bn3 partial stats.  One image per grid
# step; taps are static rolls on the flattened (HW, P) f32 view plus cheap
# (HW, 1) boundary masks (only the conditions each tap needs).
# TODO(synk): very large H*W per image would want halo tiling over H here.
# ---------------------------------------------------------------------------
def _conv3x3_kernel(h1_ref, s2_ref, t2_ref, w2_ref, h2_ref, pstat_ref):
    _, H, W, P = h1_ref.shape
    HW = H * W
    h1 = h1_ref[...].reshape(HW, P).astype(jnp.float32)
    a2 = jnp.maximum(h1 * s2_ref[...] + t2_ref[...], 0.0)         # (HW, P) f32

    # Validity depends only on (h, w): (HW, 1) indices, lane-broadcast into where.
    h_idx = lax.broadcasted_iota(jnp.int32, (H, W, 1), 0).reshape(HW, 1)
    w_idx = lax.broadcasted_iota(jnp.int32, (H, W, 1), 1).reshape(HW, 1)

    acc = jnp.zeros((HW, P), jnp.float32)
    for kh in range(3):
        dh = kh - 1
        for kw in range(3):
            dw = kw - 1
            d = dh * W + dw                                        # flat tap offset
            tap = jnp.roll(a2, -d, axis=0) if d else a2
            conds = []
            if dh < 0:
                conds.append(h_idx >= -dh)
            if dh > 0:
                conds.append(h_idx < H - dh)
            if dw < 0:
                conds.append(w_idx >= -dw)
            if dw > 0:
                conds.append(w_idx < W - dw)
            if conds:
                valid = conds[0]
                for cnd in conds[1:]:
                    valid = valid & cnd
                tap = jnp.where(valid, tap, 0.0)
            acc = acc + jnp.dot(tap.astype(jnp.bfloat16), w2_ref[kh * 3 + kw],
                                preferred_element_type=jnp.float32)

    h2_ref[...] = acc.astype(jnp.bfloat16).reshape(h2_ref.shape)   # bf16 storage
    pstat_ref[...] = _partial_stats(acc)[None]                     # f32 pre-round stats


# ---------------------------------------------------------------------------
# Pass 3: out = conv3(relu(bn3(h2))) + shortcut, with the shortcut recomputed
# in-kernel (a1 = relu(bn1(x)); sc = a1 @ ws) instead of round-tripped via HBM.
# The extra matmul is free: the pass is memory-bound and the MXU has slack.
# ---------------------------------------------------------------------------
def _stage3_kernel(h2_ref, s3_ref, t3_ref, w3_ref,
                   x_ref, s1_ref, t1_ref, ws_ref, out_ref):
    p = h2_ref.shape[-1]
    cin = x_ref.shape[-1]
    h2 = h2_ref[...].reshape(-1, p).astype(jnp.float32)
    a3 = jnp.maximum(h2 * s3_ref[...] + t3_ref[...], 0.0)
    x = x_ref[...].reshape(-1, cin)
    a1 = jnp.maximum(x * s1_ref[...] + t1_ref[...], 0.0)
    out = (jnp.dot(a3.astype(jnp.bfloat16), w3_ref[...],
                   preferred_element_type=jnp.float32)
           + jnp.dot(a1.astype(jnp.bfloat16), ws_ref[...],
                     preferred_element_type=jnp.float32))
    out_ref[...] = out.reshape(out_ref.shape)


# ---------------------------------------------------------------------------
# Wrapper.
# ---------------------------------------------------------------------------
def preact_bottleneck(x_nchw, params, stride=1):
    """Forward pass matching TorchPreActBottleneck (training-mode BN)."""
    # TODO(synk): stride > 1 needs strided taps in conv2 and a strided shortcut.
    assert stride == 1

    x = jnp.transpose(x_nchw, (0, 2, 3, 1)).astype(jnp.float32)    # NCHW -> NHWC
    N, H, W, Cin = x.shape
    P = params["w1"].shape[1]
    Cout = params["w3"].shape[1]
    M = N * H * W
    f32 = jnp.float32

    vmem_limit, block_budget = _hw_budget()
    th = _pick_tile_h(H, W, max(Cin, P, Cout), block_budget)
    GH = H // th

    cp2 = pltpu.CompilerParams(dimension_semantics=("parallel", "parallel"),
                               vmem_limit_bytes=vmem_limit)
    cp1 = pltpu.CompilerParams(dimension_semantics=("parallel",),
                               vmem_limit_bytes=vmem_limit)

    def slab(c):                     # (1, th, W, c) row-slab of one image
        return pl.BlockSpec((1, th, W, c), lambda n, g: (n, g, 0, 0))

    def vec(c):                      # whole (1, c) scale/shift vector
        return pl.BlockSpec((1, c), lambda n, g: (0, 0))

    def mat(shape):                  # whole weight matrix
        return pl.BlockSpec(shape, lambda n, g: (0,) * len(shape))

    def pstat_spec(c):
        return pl.BlockSpec((1, 1, 2, c), lambda n, g: (n, g, 0, 0))

    w1b = params["w1"].astype(jnp.bfloat16)
    w2b = params["w2"].astype(jnp.bfloat16)        # (9, P, P), tap-major (kh*3+kw)
    w3b = params["w3"].astype(jnp.bfloat16)
    wsb = params["ws"].astype(jnp.bfloat16)

    # ---- pass 0: bn1 statistics of x --------------------------------------
    pstat0 = pl.pallas_call(
        _stats_kernel,
        grid=(N, GH),
        in_specs=[slab(Cin)],
        out_specs=pstat_spec(Cin),
        out_shape=jax.ShapeDtypeStruct((N, GH, 2, Cin), f32),
        compiler_params=cp2,
    )(x)
    scale1, shift1 = _finalize_bn(pstat0, M, params["g1"], params["b1"])

    # ---- pass 1: bn1 + relu, conv1 (1x1), bn2 stats; h1 stored bf16 --------
    h1, pstat1 = pl.pallas_call(
        _stage1_kernel,
        grid=(N, GH),
        in_specs=[slab(Cin), vec(Cin), vec(Cin), mat((Cin, P))],
        out_specs=(slab(P), pstat_spec(P)),
        out_shape=(jax.ShapeDtypeStruct((N, H, W, P), jnp.bfloat16),
                   jax.ShapeDtypeStruct((N, GH, 2, P), f32)),
        compiler_params=cp2,
    )(x, scale1, shift1, w1b)
    scale2, shift2 = _finalize_bn(pstat1, M, params["g2"], params["b2"])

    # ---- pass 2: bn2 + relu, conv2 (3x3, pad=1), bn3 stats; h2 stored bf16 -
    h2, pstat2 = pl.pallas_call(
        _conv3x3_kernel,
        grid=(N,),
        in_specs=[pl.BlockSpec((1, H, W, P), lambda n: (n, 0, 0, 0)),
                  pl.BlockSpec((1, P), lambda n: (0, 0)),
                  pl.BlockSpec((1, P), lambda n: (0, 0)),
                  pl.BlockSpec((9, P, P), lambda n: (0, 0, 0))],
        out_specs=(pl.BlockSpec((1, H, W, P), lambda n: (n, 0, 0, 0)),
                   pl.BlockSpec((1, 2, P), lambda n: (n, 0, 0))),
        out_shape=(jax.ShapeDtypeStruct((N, H, W, P), jnp.bfloat16),
                   jax.ShapeDtypeStruct((N, 2, P), f32)),
        compiler_params=cp1,
    )(h1, scale2, shift2, w2b)
    scale3, shift3 = _finalize_bn(pstat2, M, params["g3"], params["b3"])

    # ---- pass 3: bn3 + relu, conv3 (1x1), recomputed shortcut, residual add -
    # (At toy channel widths the sub-128 last dim forces masked stores; real
    #  ResNet widths (Cout >= 256) are naturally lane-dense.)
    out = pl.pallas_call(
        _stage3_kernel,
        grid=(N, GH),
        in_specs=[slab(P), vec(P), vec(P), mat((P, Cout)),
                  slab(Cin), vec(Cin), vec(Cin), mat((Cin, Cout))],
        out_specs=slab(Cout),
        out_shape=jax.ShapeDtypeStruct((N, H, W, Cout), f32),
        compiler_params=cp2,
    )(h2, scale3, shift3, w3b, x, scale1, shift1, wsb)

    return jnp.transpose(out, (0, 3, 1, 2))        # NHWC -> NCHW


# ---------------------------------------------------------------------------
# Parameters / reference / demo.
# ---------------------------------------------------------------------------
def make_params(key, in_planes, planes):
    """Deterministic synthetic parameters (shapes from the nn.Module __init__)."""
    cout = 4 * planes
    ks = jax.random.split(key, 10)
    f32 = jnp.float32

    def rnd(k, shape, scale=0.1):
        return (scale * jax.random.normal(k, shape)).astype(f32)

    return {
        "g1": 1.0 + rnd(ks[0], (1, in_planes)), "b1": rnd(ks[1], (1, in_planes)),
        "w1": rnd(ks[2], (in_planes, planes)),
        "g2": 1.0 + rnd(ks[3], (1, planes)), "b2": rnd(ks[4], (1, planes)),
        # (kh, kw, Cin, Cout) flattened to (9, Cin, Cout); tap index = kh*3 + kw
        "w2": rnd(ks[5], (3, 3, planes, planes)).reshape(9, planes, planes),
        "g3": 1.0 + rnd(ks[6], (1, planes)), "b3": rnd(ks[7], (1, planes)),
        "w3": rnd(ks[8], (planes, cout)),
        "ws": rnd(ks[9], (in_planes, cout)),
    }


def reference_forward(x_nchw, params):
    """Pure-JAX f32 reference (independent conv lowering) for a sanity check."""
    x = jnp.transpose(x_nchw, (0, 2, 3, 1)).astype(jnp.float32)

    def bn_relu(h, g, b):
        mu = h.mean(axis=(0, 1, 2), keepdims=True)
        var = ((h - mu) ** 2).mean(axis=(0, 1, 2), keepdims=True)
        return jnp.maximum((h - mu) * lax.rsqrt(var + EPS) * g.reshape(1, 1, 1, -1)
                           + b.reshape(1, 1, 1, -1), 0.0)

    a1 = bn_relu(x, params["g1"], params["b1"])
    sc = jnp.einsum("nhwc,cd->nhwd", a1, params["ws"])
    h1 = jnp.einsum("nhwc,cd->nhwd", a1, params["w1"])
    a2 = bn_relu(h1, params["g2"], params["b2"])
    w2_hwio = params["w2"].reshape(3, 3, *params["w2"].shape[1:])
    h2 = lax.conv_general_dilated(
        a2, w2_hwio, window_strides=(1, 1), padding="SAME",
        dimension_numbers=("NHWC", "HWIO", "NHWC"))
    a3 = bn_relu(h2, params["g3"], params["b3"])
    out = jnp.einsum("nhwc,cd->nhwd", a3, params["w3"]) + sc
    return jnp.transpose(out, (0, 3, 1, 2))


if __name__ == "__main__":
    key = jax.random.PRNGKey(0)
    k_x, k_p = jax.random.split(key)

    in_planes, planes = 16, 8       # expansion*planes = 32 != in_planes -> conv shortcut
    N, H, W = 2, 16, 16
    x = jax.random.normal(k_x, (N, in_planes, H, W), jnp.float32)   # PyTorch NCHW input
    params = make_params(k_p, in_planes, planes)

    fwd = jax.jit(functools.partial(preact_bottleneck, stride=1))
    out = jax.block_until_ready(fwd(x, params))

    assert out.shape == (N, 4 * planes, H, W), out.shape

    ref = reference_forward(x, params)
    err = float(jnp.max(jnp.abs(out - ref)))
    # Kernel uses bf16 MXU inputs and bf16 h1/h2 storage (f32 accumulation and
    # f32 pre-rounding BN statistics); reference is all-f32.
    assert err < 5e-2, f"max abs err {err}"

    print("KERNEL_OK")
</pallas_src>

<mosaic_0001>
module attributes {stable_mosaic.version = 11 : i64} {
  func.func @_stats_kernel(%arg0: i32, %arg1: i32, %arg2: memref<1x16x16x16xf32, #tpu.memory_space<vmem>>, %arg3: memref<1x1x2x16xf32, #tpu.memory_space<vmem>>) attributes {dimension_semantics = [#tpu.dimension_semantics<parallel>, #tpu.dimension_semantics<parallel>], iteration_bounds = array<i64: 2, 1>, scalar_prefetch = 0 : i64, scratch_operands = 0 : i64, tpu.core_type = #tpu.core_type<tc>, window_params = [{transform_indices = @transform_0, window_bounds = array<i64: 1, 16, 16, 16>}, {transform_indices = @transform_1, window_bounds = array<i64: 1, 1, 2, 16>}]} {
    %c0 = arith.constant 0 : index
    %c0_0 = arith.constant 0 : index
    %c0_1 = arith.constant 0 : index
    %c0_2 = arith.constant 0 : index
    %0 = vector.load %arg2[%c0, %c0_0, %c0_1, %c0_2] : memref<1x16x16x16xf32, #tpu.memory_space<vmem>>, vector<1x16x16x16xf32>
    %1 = vector.shape_cast %0 : vector<1x16x16x16xf32> to vector<256x16xf32>
    %cst = arith.constant dense<0.000000e+00> : vector<16xf32>
    %2 = vector.multi_reduction <add>, %1, %cst [0] : vector<256x16xf32> to vector<16xf32>
    %3 = vector.shape_cast %2 : vector<16xf32> to vector<1x16xf32>
    %4 = arith.mulf %1, %1 : vector<256x16xf32>
    %cst_3 = arith.constant dense<0.000000e+00> : vector<16xf32>
    %5 = vector.multi_reduction <add>, %4, %cst_3 [0] : vector<256x16xf32> to vector<16xf32>
    %6 = vector.shape_cast %5 : vector<16xf32> to vector<1x16xf32>
    %7 = tpu.concatenate %3, %6 in 0 : vector<1x16xf32>, vector<1x16xf32> -> vector<2x16xf32>
    %8 = vector.shape_cast %7 : vector<2x16xf32> to vector<1x1x2x16xf32>
    %c0_4 = arith.constant 0 : index
    %c0_5 = arith.constant 0 : index
    %c0_6 = arith.constant 0 : index
    %c0_7 = arith.constant 0 : index
    %9 = vector.load %arg3[%c0_4, %c0_5, %c0_6, %c0_7] : memref<1x1x2x16xf32, #tpu.memory_space<vmem>>, vector<1x1x2x16xf32>
    tpu.vector_store %arg3[%c0_4, %c0_5, %c0_6, %c0_7], %8 {strides = array<i32>} : memref<1x1x2x16xf32, #tpu.memory_space<vmem>>, vector<1x1x2x16xf32>,
    return
  }
  func.func @transform_0(%arg0: i32, %arg1: i32) -> (i32, i32, i32, i32) {
    %c0_i32 = arith.constant 0 : i32
    %c0_i32_0 = arith.constant 0 : i32
    %c0_i32_1 = arith.constant 0 : i32
    return %arg0, %arg1, %c0_i32, %c0_i32_0 : i32, i32, i32, i32
  }
  func.func @transform_1(%arg0: i32, %arg1: i32) -> (i32, i32, i32, i32) {
    %c0_i32 = arith.constant 0 : i32
    %c0_i32_0 = arith.constant 0 : i32
    %c0_i32_1 = arith.constant 0 : i32
    return %arg0, %arg1, %c0_i32, %c0_i32_0 : i32, i32, i32, i32
  }
}

module attributes {stable_mosaic.version = 11 : i64} {
  func.func @_stage1_kernel(%arg0: i32, %arg1: i32, %arg2: memref<1x16x16x16xf32, #tpu.memory_space<vmem>>, %arg3: memref<1x16xf32, #tpu.memory_space<vmem>>, %arg4: memref<1x16xf32, #tpu.memory_space<vmem>>, %arg5: memref<16x8xbf16, #tpu.memory_space<vmem>>, %arg6: memref<1x16x16x8xbf16, #tpu.memory_space<vmem>>, %arg7: memref<1x1x2x8xf32, #tpu.memory_space<vmem>>) attributes {dimension_semantics = [#tpu.dimension_semantics<parallel>, #tpu.dimension_semantics<parallel>], iteration_bounds = array<i64: 2, 1>, scalar_prefetch = 0 : i64, scratch_operands = 0 : i64, tpu.core_type = #tpu.core_type<tc>, window_params = [{transform_indices = @transform_0, window_bounds = array<i64: 1, 16, 16, 16>}, {pipeline_mode = #tpu.pipeline_mode<synchronous>, transform_indices = @transform_1, window_bounds = array<i64: 1, 16>}, {pipeline_mode = #tpu.pipeline_mode<synchronous>, transform_indices = @transform_2, window_bounds = array<i64: 1, 16>}, {pipeline_mode = #tpu.pipeline_mode<synchronous>, transform_indices = @transform_3, window_bounds = array<i64: 16, 8>}, {transform_indices = @transform_4, window_bounds = array<i64: 1, 16, 16, 8>}, {transform_indices = @transform_5, window_bounds = array<i64: 1, 1, 2, 8>}]} {
    %c0 = arith.constant 0 : index
    %c0_0 = arith.constant 0 : index
    %c0_1 = arith.constant 0 : index
    %c0_2 = arith.constant 0 : index
    %0 = vector.load %arg2[%c0, %c0_0, %c0_1, %c0_2] : memref<1x16x16x16xf32, #tpu.memory_space<vmem>>, vector<1x16x16x16xf32>
    %1 = vector.shape_cast %0 : vector<1x16x16x16xf32> to vector<256x16xf32>
    %c0_3 = arith.constant 0 : index
    %c0_4 = arith.constant 0 : index
    %2 = vector.load %arg3[%c0_3, %c0_4] : memref<1x16xf32, #tpu.memory_space<vmem>>, vector<1x16xf32>
    %3 = vector.broadcast %2 : vector<1x16xf32> to vector<256x16xf32>
    %4 = arith.mulf %1, %3 : vector<256x16xf32>
    %c0_5 = arith.constant 0 : index
    %c0_6 = arith.constant 0 : index
    %5 = vector.load %arg4[%c0_5, %c0_6] : memref<1x16xf32, #tpu.memory_space<vmem>>, vector<1x16xf32>
    %6 = vector.broadcast %5 : vector<1x16xf32> to vector<256x16xf32>
    %7 = arith.addf %4, %6 : vector<256x16xf32>
    %cst = arith.constant 0.000000e+00 : f32
    %8 = vector.broadcast %cst : f32 to vector<256x16xf32>
    %9 = arith.maximumf %7, %8 : vector<256x16xf32>
    %10 = arith.truncf %9 : vector<256x16xf32> to vector<256x16xbf16>
    %c0_7 = arith.constant 0 : index
    %c0_8 = arith.constant 0 : index
    %11 = vector.load %arg5[%c0_7, %c0_8] : memref<16x8xbf16, #tpu.memory_space<vmem>>, vector<16x8xbf16>
    %cst_9 = arith.constant dense<0.000000e+00> : vector<256x8xf32>
    %12 = tpu.matmul %10, %11, %cst_9 {dimension_numbers = #tpu.dot_dimension_numbers<[1], [0], [0], [1], [0, 0, 1, 1], [], []>} : vector<256x16xbf16>, vector<16x8xbf16>, vector<256x8xf32> -> vector<256x8xf32>
    %13 = arith.truncf %12 : vector<256x8xf32> to vector<256x8xbf16>
    %14 = vector.shape_cast %13 : vector<256x8xbf16> to vector<1x16x16x8xbf16>
    %c0_10 = arith.constant 0 : index
    %c0_11 = arith.constant 0 : index
    %c0_12 = arith.constant 0 : index
    %c0_13 = arith.constant 0 : index
    %15 = vector.load %arg6[%c0_10, %c0_11, %c0_12, %c0_13] : memref<1x16x16x8xbf16, #tpu.memory_space<vmem>>, vector<1x16x16x8xbf16>
    tpu.vector_store %arg6[%c0_10, %c0_11, %c0_12, %c0_13], %14 {strides = array<i32>} : memref<1x16x16x8xbf16, #tpu.memory_space<vmem>>, vector<1x16x16x8xbf16>,
    %cst_14 = arith.constant dense<0.000000e+00> : vector<8xf32>
    %16 = vector.multi_reduction <add>, %12, %cst_14 [0] : vector<256x8xf32> to vector<8xf32>
    %17 = vector.shape_cast %16 : vector<8xf32> to vector<1x8xf32>
    %18 = arith.mulf %12, %12 : vector<256x8xf32>
    %cst_15 = arith.constant dense<0.000000e+00> : vector<8xf32>
    %19 = vector.multi_reduction <add>, %18, %cst_15 [0] : vector<256x8xf32> to vector<8xf32>
    %20 = vector.shape_cast %19 : vector<8xf32> to vector<1x8xf32>
    %21 = tpu.concatenate %17, %20 in 0 : vector<1x8xf32>, vector<1x8xf32> -> vector<2x8xf32>
    %22 = vector.shape_cast %21 : vector<2x8xf32> to vector<1x1x2x8xf32>
    %c0_16 = arith.constant 0 : index
    %c0_17 = arith.constant 0 : index
    %c0_18 = arith.constant 0 : index
    %c0_19 = arith.constant 0 : index
    %23 = vector.load %arg7[%c0_16, %c0_17, %c0_18, %c0_19] : memref<1x1x2x8xf32, #tpu.memory_space<vmem>>, vector<1x1x2x8xf32>
    tpu.vector_store %arg7[%c0_16, %c0_17, %c0_18, %c0_19], %22 {strides = array<i32>} : memref<1x1x2x8xf32, #tpu.memory_space<vmem>>, vector<1x1x2x8xf32>,
    return
  }
  func.func @transform_0(%arg0: i32, %arg1: i32) -> (i32, i32, i32, i32) {
    %c0_i32 = arith.constant 0 : i32
    %c0_i32_0 = arith.constant 0 : i32
    %c0_i32_1 = arith.constant 0 : i32
    return %arg0, %arg1, %c0_i32, %c0_i32_0 : i32, i32, i32, i32
  }
  func.func @transform_1(%arg0: i32, %arg1: i32) -> (i32, i32) {
    %c0_i32 = arith.constant 0 : i32
    %c0_i32_0 = arith.constant 0 : i32
    %c0_i32_1 = arith.constant 0 : i32
    return %c0_i32, %c0_i32_0 : i32, i32
  }
  func.func @transform_2(%arg0: i32, %arg1: i32) -> (i32, i32) {
    %c0_i32 = arith.constant 0 : i32
    %c0_i32_0 = arith.constant 0 : i32
    %c0_i32_1 = arith.constant 0 : i32
    return %c0_i32, %c0_i32_0 : i32, i32
  }
  func.func @transform_3(%arg0: i32, %arg1: i32) -> (i32, i32) {
    %c0_i32 = arith.constant 0 : i32
    %c0_i32_0 = arith.constant 0 : i32
    %c0_i32_1 = arith.constant 0 : i32
    return %c0_i32, %c0_i32_0 : i32, i32
  }
  func.func @transform_4(%arg0: i32, %arg1: i32) -> (i32, i32, i32, i32) {
    %c0_i32 = arith.constant 0 : i32
    %c0_i32_0 = arith.constant 0 : i32
    %c0_i32_1 = arith.constant 0 : i32
    return %arg0, %arg1, %c0_i32, %c0_i32_0 : i32, i32, i32, i32
  }
  func.func @transform_5(%arg0: i32, %arg1: i32) -> (i32, i32, i32, i32) {
    %c0_i32 = arith.constant 0 : i32
    %c0_i32_0 = arith.constant 0 : i32
    %c0_i32_1 = arith.constant 0 : i32
    return %arg0, %arg1, %c0_i32, %c0_i32_0 : i32, i32, i32, i32
  }
}

module attributes {stable_mosaic.version = 11 : i64} {
  func.func @_conv3x3_kernel(%arg0: i32, %arg1: memref<1x16x16x8xbf16, #tpu.memory_space<vmem>>, %arg2: memref<1x8xf32, #tpu.memory_space<vmem>>, %arg3: memref<1x8xf32, #tpu.memory_space<vmem>>, %arg4: memref<9x8x8xbf16, #tpu.memory_space<vmem>>, %arg5: memref<1x16x16x8xbf16, #tpu.memory_space<vmem>>, %arg6: memref<1x2x8xf32, #tpu.memory_space<vmem>>) attributes {dimension_semantics = [#tpu.dimension_semantics<parallel>], iteration_bounds = array<i64: 2>, scalar_prefetch = 0 : i64, scratch_operands = 0 : i64, tpu.core_type = #tpu.core_type<tc>, window_params = [{transform_indices = @transform_0, window_bounds = array<i64: 1, 16, 16, 8>}, {pipeline_mode = #tpu.pipeline_mode<synchronous>, transform_indices = @transform_1, window_bounds = array<i64: 1, 8>}, {pipeline_mode = #tpu.pipeline_mode<synchronous>, transform_indices = @transform_2, window_bounds = array<i64: 1, 8>}, {pipeline_mode = #tpu.pipeline_mode<synchronous>, transform_indices = @transform_3, window_bounds = array<i64: 9, 8, 8>}, {transform_indices = @transform_4, window_bounds = array<i64: 1, 16, 16, 8>}, {transform_indices = @transform_5, window_bounds = array<i64: 1, 2, 8>}]} {
    %c0 = arith.constant 0 : index
    %c0_0 = arith.constant 0 : index
    %c0_1 = arith.constant 0 : index
    %c0_2 = arith.constant 0 : index
    %0 = vector.load %arg1[%c0, %c0_0, %c0_1, %c0_2] : memref<1x16x16x8xbf16, #tpu.memory_space<vmem>>, vector<1x16x16x8xbf16>
    %1 = vector.shape_cast %0 : vector<1x16x16x8xbf16> to vector<256x8xbf16>
    %2 = arith.extf %1 : vector<256x8xbf16> to vector<256x8xf32>
    %c0_3 = arith.constant 0 : index
    %c0_4 = arith.constant 0 : index
    %3 = vector.load %arg2[%c0_3, %c0_4] : memref<1x8xf32, #tpu.memory_space<vmem>>, vector<1x8xf32>
    %4 = vector.broadcast %3 : vector<1x8xf32> to vector<256x8xf32>
    %5 = arith.mulf %2, %4 : vector<256x8xf32>
    %c0_5 = arith.constant 0 : index
    %c0_6 = arith.constant 0 : index
    %6 = vector.load %arg3[%c0_5, %c0_6] : memref<1x8xf32, #tpu.memory_space<vmem>>, vector<1x8xf32>
    %7 = vector.broadcast %6 : vector<1x8xf32> to vector<256x8xf32>
    %8 = arith.addf %5, %7 : vector<256x8xf32>
    %cst = arith.constant 0.000000e+00 : f32
    %9 = vector.broadcast %cst : f32 to vector<256x8xf32>
    %10 = arith.maximumf %8, %9 : vector<256x8xf32>
    %11 = tpu.iota {dimensions = array<i32: 0>} : vector<16x16x1xi32>
    %12 = vector.shape_cast %11 : vector<16x16x1xi32> to vector<256x1xi32>
    %13 = tpu.iota {dimensions = array<i32: 1>} : vector<16x16x1xi32>
    %14 = vector.shape_cast %13 : vector<16x16x1xi32> to vector<256x1xi32>
    %cst_7 = arith.constant 0.000000e+00 : f32
    %15 = vector.broadcast %cst_7 : f32 to vector<256x8xf32>
    %16 = vector.extract_strided_slice %10 {offsets = [239, 0], sizes = [17, 8], strides = [1, 1]} : vector<256x8xf32> to vector<17x8xf32>
    %17 = vector.extract_strided_slice %10 {offsets = [0, 0], sizes = [239, 8], strides = [1, 1]} : vector<256x8xf32> to vector<239x8xf32>
    %18 = tpu.concatenate %16, %17 in 0 : vector<17x8xf32>, vector<239x8xf32> -> vector<256x8xf32>
    %c1_i32 = arith.constant 1 : i32
    %19 = vector.broadcast %c1_i32 : i32 to vector<256x1xi32>
    %20 = arith.cmpi sge, %12, %19 : vector<256x1xi32>
    %c1_i32_8 = arith.constant 1 : i32
    %21 = vector.broadcast %c1_i32_8 : i32 to vector<256x1xi32>
    %22 = arith.cmpi sge, %14, %21 : vector<256x1xi32>
    %23 = arith.andi %20, %22 : vector<256x1xi1>
    %cst_9 = arith.constant 0.000000e+00 : f32
    %24 = vector.shape_cast %23 : vector<256x1xi1> to vector<256x1xi1>
    %25 = vector.broadcast %24 : vector<256x1xi1> to vector<256x8xi1>
    %26 = vector.broadcast %cst_9 : f32 to vector<256x8xf32>
    %27 = arith.select %25, %18, %26 : vector<256x8xi1>, vector<256x8xf32>
    %28 = arith.truncf %27 : vector<256x8xf32> to vector<256x8xbf16>
    %c0_10 = arith.constant 0 : index
    %c0_11 = arith.constant 0 : index
    %c0_12 = arith.constant 0 : index
    %29 = vector.load %arg4[%c0_10, %c0_11, %c0_12] : memref<9x8x8xbf16, #tpu.memory_space<vmem>>, vector<1x8x8xbf16>
    %30 = vector.shape_cast %29 : vector<1x8x8xbf16> to vector<8x8xbf16>
    %cst_13 = arith.constant dense<0.000000e+00> : vector<256x8xf32>
    %31 = tpu.matmul %28, %30, %cst_13 {dimension_numbers = #tpu.dot_dimension_numbers<[1], [0], [0], [1], [0, 0, 1, 1], [], []>} : vector<256x8xbf16>, vector<8x8xbf16>, vector<256x8xf32> -> vector<256x8xf32>
    %32 = arith.addf %15, %31 : vector<256x8xf32>
    %33 = vector.extract_strided_slice %10 {offsets = [240, 0], sizes = [16, 8], strides = [1, 1]} : vector<256x8xf32> to vector<16x8xf32>
    %34 = vector.extract_strided_slice %10 {offsets = [0, 0], sizes = [240, 8], strides = [1, 1]} : vector<256x8xf32> to vector<240x8xf32>
    %35 = tpu.concatenate %33, %34 in 0 : vector<16x8xf32>, vector<240x8xf32> -> vector<256x8xf32>
    %c1_i32_14 = arith.constant 1 : i32
    %36 = vector.broadcast %c1_i32_14 : i32 to vector<256x1xi32>
    %37 = arith.cmpi sge, %12, %36 : vector<256x1xi32>
    %cst_15 = arith.constant 0.000000e+00 : f32
    %38 = vector.shape_cast %37 : vector<256x1xi1> to vector<256x1xi1>
    %39 = vector.broadcast %38 : vector<256x1xi1> to vector<256x8xi1>
    %40 = vector.broadcast %cst_15 : f32 to vector<256x8xf32>
    %41 = arith.select %39, %35, %40 : vector<256x8xi1>, vector<256x8xf32>
    %42 = arith.truncf %41 : vector<256x8xf32> to vector<256x8xbf16>
    %c1 = arith.constant 1 : index
    %c0_16 = arith.constant 0 : index
    %c0_17 = arith.constant 0 : index
    %43 = vector.load %arg4[%c1, %c0_16, %c0_17] : memref<9x8x8xbf16, #tpu.memory_space<vmem>>, vector<1x8x8xbf16>
    %44 = vector.shape_cast %43 : vector<1x8x8xbf16> to vector<8x8xbf16>
    %cst_18 = arith.constant dense<0.000000e+00> : vector<256x8xf32>
    %45 = tpu.matmul %42, %44, %cst_18 {dimension_numbers = #tpu.dot_dimension_numbers<[1], [0], [0], [1], [0, 0, 1, 1], [], []>} : vector<256x8xbf16>, vector<8x8xbf16>, vector<256x8xf32> -> vector<256x8xf32>
    %46 = arith.addf %32, %45 : vector<256x8xf32>
    %47 = vector.extract_strided_slice %10 {offsets = [241, 0], sizes = [15, 8], strides = [1, 1]} : vector<256x8xf32> to vector<15x8xf32>
    %48 = vector.extract_strided_slice %10 {offsets = [0, 0], sizes = [241, 8], strides = [1, 1]} : vector<256x8xf32> to vector<241x8xf32>
    %49 = tpu.concatenate %47, %48 in 0 : vector<15x8xf32>, vector<241x8xf32> -> vector<256x8xf32>
    %c1_i32_19 = arith.constant 1 : i32
    %50 = vector.broadcast %c1_i32_19 : i32 to vector<256x1xi32>
    %51 = arith.cmpi sge, %12, %50 : vector<256x1xi32>
    %c15_i32 = arith.constant 15 : i32
    %52 = vector.broadcast %c15_i32 : i32 to vector<256x1xi32>
    %53 = arith.cmpi slt, %14, %52 : vector<256x1xi32>
    %54 = arith.andi %51, %53 : vector<256x1xi1>
    %cst_20 = arith.constant 0.000000e+00 : f32
    %55 = vector.shape_cast %54 : vector<256x1xi1> to vector<256x1xi1>
    %56 = vector.broadcast %55 : vector<256x1xi1> to vector<256x8xi1>
    %57 = vector.broadcast %cst_20 : f32 to vector<256x8xf32>
    %58 = arith.select %56, %49, %57 : vector<256x8xi1>, vector<256x8xf32>
    %59 = arith.truncf %58 : vector<256x8xf32> to vector<256x8xbf16>
    %c2 = arith.constant 2 : index
    %c0_21 = arith.constant 0 : index
    %c0_22 = arith.constant 0 : index
    %60 = vector.load %arg4[%c2, %c0_21, %c0_22] : memref<9x8x8xbf16, #tpu.memory_space<vmem>>, vector<1x8x8xbf16>
    %61 = vector.shape_cast %60 : vector<1x8x8xbf16> to vector<8x8xbf16>
    %cst_23 = arith.constant dense<0.000000e+00> : vector<256x8xf32>
    %62 = tpu.matmul %59, %61, %cst_23 {dimension_numbers = #tpu.dot_dimension_numbers<[1], [0], [0], [1], [0, 0, 1, 1], [], []>} : vector<256x8xbf16>, vector<8x8xbf16>, vector<256x8xf32> -> vector<256x8xf32>
    %63 = arith.addf %46, %62 : vector<256x8xf32>
    %64 = vector.extract_strided_slice %10 {offsets = [255, 0], sizes = [1, 8], strides = [1, 1]} : vector<256x8xf32> to vector<1x8xf32>
    %65 = vector.extract_strided_slice %10 {offsets = [0, 0], sizes = [255, 8], strides = [1, 1]} : vector<256x8xf32> to vector<255x8xf32>
    %66 = tpu.concatenate %64, %65 in 0 : vector<1x8xf32>, vector<255x8xf32> -> vector<256x8xf32>
    %c1_i32_24 = arith.constant 1 : i32
    %67 = vector.broadcast %c1_i32_24 : i32 to vector<256x1xi32>
    %68 = arith.cmpi sge, %14, %67 : vector<256x1xi32>
    %cst_25 = arith.constant 0.000000e+00 : f32
    %69 = vector.shape_cast %68 : vector<256x1xi1> to vector<256x1xi1>
    %70 = vector.broadcast %69 : vector<256x1xi1> to vector<256x8xi1>
    %71 = vector.broadcast %cst_25 : f32 to vector<256x8xf32>
    %72 = arith.select %70, %66, %71 : vector<256x8xi1>, vector<256x8xf32>
    %73 = arith.truncf %72 : vector<256x8xf32> to vector<256x8xbf16>
    %c3 = arith.constant 3 : index
    %c0_26 = arith.constant 0 : index
    %c0_27 = arith.constant 0 : index
    %74 = vector.load %arg4[%c3, %c0_26, %c0_27] : memref<9x8x8xbf16, #tpu.memory_space<vmem>>, vector<1x8x8xbf16>
    %75 = vector.shape_cast %74 : vector<1x8x8xbf16> to vector<8x8xbf16>
    %cst_28 = arith.constant dense<0.000000e+00> : vector<256x8xf32>
    %76 = tpu.matmul %73, %75, %cst_28 {dimension_numbers = #tpu.dot_dimension_numbers<[1], [0], [0], [1], [0, 0, 1, 1], [], []>} : vector<256x8xbf16>, vector<8x8xbf16>, vector<256x8xf32> -> vector<256x8xf32>
    %77 = arith.addf %63, %76 : vector<256x8xf32>
    %78 = arith.truncf %10 : vector<256x8xf32> to vector<256x8xbf16>
    %c4 = arith.constant 4 : index
    %c0_29 = arith.constant 0 : index
    %c0_30 = arith.constant 0 : index
    %79 = vector.load %arg4[%c4, %c0_29, %c0_30] : memref<9x8x8xbf16, #tpu.memory_space<vmem>>, vector<1x8x8xbf16>
    %80 = vector.shape_cast %79 : vector<1x8x8xbf16> to vector<8x8xbf16>
    %cst_31 = arith.constant dense<0.000000e+00> : vector<256x8xf32>
    %81 = tpu.matmul %78, %80, %cst_31 {dimension_numbers = #tpu.dot_dimension_numbers<[1], [0], [0], [1], [0, 0, 1, 1], [], []>} : vector<256x8xbf16>, vector<8x8xbf16>, vector<256x8xf32> -> vector<256x8xf32>
    %82 = arith.addf %77, %81 : vector<256x8xf32>
    %83 = vector.extract_strided_slice %10 {offsets = [1, 0], sizes = [255, 8], strides = [1, 1]} : vector<256x8xf32> to vector<255x8xf32>
    %84 = vector.extract_strided_slice %10 {offsets = [0, 0], sizes = [1, 8], strides = [1, 1]} : vector<256x8xf32> to vector<1x8xf32>
    %85 = tpu.concatenate %83, %84 in 0 : vector<255x8xf32>, vector<1x8xf32> -> vector<256x8xf32>
    %c15_i32_32 = arith.constant 15 : i32
    %86 = vector.broadcast %c15_i32_32 : i32 to vector<256x1xi32>
    %87 = arith.cmpi slt, %14, %86 : vector<256x1xi32>
    %cst_33 = arith.constant 0.000000e+00 : f32
    %88 = vector.shape_cast %87 : vector<256x1xi1> to vector<256x1xi1>
    %89 = vector.broadcast %88 : vector<256x1xi1> to vector<256x8xi1>
    %90 = vector.broadcast %cst_33 : f32 to vector<256x8xf32>
    %91 = arith.select %89, %85, %90 : vector<256x8xi1>, vector<256x8xf32>
    %92 = arith.truncf %91 : vector<256x8xf32> to vector<256x8xbf16>
    %c5 = arith.constant 5 : index
    %c0_34 = arith.constant 0 : index
    %c0_35 = arith.constant 0 : index
    %93 = vector.load %arg4[%c5, %c0_34, %c0_35] : memref<9x8x8xbf16, #tpu.memory_space<vmem>>, vector<1x8x8xbf16>
    %94 = vector.shape_cast %93 : vector<1x8x8xbf16> to vector<8x8xbf16>
    %cst_36 = arith.constant dense<0.000000e+00> : vector<256x8xf32>
    %95 = tpu.matmul %92, %94, %cst_36 {dimension_numbers = #tpu.dot_dimension_numbers<[1], [0], [0], [1], [0, 0, 1, 1], [], []>} : vector<256x8xbf16>, vector<8x8xbf16>, vector<256x8xf32> -> vector<256x8xf32>
    %96 = arith.addf %82, %95 : vector<256x8xf32>
    %97 = vector.extract_strided_slice %10 {offsets = [15, 0], sizes = [241, 8], strides = [1, 1]} : vector<256x8xf32> to vector<241x8xf32>
    %98 = vector.extract_strided_slice %10 {offsets = [0, 0], sizes = [15, 8], strides = [1, 1]} : vector<256x8xf32> to vector<15x8xf32>
    %99 = tpu.concatenate %97, %98 in 0 : vector<241x8xf32>, vector<15x8xf32> -> vector<256x8xf32>
    %c15_i32_37 = arith.constant 15 : i32
    %100 = vector.broadcast %c15_i32_37 : i32 to vector<256x1xi32>
    %101 = arith.cmpi slt, %12, %100 : vector<256x1xi32>
    %c1_i32_38 = arith.constant 1 : i32
    %102 = vector.broadcast %c1_i32_38 : i32 to vector<256x1xi32>
    %103 = arith.cmpi sge, %14, %102 : vector<256x1xi32>
    %104 = arith.andi %101, %103 : vector<256x1xi1>
    %cst_39 = arith.constant 0.000000e+00 : f32
    %105 = vector.shape_cast %104 : vector<256x1xi1> to vector<256x1xi1>
    %106 = vector.broadcast %105 : vector<256x1xi1> to vector<256x8xi1>
    %107 = vector.broadcast %cst_39 : f32 to vector<256x8xf32>
    %108 = arith.select %106, %99, %107 : vector<256x8xi1>, vector<256x8xf32>
    %109 = arith.truncf %108 : vector<256x8xf32> to vector<256x8xbf16>
    %c6 = arith.constant 6 : index
    %c0_40 = arith.constant 0 : index
    %c0_41 = arith.constant 0 : index
    %110 = vector.load %arg4[%c6, %c0_40, %c0_41] : memref<9x8x8xbf16, #tpu.memory_space<vmem>>, vector<1x8x8xbf16>
    %111 = vector.shape_cast %110 : vector<1x8x8xbf16> to vector<8x8xbf16>
    %cst_42 = arith.constant dense<0.000000e+00> : vector<256x8xf32>
    %112 = tpu.matmul %109, %111, %cst_42 {dimension_numbers = #tpu.dot_dimension_numbers<[1], [0], [0], [1], [0, 0, 1, 1], [], []>} : vector<256x8xbf16>, vector<8x8xbf16>, vector<256x8xf32> -> vector<256x8xf32>
    %113 = arith.addf %96, %112 : vector<256x8xf32>
    %114 = vector.extract_strided_slice %10 {offsets = [16, 0], sizes = [240, 8], strides = [1, 1]} : vector<256x8xf32> to vector<240x8xf32>
    %115 = vector.extract_strided_slice %10 {offsets = [0, 0], sizes = [16, 8], strides = [1, 1]} : vector<256x8xf32> to vector<16x8xf32>
    %116 = tpu.concatenate %114, %115 in 0 : vector<240x8xf32>, vector<16x8xf32> -> vector<256x8xf32>
    %c15_i32_43 = arith.constant 15 : i32
    %117 = vector.broadcast %c15_i32_43 : i32 to vector<256x1xi32>
    %118 = arith.cmpi slt, %12, %117 : vector<256x1xi32>
    %cst_44 = arith.constant 0.000000e+00 : f32
    %119 = vector.shape_cast %118 : vector<256x1xi1> to vector<256x1xi1>
    %120 = vector.broadcast %119 : vector<256x1xi1> to vector<256x8xi1>
    %121 = vector.broadcast %cst_44 : f32 to vector<256x8xf32>
    %122 = arith.select %120, %116, %121 : vector<256x8xi1>, vector<256x8xf32>
    %123 = arith.truncf %122 : vector<256x8xf32> to vector<256x8xbf16>
    %c7 = arith.constant 7 : index
    %c0_45 = arith.constant 0 : index
    %c0_46 = arith.constant 0 : index
    %124 = vector.load %arg4[%c7, %c0_45, %c0_46] : memref<9x8x8xbf16, #tpu.memory_space<vmem>>, vector<1x8x8xbf16>
    %125 = vector.shape_cast %124 : vector<1x8x8xbf16> to vector<8x8xbf16>
    %cst_47 = arith.constant dense<0.000000e+00> : vector<256x8xf32>
    %126 = tpu.matmul %123, %125, %cst_47 {dimension_numbers = #tpu.dot_dimension_numbers<[1], [0], [0], [1], [0, 0, 1, 1], [], []>} : vector<256x8xbf16>, vector<8x8xbf16>, vector<256x8xf32> -> vector<256x8xf32>
    %127 = arith.addf %113, %126 : vector<256x8xf32>
    %128 = vector.extract_strided_slice %10 {offsets = [17, 0], sizes = [239, 8], strides = [1, 1]} : vector<256x8xf32> to vector<239x8xf32>
    %129 = vector.extract_strided_slice %10 {offsets = [0, 0], sizes = [17, 8], strides = [1, 1]} : vector<256x8xf32> to vector<17x8xf32>
    %130 = tpu.concatenate %128, %129 in 0 : vector<239x8xf32>, vector<17x8xf32> -> vector<256x8xf32>
    %c15_i32_48 = arith.constant 15 : i32
    %131 = vector.broadcast %c15_i32_48 : i32 to vector<256x1xi32>
    %132 = arith.cmpi slt, %12, %131 : vector<256x1xi32>
    %c15_i32_49 = arith.constant 15 : i32
    %133 = vector.broadcast %c15_i32_49 : i32 to vector<256x1xi32>
    %134 = arith.cmpi slt, %14, %133 : vector<256x1xi32>
    %135 = arith.andi %132, %134 : vector<256x1xi1>
    %cst_50 = arith.constant 0.000000e+00 : f32
    %136 = vector.shape_cast %135 : vector<256x1xi1> to vector<256x1xi1>
    %137 = vector.broadcast %136 : vector<256x1xi1> to vector<256x8xi1>
    %138 = vector.broadcast %cst_50 : f32 to vector<256x8xf32>
    %139 = arith.select %137, %130, %138 : vector<256x8xi1>, vector<256x8xf32>
    %140 = arith.truncf %139 : vector<256x8xf32> to vector<256x8xbf16>
    %c8 = arith.constant 8 : index
    %c0_51 = arith.constant 0 : index
    %c0_52 = arith.constant 0 : index
    %141 = vector.load %arg4[%c8, %c0_51, %c0_52] : memref<9x8x8xbf16, #tpu.memory_space<vmem>>, vector<1x8x8xbf16>
    %142 = vector.shape_cast %141 : vector<1x8x8xbf16> to vector<8x8xbf16>
    %cst_53 = arith.constant dense<0.000000e+00> : vector<256x8xf32>
    %143 = tpu.matmul %140, %142, %cst_53 {dimension_numbers = #tpu.dot_dimension_numbers<[1], [0], [0], [1], [0, 0, 1, 1], [], []>} : vector<256x8xbf16>, vector<8x8xbf16>, vector<256x8xf32> -> vector<256x8xf32>
    %144 = arith.addf %127, %143 : vector<256x8xf32>
    %145 = arith.truncf %144 : vector<256x8xf32> to vector<256x8xbf16>
    %146 = vector.shape_cast %145 : vector<256x8xbf16> to vector<1x16x16x8xbf16>
    %c0_54 = arith.constant 0 : index
    %c0_55 = arith.constant 0 : index
    %c0_56 = arith.constant 0 : index
    %c0_57 = arith.constant 0 : index
    %147 = vector.load %arg5[%c0_54, %c0_55, %c0_56, %c0_57] : memref<1x16x16x8xbf16, #tpu.memory_space<vmem>>, vector<1x16x16x8xbf16>
    tpu.vector_store %arg5[%c0_54, %c0_55, %c0_56, %c0_57], %146 {strides = array<i32>} : memref<1x16x16x8xbf16, #tpu.memory_space<vmem>>, vector<1x16x16x8xbf16>,
    %cst_58 = arith.constant dense<0.000000e+00> : vector<8xf32>
    %148 = vector.multi_reduction <add>, %144, %cst_58 [0] : vector<256x8xf32> to vector<8xf32>
    %149 = vector.shape_cast %148 : vector<8xf32> to vector<1x8xf32>
    %150 = arith.mulf %144, %144 : vector<256x8xf32>
    %cst_59 = arith.constant dense<0.000000e+00> : vector<8xf32>
    %151 = vector.multi_reduction <add>, %150, %cst_59 [0] : vector<256x8xf32> to vector<8xf32>
    %152 = vector.shape_cast %151 : vector<8xf32> to vector<1x8xf32>
    %153 = tpu.concatenate %149, %152 in 0 : vector<1x8xf32>, vector<1x8xf32> -> vector<2x8xf32>
    %154 = vector.shape_cast %153 : vector<2x8xf32> to vector<1x2x8xf32>
    %c0_60 = arith.constant 0 : index
    %c0_61 = arith.constant 0 : index
    %c0_62 = arith.constant 0 : index
    %155 = vector.load %arg6[%c0_60, %c0_61, %c0_62] : memref<1x2x8xf32, #tpu.memory_space<vmem>>, vector<1x2x8xf32>
    tpu.vector_store %arg6[%c0_60, %c0_61, %c0_62], %154 {strides = array<i32>} : memref<1x2x8xf32, #tpu.memory_space<vmem>>, vector<1x2x8xf32>,
    return
  }
  func.func @transform_0(%arg0: i32) -> (i32, i32, i32, i32) {
    %c0_i32 = arith.constant 0 : i32
    %c0_i32_0 = arith.constant 0 : i32
    %c0_i32_1 = arith.constant 0 : i32
    %c0_i32_2 = arith.constant 0 : i32
    return %arg0, %c0_i32, %c0_i32_0, %c0_i32_1 : i32, i32, i32, i32
  }
  func.func @transform_1(%arg0: i32) -> (i32, i32) {
    %c0_i32 = arith.constant 0 : i32
    %c0_i32_0 = arith.constant 0 : i32
    %c0_i32_1 = arith.constant 0 : i32
    return %c0_i32, %c0_i32_0 : i32, i32
  }
  func.func @transform_2(%arg0: i32) -> (i32, i32) {
    %c0_i32 = arith.constant 0 : i32
    %c0_i32_0 = arith.constant 0 : i32
    %c0_i32_1 = arith.constant 0 : i32
    return %c0_i32, %c0_i32_0 : i32, i32
  }
  func.func @transform_3(%arg0: i32) -> (i32, i32, i32) {
    %c0_i32 = arith.constant 0 : i32
    %c0_i32_0 = arith.constant 0 : i32
    %c0_i32_1 = arith.constant 0 : i32
    %c0_i32_2 = arith.constant 0 : i32
    return %c0_i32, %c0_i32_0, %c0_i32_1 : i32, i32, i32
  }
  func.func @transform_4(%arg0: i32) -> (i32, i32, i32, i32) {
    %c0_i32 = arith.constant 0 : i32
    %c0_i32_0 = arith.constant 0 : i32
    %c0_i32_1 = arith.constant 0 : i32
    %c0_i32_2 = arith.constant 0 : i32
    return %arg0, %c0_i32, %c0_i32_0, %c0_i32_1 : i32, i32, i32, i32
  }
  func.func @transform_5(%arg0: i32) -> (i32, i32, i32) {
    %c0_i32 = arith.constant 0 : i32
    %c0_i32_0 = arith.constant 0 : i32
    %c0_i32_1 = arith.constant 0 : i32
    return %arg0, %c0_i32, %c0_i32_0 : i32, i32, i32
  }
}

module attributes {stable_mosaic.version = 11 : i64} {
  func.func @_stage3_kernel(%arg0: i32, %arg1: i32, %arg2: memref<1x16x16x8xbf16, #tpu.memory_space<vmem>>, %arg3: memref<1x8xf32, #tpu.memory_space<vmem>>, %arg4: memref<1x8xf32, #tpu.memory_space<vmem>>, %arg5: memref<8x32xbf16, #tpu.memory_space<vmem>>, %arg6: memref<1x16x16x16xf32, #tpu.memory_space<vmem>>, %arg7: memref<1x16xf32, #tpu.memory_space<vmem>>, %arg8: memref<1x16xf32, #tpu.memory_space<vmem>>, %arg9: memref<16x32xbf16, #tpu.memory_space<vmem>>, %arg10: memref<1x16x16x32xf32, #tpu.memory_space<vmem>>) attributes {dimension_semantics = [#tpu.dimension_semantics<parallel>, #tpu.dimension_semantics<parallel>], iteration_bounds = array<i64: 2, 1>, scalar_prefetch = 0 : i64, scratch_operands = 0 : i64, tpu.core_type = #tpu.core_type<tc>, window_params = [{transform_indices = @transform_0, window_bounds = array<i64: 1, 16, 16, 8>}, {pipeline_mode = #tpu.pipeline_mode<synchronous>, transform_indices = @transform_1, window_bounds = array<i64: 1, 8>}, {pipeline_mode = #tpu.pipeline_mode<synchronous>, transform_indices = @transform_2, window_bounds = array<i64: 1, 8>}, {pipeline_mode = #tpu.pipeline_mode<synchronous>, transform_indices = @transform_3, window_bounds = array<i64: 8, 32>}, {transform_indices = @transform_4, window_bounds = array<i64: 1, 16, 16, 16>}, {pipeline_mode = #tpu.pipeline_mode<synchronous>, transform_indices = @transform_5, window_bounds = array<i64: 1, 16>}, {pipeline_mode = #tpu.pipeline_mode<synchronous>, transform_indices = @transform_6, window_bounds = array<i64: 1, 16>}, {pipeline_mode = #tpu.pipeline_mode<synchronous>, transform_indices = @transform_7, window_bounds = array<i64: 16, 32>}, {transform_indices = @transform_8, window_bounds = array<i64: 1, 16, 16, 32>}]} {
    %c0 = arith.constant 0 : index
    %c0_0 = arith.constant 0 : index
    %c0_1 = arith.constant 0 : index
    %c0_2 = arith.constant 0 : index
    %0 = vector.load %arg2[%c0, %c0_0, %c0_1, %c0_2] : memref<1x16x16x8xbf16, #tpu.memory_space<vmem>>, vector<1x16x16x8xbf16>
    %1 = vector.shape_cast %0 : vector<1x16x16x8xbf16> to vector<256x8xbf16>
    %2 = arith.extf %1 : vector<256x8xbf16> to vector<256x8xf32>
    %c0_3 = arith.constant 0 : index
    %c0_4 = arith.constant 0 : index
    %3 = vector.load %arg3[%c0_3, %c0_4] : memref<1x8xf32, #tpu.memory_space<vmem>>, vector<1x8xf32>
    %4 = vector.broadcast %3 : vector<1x8xf32> to vector<256x8xf32>
    %5 = arith.mulf %2, %4 : vector<256x8xf32>
    %c0_5 = arith.constant 0 : index
    %c0_6 = arith.constant 0 : index
    %6 = vector.load %arg4[%c0_5, %c0_6] : memref<1x8xf32, #tpu.memory_space<vmem>>, vector<1x8xf32>
    %7 = vector.broadcast %6 : vector<1x8xf32> to vector<256x8xf32>
    %8 = arith.addf %5, %7 : vector<256x8xf32>
    %cst = arith.constant 0.000000e+00 : f32
    %9 = vector.broadcast %cst : f32 to vector<256x8xf32>
    %10 = arith.maximumf %8, %9 : vector<256x8xf32>
    %c0_7 = arith.constant 0 : index
    %c0_8 = arith.constant 0 : index
    %c0_9 = arith.constant 0 : index
    %c0_10 = arith.constant 0 : index
    %11 = vector.load %arg6[%c0_7, %c0_8, %c0_9, %c0_10] : memref<1x16x16x16xf32, #tpu.memory_space<vmem>>, vector<1x16x16x16xf32>
    %12 = vector.shape_cast %11 : vector<1x16x16x16xf32> to vector<256x16xf32>
    %c0_11 = arith.constant 0 : index
    %c0_12 = arith.constant 0 : index
    %13 = vector.load %arg7[%c0_11, %c0_12] : memref<1x16xf32, #tpu.memory_space<vmem>>, vector<1x16xf32>
    %14 = vector.broadcast %13 : vector<1x16xf32> to vector<256x16xf32>
    %15 = arith.mulf %12, %14 : vector<256x16xf32>
    %c0_13 = arith.constant 0 : index
    %c0_14 = arith.constant 0 : index
    %16 = vector.load %arg8[%c0_13, %c0_14] : memref<1x16xf32, #tpu.memory_space<vmem>>, vector<1x16xf32>
    %17 = vector.broadcast %16 : vector<1x16xf32> to vector<256x16xf32>
    %18 = arith.addf %15, %17 : vector<256x16xf32>
    %cst_15 = arith.constant 0.000000e+00 : f32
    %19 = vector.broadcast %cst_15 : f32 to vector<256x16xf32>
    %20 = arith.maximumf %18, %19 : vector<256x16xf32>
    %21 = arith.truncf %10 : vector<256x8xf32> to vector<256x8xbf16>
    %c0_16 = arith.constant 0 : index
    %c0_17 = arith.constant 0 : index
    %22 = vector.load %arg5[%c0_16, %c0_17] : memref<8x32xbf16, #tpu.memory_space<vmem>>, vector<8x32xbf16>
    %cst_18 = arith.constant dense<0.000000e+00> : vector<256x32xf32>
    %23 = tpu.matmul %21, %22, %cst_18 {dimension_numbers = #tpu.dot_dimension_numbers<[1], [0], [0], [1], [0, 0, 1, 1], [], []>} : vector<256x8xbf16>, vector<8x32xbf16>, vector<256x32xf32> -> vector<256x32xf32>
    %24 = arith.truncf %20 : vector<256x16xf32> to vector<256x16xbf16>
    %c0_19 = arith.constant 0 : index
    %c0_20 = arith.constant 0 : index
    %25 = vector.load %arg9[%c0_19, %c0_20] : memref<16x32xbf16, #tpu.memory_space<vmem>>, vector<16x32xbf16>
    %cst_21 = arith.constant dense<0.000000e+00> : vector<256x32xf32>
    %26 = tpu.matmul %24, %25, %cst_21 {dimension_numbers = #tpu.dot_dimension_numbers<[1], [0], [0], [1], [0, 0, 1, 1], [], []>} : vector<256x16xbf16>, vector<16x32xbf16>, vector<256x32xf32> -> vector<256x32xf32>
    %27 = arith.addf %23, %26 : vector<256x32xf32>
    %28 = vector.shape_cast %27 : vector<256x32xf32> to vector<1x16x16x32xf32>
    %c0_22 = arith.constant 0 : index
    %c0_23 = arith.constant 0 : index
    %c0_24 = arith.constant 0 : index
    %c0_25 = arith.constant 0 : index
    %29 = vector.load %arg10[%c0_22, %c0_23, %c0_24, %c0_25] : memref<1x16x16x32xf32, #tpu.memory_space<vmem>>, vector<1x16x16x32xf32>
    tpu.vector_store %arg10[%c0_22, %c0_23, %c0_24, %c0_25], %28 {strides = array<i32>} : memref<1x16x16x32xf32, #tpu.memory_space<vmem>>, vector<1x16x16x32xf32>,
    return
  }
  func.func @transform_0(%arg0: i32, %arg1: i32) -> (i32, i32, i32, i32) {
    %c0_i32 = arith.constant 0 : i32
    %c0_i32_0 = arith.constant 0 : i32
    %c0_i32_1 = arith.constant 0 : i32
    return %arg0, %arg1, %c0_i32, %c0_i32_0 : i32, i32, i32, i32
  }
  func.func @transform_1(%arg0: i32, %arg1: i32) -> (i32, i32) {
    %c0_i32 = arith.constant 0 : i32
    %c0_i32_0 = arith.constant 0 : i32
    %c0_i32_1 = arith.constant 0 : i32
    return %c0_i32, %c0_i32_0 : i32, i32
  }
  func.func @transform_2(%arg0: i32, %arg1: i32) -> (i32, i32) {
    %c0_i32 = arith.constant 0 : i32
    %c0_i32_0 = arith.constant 0 : i32
    %c0_i32_1 = arith.constant 0 : i32
    return %c0_i32, %c0_i32_0 : i32, i32
  }
  func.func @transform_3(%arg0: i32, %arg1: i32) -> (i32, i32) {
    %c0_i32 = arith.constant 0 : i32
    %c0_i32_0 = arith.constant 0 : i32
    %c0_i32_1 = arith.constant 0 : i32
    return %c0_i32, %c0_i32_0 : i32, i32
  }
  func.func @transform_4(%arg0: i32, %arg1: i32) -> (i32, i32, i32, i32) {
    %c0_i32 = arith.constant 0 : i32
    %c0_i32_0 = arith.constant 0 : i32
    %c0_i32_1 = arith.constant 0 : i32
    return %arg0, %arg1, %c0_i32, %c0_i32_0 : i32, i32, i32, i32
  }
  func.func @transform_5(%arg0: i32, %arg1: i32) -> (i32, i32) {
    %c0_i32 = arith.constant 0 : i32
    %c0_i32_0 = arith.constant 0 : i32
    %c0_i32_1 = arith.constant 0 : i32
    return %c0_i32, %c0_i32_0 : i32, i32
  }
  func.func @transform_6(%arg0: i32, %arg1: i32) -> (i32, i32) {
    %c0_i32 = arith.constant 0 : i32
    %c0_i32_0 = arith.constant 0 : i32
    %c0_i32_1 = arith.constant 0 : i32
    return %c0_i32, %c0_i32_0 : i32, i32
  }
  func.func @transform_7(%arg0: i32, %arg1: i32) -> (i32, i32) {
    %c0_i32 = arith.constant 0 : i32
    %c0_i32_0 = arith.constant 0 : i32
    %c0_i32_1 = arith.constant 0 : i32
    return %c0_i32, %c0_i32_0 : i32, i32
  }
  func.func @transform_8(%arg0: i32, %arg1: i32) -> (i32, i32, i32, i32) {
    %c0_i32 = arith.constant 0 : i32
    %c0_i32_0 = arith.constant 0 : i32
    %c0_i32_1 = arith.constant 0 : i32
    return %arg0, %arg1, %c0_i32, %c0_i32_0 : i32, i32, i32, i32
  }
}

</mosaic_0001>

<llo_original>
// kernel: preact_bottleneck.4
$region0: #{preact_bottleneck.4}
  #allocation0 [shape = 'u32[]', space=smem, size = 0x4, offset = 0x4, fixed_abs, tag = 'smem constant byte address 0x4 - core index']
  #allocation1 [shape = 'u32[144,128]{1,0:T(1,128)}', space=vmem, size = 0x12000, scoped, tag = 'internal scratch']
  %s0 = inlined_call_operand.vmem [shape: f32[2,16,16,16], index: 0, kind: input, shape index: {}]
  %s1 = inlined_call_operand.vmem [shape: f32[2,1,2,16], index: 1, kind: output, shape index: {}]
  %s2 = sld [smem:[#allocation0]]
  $region37: #{preact_bottleneck.4} parent=0
    _
  %s4 = ssub.s32 1, %s2
  %s5 = scalar_select 0, %s4, %s2
  loop: start=0, step=1, limit=4
  $region2: #{preact_bottleneck.4} parent=0 // loop_pre_header
    _
  $region3: #{preact_bottleneck.4} parent=0 // loop_header
    %s7 = sphi 0, %s11
    %p8 = scmp.ge.s32.totalorder %s7, 4
    %s14 = sphi 0, %s26
    %s15 = sphi 0, %s22
    %s16 = sphi 0, %s14
    %s17 = sphi 0, %s15
    %s18 = sphi 0, %s16
    %s19 = sphi 0, %s17
    %s31 = sphi 0, %s33
    %s34 = sphi 0, %s31
    %s35 = sphi 0, %s34
    %s51 = sphi 0, %s35
    %s59 = sphi 0, %s61
    %s62 = sphi 0, %s59
    %s63 = sphi 0, %s62
    %s79 = sphi 0, %s63
  $region4: #{preact_bottleneck.4} parent=0 // loop_header_branch
    %10 = sbr.rel (%p8) target = $region8
  $region5: #{preact_bottleneck.4} parent=0 // loop_body
    %s12 = ssub.s32 %s7, 1
    %s13 = ssub.s32 %s7, 2
    %s20 = sadd.s32 1, %s15
    %p21 = scmp.ge.s32.totalorder %s20, 1
    %s22 = scalar_select %p21, 0, %s20
    %s23 = sadd.s32 1, %s14
    %s24 = scalar_select %p21, %s23, %s14
    %p25 = scmp.ge.s32.totalorder %s24, 2
    %s26 = scalar_select %p25, 0, %s24
    %s27 = ssub.s32 %s14, %s26
    %s28 = ssub.s32 %s15, %s22
    %s29 = sor.u32 %s27, %s28
    %p30 = scmp.eq.s32.totalorder %s29, 0
    %s32 = sadd.s32 %s31, 1
    %s33 = scalar_select %p30, %s31, %s32
    %p36 = pneg %p30
    %p37 = scmp.eq.s32.totalorder %s7, 1
    %p38 = por %p36, %p37
    %p39 = scmp.ne.s32.totalorder %s31, %s34
    %p40 = scmp.eq.s32.totalorder %s7, 0
    %p41 = por %p39, %p40
    %p42 = scmp.ne.s32.totalorder %s31, %s34
    %p43 = scmp.eq.s32.totalorder %s12, 1
    %p44 = por %p42, %p43
    %p45 = scmp.ne.s32.totalorder %s34, %s35
    %p46 = scmp.eq.s32.totalorder %s12, 0
    %p47 = por %p45, %p46
    %p48 = scmp.ne.s32.totalorder %s34, %s35
    %p49 = scmp.eq.s32.totalorder %s13, 1
    %p50 = por %p48, %p49
    %p52 = scmp.ne.s32.totalorder %s35, %s51
    %p53 = scmp.eq.s32.totalorder %s13, 0
    %p54 = por %p52, %p53
    %s55 = ssub.s32 %s14, %s26
    %s56 = ssub.s32 %s15, %s22
    %s57 = sor.u32 %s55, %s56
    %p58 = scmp.eq.s32.totalorder %s57, 0
    %s60 = sadd.s32 %s59, 1
    %s61 = scalar_select %p58, %s59, %s60
    %p64 = pneg %p58
    %p65 = scmp.eq.s32.totalorder %s7, 1
    %p66 = por %p64, %p65
    %p67 = scmp.ne.s32.totalorder %s59, %s62
    %p68 = scmp.eq.s32.totalorder %s7, 0
    %p69 = por %p67, %p68
    %p70 = scmp.ne.s32.totalorder %s59, %s62
    %p71 = scmp.eq.s32.totalorder %s12, 1
    %p72 = por %p70, %p71
    %p73 = scmp.ne.s32.totalorder %s62, %s63
    %p74 = scmp.eq.s32.totalorder %s12, 0
    %p75 = por %p73, %p74
    %p76 = scmp.ne.s32.totalorder %s62, %s63
    %p77 = scmp.eq.s32.totalorder %s13, 1
    %p78 = por %p76, %p77
    %p80 = scmp.ne.s32.totalorder %s63, %s79
    %p81 = scmp.eq.s32.totalorder %s13, 0
    %p82 = por %p80, %p81
    %p83 = scmp.le.s32.totalorder 1, %s7
    %p84 = scmp.lt.s32.totalorder %s7, 3
    %p85 = pnand %p83, %p84
    %p86 = pneg %p85
    // Predicated region
    $region9: #{preact_bottleneck.4} parent=5 // pred_check
      _
    $region10: #{preact_bottleneck.4} parent=5 // pred_check_branch
      %88 = sbr.rel (%p85) target = $region12
    $region11: #{preact_bottleneck.4} parent=5 // pred_region
      %s89 = ssub.s32 %s7, 1
    $region12: #{preact_bottleneck.4} parent=5 // pred_fallthru
      _
    %p90 = scmp.lt.s32.totalorder %s7, 2
    // Predicated region
    $region13: #{preact_bottleneck.4} parent=5 // pred_check
      %p91 = pneg %p90
    $region14: #{preact_bottleneck.4} parent=5 // pred_check_branch
      %93 = sbr.rel (%p91) target = $region16
    $region15: #{preact_bottleneck.4} parent=5 // pred_region
      // Predicated region
      $region17: #{preact_bottleneck.4} parent=15 // pred_check
        %p94 = pneg %p41
      $region18: #{preact_bottleneck.4} parent=15 // pred_check_branch
        %96 = sbr.rel (%p94) target = $region20
      $region19: #{preact_bottleneck.4} parent=15 // pred_region
        %s97 = smul.u32 16, %s15
        %p98 = scmp.lt.s32.totalorder %s14, 1
        %s99 = scalar_select %p98, %s14, 1
        %p100 = scmp.lt.s32.totalorder %s97, 15
        %s101 = scalar_select %p100, %s97, 15
        %s102 = smul.addr %s101, 2
        %s103 = smul.addr %s99, 32
        %s104 = sadd.s32 %s102, %s103
        %s105 = smul.addr %s104, 8
        %s106 = scalar_lea.vmem %s0, %s105
        %s107 = smul.u32 16, %s15
      $region20: #{preact_bottleneck.4} parent=15 // pred_fallthru
        _
    $region16: #{preact_bottleneck.4} parent=5 // pred_fallthru
      _
    %p108 = scmp.le.s32.totalorder 1, %s7
    %p109 = scmp.lt.s32.totalorder %s7, 3
    %p110 = pnand %p108, %p109
    %p111 = pneg %p110
    // Predicated region
    $region21: #{preact_bottleneck.4} parent=5 // pred_check
      _
    $region22: #{preact_bottleneck.4} parent=5 // pred_check_branch
      %113 = sbr.rel (%p110) target = $region24
    $region23: #{preact_bottleneck.4} parent=5 // pred_region
      %s114 = ssub.s32 %s7, 1
      %s115 = smul.u32 16, %s17
      %p116 = scmp.lt.s32.totalorder %s16, 1
      %s117 = scalar_select %p116, %s16, 1
      %p118 = scmp.lt.s32.totalorder %s115, 15
      %s119 = scalar_select %p118, %s115, 15
      %s120 = smul.addr %s119, 2
      %s121 = smul.addr %s117, 32
      %s122 = sadd.s32 %s120, %s121
      %s123 = smul.addr %s122, 8
      %s124 = scalar_lea.vmem %s0, %s123
      %p125 = pneg %p47
      %p126 = pneg %p44
      %p127 = pneg %p75
      %p128 = pneg %p72
      %p129 = scmp.lt.s32.totalorder %s16, 1
      %s130 = scalar_select %p129, %s16, 1
      %p131 = scmp.lt.s32.totalorder %s17, 0
      %s132 = scalar_select %p131, %s17, 0
      %s133 = sadd.s32 %s132, %s130
      %s134 = smul.addr %s133, 2
      %s135 = scalar_lea.vmem %s1, %s134
      %s136 = smul.u32 16, %s17
      %p137 = scmp.lt.s32.totalorder %s16, 1
      %s138 = scalar_select %p137, %s16, 1
      %p139 = scmp.lt.s32.totalorder %s136, 15
      %s140 = scalar_select %p139, %s136, 15
      %s141 = smul.addr %s140, 2
      %s142 = smul.addr %s138, 32
      %s143 = sadd.s32 %s141, %s142
      %s144 = smul.addr %s143, 8
      %s145 = scalar_lea.vmem %s0, %s144
      %s146 = smul.u32 16, %s17
      %p147 = scmp.lt.s32.totalorder %s16, 1
      %s148 = scalar_select %p147, %s16, 1
      %p149 = scmp.lt.s32.totalorder %s17, 0
      %s150 = scalar_select %p149, %s17, 0
      %s151 = sadd.s32 %s150, %s148
      %s152 = smul.addr %s151, 2
      %s153 = scalar_lea.vmem %s1, %s152
      %v154 = vld [vmem:[%s145] sm:$0xff]
      %v155 = vld [vmem:[%s145 + $0x8] sm:$0xff]
      %v156 = vld [vmem:[%s145 + $0x10] sm:$0xff]
      %v157 = vld [vmem:[%s145 + $0x18] sm:$0xff]
      %v158 = vld [vmem:[%s145 + $0x20] sm:$0xff]
      %v159 = vld [vmem:[%s145 + $0x28] sm:$0xff]
      %v160 = vld [vmem:[%s145 + $0x30] sm:$0xff]
      %v161 = vld [vmem:[%s145 + $0x38] sm:$0xff]
      %v162 = vld [vmem:[%s145 + $0x40] sm:$0xff]
      %v163 = vld [vmem:[%s145 + $0x48] sm:$0xff]
      %v164 = vld [vmem:[%s145 + $0x50] sm:$0xff]
      %v165 = vld [vmem:[%s145 + $0x58] sm:$0xff]
      %v166 = vld [vmem:[%s145 + $0x60] sm:$0xff]
      %v167 = vld [vmem:[%s145 + $0x68] sm:$0xff]
      %v168 = vld [vmem:[%s145 + $0x70] sm:$0xff]
      %v169 = vld [vmem:[%s145 + $0x78] sm:$0xff]
      %v170 = vld [vmem:[%s145 + $0x80] sm:$0xff]
      %v171 = vld [vmem:[%s145 + $0x88] sm:$0xff]
      %v172 = vld [vmem:[%s145 + $0x90] sm:$0xff]
      %v173 = vld [vmem:[%s145 + $0x98] sm:$0xff]
      %v174 = vld [vmem:[%s145 + $0xa0] sm:$0xff]
      %v175 = vld [vmem:[%s145 + $0xa8] sm:$0xff]
      %v176 = vld [vmem:[%s145 + $0xb0] sm:$0xff]
      %v177 = vld [vmem:[%s145 + $0xb8] sm:$0xff]
      %v178 = vld [vmem:[%s145 + $0xc0] sm:$0xff]
      %v179 = vld [vmem:[%s145 + $0xc8] sm:$0xff]
      %v180 = vld [vmem:[%s145 + $0xd0] sm:$0xff]
      %v181 = vld [vmem:[%s145 + $0xd8] sm:$0xff]
      %v182 = vld [vmem:[%s145 + $0xe0] sm:$0xff]
      %v183 = vld [vmem:[%s145 + $0xe8] sm:$0xff]
      %v184 = vld [vmem:[%s145 + $0xf0] sm:$0xff]
      %v185 = vld [vmem:[%s145 + $0xf8] sm:$0xff]
      %vm186 = vcmask 130048
      %v187 = vsel %vm186, %v154, 0.0
      %v188 = vsel %vm186, %v155, 0.0
      %v189 = vadd.f32 %v187, %v188
      %v190 = vsel %vm186, %v156, 0.0
      %v191 = vadd.f32 %v189, %v190
      %v192 = vsel %vm186, %v157, 0.0
      %v193 = vadd.f32 %v191, %v192
      %v194 = vsel %vm186, %v158, 0.0
      %v195 = vadd.f32 %v193, %v194
      %v196 = vsel %vm186, %v159, 0.0
      %v197 = vadd.f32 %v195, %v196
      %v198 = vsel %vm186, %v160, 0.0
      %v199 = vadd.f32 %v197, %v198
      %v200 = vsel %vm186, %v161, 0.0
      %v201 = vadd.f32 %v199, %v200
      %v202 = vsel %vm186, %v162, 0.0
      %v203 = vadd.f32 %v201, %v202
      %v204 = vsel %vm186, %v163, 0.0
      %v205 = vadd.f32 %v203, %v204
      %v206 = vsel %vm186, %v164, 0.0
      %v207 = vadd.f32 %v205, %v206
      %v208 = vsel %vm186, %v165, 0.0
      %v209 = vadd.f32 %v207, %v208
      %v210 = vsel %vm186, %v166, 0.0
      %v211 = vadd.f32 %v209, %v210
      %v212 = vsel %vm186, %v167, 0.0
      %v213 = vadd.f32 %v211, %v212
      %v214 = vsel %vm186, %v168, 0.0
      %v215 = vadd.f32 %v213, %v214
      %v216 = vsel %vm186, %v169, 0.0
      %v217 = vadd.f32 %v215, %v216
      %v218 = vsel %vm186, %v170, 0.0
      %v219 = vadd.f32 %v217, %v218
      %v220 = vsel %vm186, %v171, 0.0
      %v221 = vadd.f32 %v219, %v220
      %v222 = vsel %vm186, %v172, 0.0
      %v223 = vadd.f32 %v221, %v222
      %v224 = vsel %vm186, %v173, 0.0
      %v225 = vadd.f32 %v223, %v224
      %v226 = vsel %vm186, %v174, 0.0
      %v227 = vadd.f32 %v225, %v226
      %v228 = vsel %vm186, %v175, 0.0
      %v229 = vadd.f32 %v227, %v228
      %v230 = vsel %vm186, %v176, 0.0
      %v231 = vadd.f32 %v229, %v230
      %v232 = vsel %vm186, %v177, 0.0
      %v233 = vadd.f32 %v231, %v232
      %v234 = vsel %vm186, %v178, 0.0
      %v235 = vadd.f32 %v233, %v234
      %v236 = vsel %vm186, %v179, 0.0
      %v237 = vadd.f32 %v235, %v236
      %v238 = vsel %vm186, %v180, 0.0
      %v239 = vadd.f32 %v237, %v238
      %v240 = vsel %vm186, %v181, 0.0
      %v241 = vadd.f32 %v239, %v240
      %v242 = vsel %vm186, %v182, 0.0
      %v243 = vadd.f32 %v241, %v242
      %v244 = vsel %vm186, %v183, 0.0
      %v245 = vadd.f32 %v243, %v244
      %v246 = vsel %vm186, %v184, 0.0
      %v247 = vadd.f32 %v245, %v246
      %v248 = vsel %vm186, %v185, 0.0
      %v249 = vadd.f32 %v247, %v248
      %v250 = vrot.slane %v249, 4
      %v251 = vadd.f32 %v249, %v250
      %v252 = vrot.slane %v251, 2
      %v253 = vadd.f32 %v251, %v252
      %v254 = vrot.slane %v253, 1
      %v255 = vadd.f32 %v253, %v254
      %v256 = vmul.f32 %v154, %v154
      %v257 = vmul.f32 %v155, %v155
      %v258 = vmul.f32 %v156, %v156
      %v259 = vmul.f32 %v157, %v157
      %v260 = vmul.f32 %v158, %v158
      %v261 = vmul.f32 %v159, %v159
      %v262 = vmul.f32 %v160, %v160
      %v263 = vmul.f32 %v161, %v161
      %v264 = vmul.f32 %v162, %v162
      %v265 = vmul.f32 %v163, %v163
      %v266 = vmul.f32 %v164, %v164
      %v267 = vmul.f32 %v165, %v165
      %v268 = vmul.f32 %v166, %v166
      %v269 = vmul.f32 %v167, %v167
      %v270 = vmul.f32 %v168, %v168
      %v271 = vmul.f32 %v169, %v169
      %v272 = vmul.f32 %v170, %v170
      %v273 = vmul.f32 %v171, %v171
      %v274 = vmul.f32 %v172, %v172
      %v275 = vmul.f32 %v173, %v173
      %v276 = vmul.f32 %v174, %v174
      %v277 = vmul.f32 %v175, %v175
      %v278 = vmul.f32 %v176, %v176
      %v279 = vmul.f32 %v177, %v177
      %v280 = vmul.f32 %v178, %v178
      %v281 = vmul.f32 %v179, %v179
      %v282 = vmul.f32 %v180, %v180
      %v283 = vmul.f32 %v181, %v181
      %v284 = vmul.f32 %v182, %v182
      %v285 = vmul.f32 %v183, %v183
      %v286 = vmul.f32 %v184, %v184
      %v287 = vmul.f32 %v185, %v185
      %v288 = vsel %vm186, %v256, 0.0
      %v289 = vsel %vm186, %v257, 0.0
      %v290 = vadd.f32 %v288, %v289
      %v291 = vsel %vm186, %v258, 0.0
      %v292 = vadd.f32 %v290, %v291
      %v293 = vsel %vm186, %v259, 0.0
      %v294 = vadd.f32 %v292, %v293
      %v295 = vsel %vm186, %v260, 0.0
      %v296 = vadd.f32 %v294, %v295
      %v297 = vsel %vm186, %v261, 0.0
      %v298 = vadd.f32 %v296, %v297
      %v299 = vsel %vm186, %v262, 0.0
      %v300 = vadd.f32 %v298, %v299
      %v301 = vsel %vm186, %v263, 0.0
      %v302 = vadd.f32 %v300, %v301
      %v303 = vsel %vm186, %v264, 0.0
      %v304 = vadd.f32 %v302, %v303
      %v305 = vsel %vm186, %v265, 0.0
      %v306 = vadd.f32 %v304, %v305
      %v307 = vsel %vm186, %v266, 0.0
      %v308 = vadd.f32 %v306, %v307
      %v309 = vsel %vm186, %v267, 0.0
      %v310 = vadd.f32 %v308, %v309
      %v311 = vsel %vm186, %v268, 0.0
      %v312 = vadd.f32 %v310, %v311
      %v313 = vsel %vm186, %v269, 0.0
      %v314 = vadd.f32 %v312, %v313
      %v315 = vsel %vm186, %v270, 0.0
      %v316 = vadd.f32 %v314, %v315
      %v317 = vsel %vm186, %v271, 0.0
      %v318 = vadd.f32 %v316, %v317
      %v319 = vsel %vm186, %v272, 0.0
      %v320 = vadd.f32 %v318, %v319
      %v321 = vsel %vm186, %v273, 0.0
      %v322 = vadd.f32 %v320, %v321
      %v323 = vsel %vm186, %v274, 0.0
      %v324 = vadd.f32 %v322, %v323
      %v325 = vsel %vm186, %v275, 0.0
      %v326 = vadd.f32 %v324, %v325
      %v327 = vsel %vm186, %v276, 0.0
      %v328 = vadd.f32 %v326, %v327
      %v329 = vsel %vm186, %v277, 0.0
      %v330 = vadd.f32 %v328, %v329
      %v331 = vsel %vm186, %v278, 0.0
      %v332 = vadd.f32 %v330, %v331
      %v333 = vsel %vm186, %v279, 0.0
      %v334 = vadd.f32 %v332, %v333
      %v335 = vsel %vm186, %v280, 0.0
      %v336 = vadd.f32 %v334, %v335
      %v337 = vsel %vm186, %v281, 0.0
      %v338 = vadd.f32 %v336, %v337
      %v339 = vsel %vm186, %v282, 0.0
      %v340 = vadd.f32 %v338, %v339
      %v341 = vsel %vm186, %v283, 0.0
      %v342 = vadd.f32 %v340, %v341
      %v343 = vsel %vm186, %v284, 0.0
      %v344 = vadd.f32 %v342, %v343
      %v345 = vsel %vm186, %v285, 0.0
      %v346 = vadd.f32 %v344, %v345
      %v347 = vsel %vm186, %v286, 0.0
      %v348 = vadd.f32 %v346, %v347
      %v349 = vsel %vm186, %v287, 0.0
      %v350 = vadd.f32 %v348, %v349
      %v351 = vrot.slane %v350, 4
      %v352 = vadd.f32 %v350, %v351
      %v353 = vrot.slane %v352, 2
      %v354 = vadd.f32 %v352, %v353
      %v355 = vrot.slane %v354, 1
      %v356 = vadd.f32 %v354, %v355
      %vm357 = vcmask 1040384
      %v358 = vsel %vm357, %v255, %v356
      %vm359 = vcmask 123904
      %360 = vst.msk [vmem:[%s153] sm:$0x3] %vm359, %v358
      %p361 = scmp.lt.s32.totalorder %s16, 1
      %s362 = scalar_select %p361, %s16, 1
      %p363 = scmp.lt.s32.totalorder %s17, 0
      %s364 = scalar_select %p363, %s17, 0
      %s365 = sadd.s32 %s364, %s362
      %s366 = smul.addr %s365, 2
      %s367 = scalar_lea.vmem %s1, %s366
      // Predicated region
      $region25: #{preact_bottleneck.4} parent=23 // pred_check
        %p368 = pneg %p72
      $region26: #{preact_bottleneck.4} parent=23 // pred_check_branch
        %370 = sbr.rel (%p368) target = $region28
      $region27: #{preact_bottleneck.4} parent=23 // pred_region
        _
      $region28: #{preact_bottleneck.4} parent=23 // pred_fallthru
        _
    $region24: #{preact_bottleneck.4} parent=5 // pred_fallthru
      _
    %p371 = scmp.le.s32.totalorder 2, %s7
    // Predicated region
    $region29: #{preact_bottleneck.4} parent=5 // pred_check
      %p372 = pneg %p371
    $region30: #{preact_bottleneck.4} parent=5 // pred_check_branch
      %374 = sbr.rel (%p372) target = $region32
    $region31: #{preact_bottleneck.4} parent=5 // pred_region
      %s375 = ssub.s32 %s7, 2
      // Predicated region
      $region33: #{preact_bottleneck.4} parent=31 // pred_check
        %p376 = pneg %p78
      $region34: #{preact_bottleneck.4} parent=31 // pred_check_branch
        %378 = sbr.rel (%p376) target = $region36
      $region35: #{preact_bottleneck.4} parent=31 // pred_region
        %p379 = scmp.lt.s32.totalorder %s18, 1
        %s380 = scalar_select %p379, %s18, 1
        %p381 = scmp.lt.s32.totalorder %s19, 0
        %s382 = scalar_select %p381, %s19, 0
        %s383 = sadd.s32 %s382, %s380
        %s384 = smul.addr %s383, 2
        %s385 = scalar_lea.vmem %s1, %s384
      $region36: #{preact_bottleneck.4} parent=31 // pred_fallthru
        _
    $region32: #{preact_bottleneck.4} parent=5 // pred_fallthru
      _
  $region6: #{preact_bottleneck.4} parent=0 // loop_footer
    %s11 = sadd.s32 1, %s7
  $region7: #{preact_bottleneck.4} parent=0 // loop_footer_branch
    %6 = sbr.rel target = $region3
  $region8: #{preact_bottleneck.4} parent=0 // loop_exit
    _

// kernel: preact_bottleneck.5
$region0: #{preact_bottleneck.5}
  #allocation0 [shape = 'u32[]', space=smem, size = 0x4, offset = 0x4, fixed_abs, tag = 'smem constant byte address 0x4 - core index']
  #allocation1 [shape = 'u32[144,128]{1,0:T(1,128)}', space=vmem, size = 0x12000, scoped, tag = 'internal scratch']
  %s0 = inlined_call_operand.vmem [shape: f32[2,16,16,16], index: 0, kind: input, shape index: {}]
  %s1 = inlined_call_operand.vmem [shape: f32[1,16], index: 1, kind: input, shape index: {}]
  %s2 = inlined_call_operand.vmem [shape: f32[1,16], index: 2, kind: input, shape index: {}]
  %s3 = inlined_call_operand.vmem [shape: bf16[16,8], index: 3, kind: input, shape index: {}]
  %s4 = inlined_call_operand.vmem [shape: bf16[2,16,16,8], index: 4, kind: output, shape index: {0}]
  %s5 = inlined_call_operand.vmem [shape: f32[2,1,2,8], index: 5, kind: output, shape index: {1}]
  %6 = xla_tuple %s4, %s5
  %s7 = sld [smem:[#allocation0]]
  $region57: #{preact_bottleneck.5} parent=0
    _
  %s9 = ssub.s32 1, %s7
  %s10 = scalar_select 0, %s9, %s7
  loop: start=0, step=1, limit=4
  $region2: #{preact_bottleneck.5} parent=0 // loop_pre_header
    _
  $region3: #{preact_bottleneck.5} parent=0 // loop_header
    %s12 = sphi 0, %s16
    %p13 = scmp.ge.s32.totalorder %s12, 4
    %s19 = sphi 0, %s31
    %s20 = sphi 0, %s27
    %s21 = sphi 0, %s19
    %s22 = sphi 0, %s20
    %s23 = sphi 0, %s21
    %s24 = sphi 0, %s22
    %s36 = sphi 0, %s38
    %s39 = sphi 0, %s36
    %s40 = sphi 0, %s39
    %s56 = sphi 0, %s40
    %s60 = sphi 0, %s60
    %s62 = sphi 0, %s60
    %s63 = sphi 0, %s62
    %s77 = sphi 0, %s63
    %s81 = sphi 0, %s81
    %s83 = sphi 0, %s81
    %s84 = sphi 0, %s83
    %s98 = sphi 0, %s84
    %s102 = sphi 0, %s102
    %s104 = sphi 0, %s102
    %s105 = sphi 0, %s104
    %s119 = sphi 0, %s105
    %s127 = sphi 0, %s129
    %s130 = sphi 0, %s127
    %s131 = sphi 0, %s130
    %s147 = sphi 0, %s131
    %s155 = sphi 0, %s157
    %s158 = sphi 0, %s155
    %s159 = sphi 0, %s158
    %s175 = sphi 0, %s159
  $region4: #{preact_bottleneck.5} parent=0 // loop_header_branch
    %15 = sbr.rel (%p13) target = $region8
  $region5: #{preact_bottleneck.5} parent=0 // loop_body
    %s17 = ssub.s32 %s12, 1
    %s18 = ssub.s32 %s12, 2
    %s25 = sadd.s32 1, %s20
    %p26 = scmp.ge.s32.totalorder %s25, 1
    %s27 = scalar_select %p26, 0, %s25
    %s28 = sadd.s32 1, %s19
    %s29 = scalar_select %p26, %s28, %s19
    %p30 = scmp.ge.s32.totalorder %s29, 2
    %s31 = scalar_select %p30, 0, %s29
    %s32 = ssub.s32 %s19, %s31
    %s33 = ssub.s32 %s20, %s27
    %s34 = sor.u32 %s32, %s33
    %p35 = scmp.eq.s32.totalorder %s34, 0
    %s37 = sadd.s32 %s36, 1
    %s38 = scalar_select %p35, %s36, %s37
    %p41 = pneg %p35
    %p42 = scmp.eq.s32.totalorder %s12, 1
    %p43 = por %p41, %p42
    %p44 = scmp.ne.s32.totalorder %s36, %s39
    %p45 = scmp.eq.s32.totalorder %s12, 0
    %p46 = por %p44, %p45
    %p47 = scmp.ne.s32.totalorder %s36, %s39
    %p48 = scmp.eq.s32.totalorder %s17, 1
    %p49 = por %p47, %p48
    %p50 = scmp.ne.s32.totalorder %s39, %s40
    %p51 = scmp.eq.s32.totalorder %s17, 0
    %p52 = por %p50, %p51
    %p53 = scmp.ne.s32.totalorder %s39, %s40
    %p54 = scmp.eq.s32.totalorder %s18, 1
    %p55 = por %p53, %p54
    %p57 = scmp.ne.s32.totalorder %s40, %s56
    %p58 = scmp.eq.s32.totalorder %s18, 0
    %p59 = por %p57, %p58
    %s61 = sadd.s32 %s60, 1
    %p64 = scmp.eq.s32.totalorder %s12, 1
    %p65 = scmp.ne.s32.totalorder %s60, %s62
    %p66 = scmp.eq.s32.totalorder %s12, 0
    %p67 = por %p65, %p66
    %p68 = scmp.ne.s32.totalorder %s60, %s62
    %p69 = scmp.eq.s32.totalorder %s17, 1
    %p70 = por %p68, %p69
    %p71 = scmp.ne.s32.totalorder %s62, %s63
    %p72 = scmp.eq.s32.totalorder %s17, 0
    %p73 = por %p71, %p72
    %p74 = scmp.ne.s32.totalorder %s62, %s63
    %p75 = scmp.eq.s32.totalorder %s18, 1
    %p76 = por %p74, %p75
    %p78 = scmp.ne.s32.totalorder %s63, %s77
    %p79 = scmp.eq.s32.totalorder %s18, 0
    %p80 = por %p78, %p79
    %s82 = sadd.s32 %s81, 1
    %p85 = scmp.eq.s32.totalorder %s12, 1
    %p86 = scmp.ne.s32.totalorder %s81, %s83
    %p87 = scmp.eq.s32.totalorder %s12, 0
    %p88 = por %p86, %p87
    %p89 = scmp.ne.s32.totalorder %s81, %s83
    %p90 = scmp.eq.s32.totalorder %s17, 1
    %p91 = por %p89, %p90
    %p92 = scmp.ne.s32.totalorder %s83, %s84
    %p93 = scmp.eq.s32.totalorder %s17, 0
    %p94 = por %p92, %p93
    %p95 = scmp.ne.s32.totalorder %s83, %s84
    %p96 = scmp.eq.s32.totalorder %s18, 1
    %p97 = por %p95, %p96
    %p99 = scmp.ne.s32.totalorder %s84, %s98
    %p100 = scmp.eq.s32.totalorder %s18, 0
    %p101 = por %p99, %p100
    %s103 = sadd.s32 %s102, 1
    %p106 = scmp.eq.s32.totalorder %s12, 1
    %p107 = scmp.ne.s32.totalorder %s102, %s104
    %p108 = scmp.eq.s32.totalorder %s12, 0
    %p109 = por %p107, %p108
    %p110 = scmp.ne.s32.totalorder %s102, %s104
    %p111 = scmp.eq.s32.totalorder %s17, 1
    %p112 = por %p110, %p111
    %p113 = scmp.ne.s32.totalorder %s104, %s105
    %p114 = scmp.eq.s32.totalorder %s17, 0
    %p115 = por %p113, %p114
    %p116 = scmp.ne.s32.totalorder %s104, %s105
    %p117 = scmp.eq.s32.totalorder %s18, 1
    %p118 = por %p116, %p117
    %p120 = scmp.ne.s32.totalorder %s105, %s119
    %p121 = scmp.eq.s32.totalorder %s18, 0
    %p122 = por %p120, %p121
    %s123 = ssub.s32 %s19, %s31
    %s124 = ssub.s32 %s20, %s27
    %s125 = sor.u32 %s123, %s124
    %p126 = scmp.eq.s32.totalorder %s125, 0
    %s128 = sadd.s32 %s127, 1
    %s129 = scalar_select %p126, %s127, %s128
    %p132 = pneg %p126
    %p133 = scmp.eq.s32.totalorder %s12, 1
    %p134 = por %p132, %p133
    %p135 = scmp.ne.s32.totalorder %s127, %s130
    %p136 = scmp.eq.s32.totalorder %s12, 0
    %p137 = por %p135, %p136
    %p138 = scmp.ne.s32.totalorder %s127, %s130
    %p139 = scmp.eq.s32.totalorder %s17, 1
    %p140 = por %p138, %p139
    %p141 = scmp.ne.s32.totalorder %s130, %s131
    %p142 = scmp.eq.s32.totalorder %s17, 0
    %p143 = por %p141, %p142
    %p144 = scmp.ne.s32.totalorder %s130, %s131
    %p145 = scmp.eq.s32.totalorder %s18, 1
    %p146 = por %p144, %p145
    %p148 = scmp.ne.s32.totalorder %s131, %s147
    %p149 = scmp.eq.s32.totalorder %s18, 0
    %p150 = por %p148, %p149
    %s151 = ssub.s32 %s19, %s31
    %s152 = ssub.s32 %s20, %s27
    %s153 = sor.u32 %s151, %s152
    %p154 = scmp.eq.s32.totalorder %s153, 0
    %s156 = sadd.s32 %s155, 1
    %s157 = scalar_select %p154, %s155, %s156
    %p160 = pneg %p154
    %p161 = scmp.eq.s32.totalorder %s12, 1
    %p162 = por %p160, %p161
    %p163 = scmp.ne.s32.totalorder %s155, %s158
    %p164 = scmp.eq.s32.totalorder %s12, 0
    %p165 = por %p163, %p164
    %p166 = scmp.ne.s32.totalorder %s155, %s158
    %p167 = scmp.eq.s32.totalorder %s17, 1
    %p168 = por %p166, %p167
    %p169 = scmp.ne.s32.totalorder %s158, %s159
    %p170 = scmp.eq.s32.totalorder %s17, 0
    %p171 = por %p169, %p170
    %p172 = scmp.ne.s32.totalorder %s158, %s159
    %p173 = scmp.eq.s32.totalorder %s18, 1
    %p174 = por %p172, %p173
    %p176 = scmp.ne.s32.totalorder %s159, %s175
    %p177 = scmp.eq.s32.totalorder %s18, 0
    %p178 = por %p176, %p177
    %p179 = scmp.le.s32.totalorder 1, %s12
    %p180 = scmp.lt.s32.totalorder %s12, 3
    %p181 = pnand %p179, %p180
    %p182 = pneg %p181
    // Predicated region
    $region9: #{preact_bottleneck.5} parent=5 // pred_check
      _
    $region10: #{preact_bottleneck.5} parent=5 // pred_check_branch
      %184 = sbr.rel (%p181) target = $region12
    $region11: #{preact_bottleneck.5} parent=5 // pred_region
      %s185 = ssub.s32 %s12, 1
      // Predicated region
      $region13: #{preact_bottleneck.5} parent=11 // pred_check
        %p186 = pneg %p73
      $region14: #{preact_bottleneck.5} parent=11 // pred_check_branch
        %188 = sbr.rel (%p186) target = $region16
      $region15: #{preact_bottleneck.5} parent=11 // pred_region
        _
      $region16: #{preact_bottleneck.5} parent=11 // pred_fallthru
        _
      // Predicated region
      $region17: #{preact_bottleneck.5} parent=11 // pred_check
        %p189 = pneg %p94
      $region18: #{preact_bottleneck.5} parent=11 // pred_check_branch
        %191 = sbr.rel (%p189) target = $region20
      $region19: #{preact_bottleneck.5} parent=11 // pred_region
        _
      $region20: #{preact_bottleneck.5} parent=11 // pred_fallthru
        _
      // Predicated region
      $region21: #{preact_bottleneck.5} parent=11 // pred_check
        %p192 = pneg %p115
      $region22: #{preact_bottleneck.5} parent=11 // pred_check_branch
        %194 = sbr.rel (%p192) target = $region24
      $region23: #{preact_bottleneck.5} parent=11 // pred_region
        _
      $region24: #{preact_bottleneck.5} parent=11 // pred_fallthru
        _
    $region12: #{preact_bottleneck.5} parent=5 // pred_fallthru
      _
    %p195 = scmp.lt.s32.totalorder %s12, 2
    // Predicated region
    $region25: #{preact_bottleneck.5} parent=5 // pred_check
      %p196 = pneg %p195
    $region26: #{preact_bottleneck.5} parent=5 // pred_check_branch
      %198 = sbr.rel (%p196) target = $region28
    $region27: #{preact_bottleneck.5} parent=5 // pred_region
      // Predicated region
      $region29: #{preact_bottleneck.5} parent=27 // pred_check
        %p199 = pneg %p46
      $region30: #{preact_bottleneck.5} parent=27 // pred_check_branch
        %201 = sbr.rel (%p199) target = $region32
      $region31: #{preact_bottleneck.5} parent=27 // pred_region
        %s202 = smul.u32 16, %s20
        %p203 = scmp.lt.s32.totalorder %s19, 1
        %s204 = scalar_select %p203, %s19, 1
        %p205 = scmp.lt.s32.totalorder %s202, 15
        %s206 = scalar_select %p205, %s202, 15
        %s207 = smul.addr %s206, 2
        %s208 = smul.addr %s204, 32
        %s209 = sadd.s32 %s207, %s208
        %s210 = smul.addr %s209, 8
        %s211 = scalar_lea.vmem %s0, %s210
        %s212 = smul.u32 16, %s20
      $region32: #{preact_bottleneck.5} parent=27 // pred_fallthru
        _
    $region28: #{preact_bottleneck.5} parent=5 // pred_fallthru
      _
    %p213 = scmp.le.s32.totalorder 1, %s12
    %p214 = scmp.lt.s32.totalorder %s12, 3
    %p215 = pnand %p213, %p214
    %p216 = pneg %p215
    // Predicated region
    $region33: #{preact_bottleneck.5} parent=5 // pred_check
      _
    $region34: #{preact_bottleneck.5} parent=5 // pred_check_branch
      %218 = sbr.rel (%p215) target = $region36
    $region35: #{preact_bottleneck.5} parent=5 // pred_region
      %s219 = ssub.s32 %s12, 1
      %s220 = smul.u32 16, %s22
      %p221 = scmp.lt.s32.totalorder %s21, 1
      %s222 = scalar_select %p221, %s21, 1
      %p223 = scmp.lt.s32.totalorder %s220, 15
      %s224 = scalar_select %p223, %s220, 15
      %s225 = smul.addr %s224, 2
      %s226 = smul.addr %s222, 32
      %s227 = sadd.s32 %s225, %s226
      %s228 = smul.addr %s227, 8
      %s229 = scalar_lea.vmem %s0, %s228
      %p230 = pneg %p52
      %p231 = pneg %p49
      %p232 = pneg %p73
      %p233 = pneg %p70
      %p234 = pneg %p94
      %p235 = pneg %p91
      %p236 = pneg %p115
      %p237 = pneg %p112
      %p238 = pneg %p143
      %p239 = pneg %p140
      %s240 = smul.u32 16, %s22
      %p241 = scmp.lt.s32.totalorder %s21, 1
      %s242 = scalar_select %p241, %s21, 1
      %p243 = scmp.lt.s32.totalorder %s240, 15
      %s244 = scalar_select %p243, %s240, 15
      %s245 = smul.addr %s244, 2
      %s246 = smul.addr %s242, 32
      %s247 = sadd.s32 %s245, %s246
      %s248 = smul.addr %s247, 4
      %s249 = scalar_lea.vmem %s4, %s248
      %p250 = pneg %p171
      %p251 = pneg %p168
      %p252 = scmp.lt.s32.totalorder %s21, 1
      %s253 = scalar_select %p252, %s21, 1
      %p254 = scmp.lt.s32.totalorder %s22, 0
      %s255 = scalar_select %p254, %s22, 0
      %s256 = sadd.s32 %s255, %s253
      %s257 = smul.addr %s256, 2
      %s258 = scalar_lea.vmem %s5, %s257
      %s259 = smul.u32 16, %s22
      %p260 = scmp.lt.s32.totalorder %s21, 1
      %s261 = scalar_select %p260, %s21, 1
      %p262 = scmp.lt.s32.totalorder %s259, 15
      %s263 = scalar_select %p262, %s259, 15
      %s264 = smul.addr %s263, 2
      %s265 = smul.addr %s261, 32
      %s266 = sadd.s32 %s264, %s265
      %s267 = smul.addr %s266, 8
      %s268 = scalar_lea.vmem %s0, %s267
      %s269 = smul.u32 16, %s22
      %s270 = smul.u32 16, %s22
      %p271 = scmp.lt.s32.totalorder %s21, 1
      %s272 = scalar_select %p271, %s21, 1
      %p273 = scmp.lt.s32.totalorder %s270, 15
      %s274 = scalar_select %p273, %s270, 15
      %s275 = smul.addr %s274, 2
      %s276 = smul.addr %s272, 32
      %s277 = sadd.s32 %s275, %s276
      %s278 = smul.addr %s277, 4
      %s279 = scalar_lea.vmem %s4, %s278
      %s280 = smul.u32 16, %s22
      %p281 = scmp.lt.s32.totalorder %s21, 1
      %s282 = scalar_select %p281, %s21, 1
      %p283 = scmp.lt.s32.totalorder %s22, 0
      %s284 = scalar_select %p283, %s22, 0
      %s285 = sadd.s32 %s284, %s282
      %s286 = smul.addr %s285, 2
      %s287 = scalar_lea.vmem %s5, %s286
      %v289 = vld [vmem:[%s268] sm:$0xff]
      %v290 = vld [vmem:[%s268 + $0x8] sm:$0xff]
      %v291 = vld [vmem:[%s268 + $0x10] sm:$0xff]
      %v292 = vld [vmem:[%s268 + $0x18] sm:$0xff]
      %v293 = vld [vmem:[%s268 + $0x20] sm:$0xff]
      %v294 = vld [vmem:[%s268 + $0x28] sm:$0xff]
      %v295 = vld [vmem:[%s268 + $0x30] sm:$0xff]
      %v296 = vld [vmem:[%s268 + $0x38] sm:$0xff]
      %v297 = vld [vmem:[%s268 + $0x40] sm:$0xff]
      %v298 = vld [vmem:[%s268 + $0x48] sm:$0xff]
      %v299 = vld [vmem:[%s268 + $0x50] sm:$0xff]
      %v300 = vld [vmem:[%s268 + $0x58] sm:$0xff]
      %v301 = vld [vmem:[%s268 + $0x60] sm:$0xff]
      %v302 = vld [vmem:[%s268 + $0x68] sm:$0xff]
      %v303 = vld [vmem:[%s268 + $0x70] sm:$0xff]
      %v304 = vld [vmem:[%s268 + $0x78] sm:$0xff]
      %v305 = vld [vmem:[%s268 + $0x80] sm:$0xff]
      %v306 = vld [vmem:[%s268 + $0x88] sm:$0xff]
      %v307 = vld [vmem:[%s268 + $0x90] sm:$0xff]
      %v308 = vld [vmem:[%s268 + $0x98] sm:$0xff]
      %v309 = vld [vmem:[%s268 + $0xa0] sm:$0xff]
      %v310 = vld [vmem:[%s268 + $0xa8] sm:$0xff]
      %v311 = vld [vmem:[%s268 + $0xb0] sm:$0xff]
      %v312 = vld [vmem:[%s268 + $0xb8] sm:$0xff]
      %v313 = vld [vmem:[%s268 + $0xc0] sm:$0xff]
      %v314 = vld [vmem:[%s268 + $0xc8] sm:$0xff]
      %v315 = vld [vmem:[%s268 + $0xd0] sm:$0xff]
      %v316 = vld [vmem:[%s268 + $0xd8] sm:$0xff]
      %v317 = vld [vmem:[%s268 + $0xe0] sm:$0xff]
      %v318 = vld [vmem:[%s268 + $0xe8] sm:$0xff]
      %v319 = vld [vmem:[%s268 + $0xf0] sm:$0xff]
      %v320 = vld [vmem:[%s268 + $0xf8] sm:$0xff]
      %v321 = vld [vmem:[%s1] sm:$0x1]
      %v323 = vlaneseq
      %v324 = vshrl.u32 %v323, 7
      %v325 = vsub.s32 0, %v324
      %v326 = vrot.slane %v321, %v325
      %v328 = vmul.f32 %v289, %v326
      %v329 = vmul.f32 %v290, %v326
      %v330 = vmul.f32 %v291, %v326
      %v331 = vmul.f32 %v292, %v326
      %v332 = vmul.f32 %v293, %v326
      %v333 = vmul.f32 %v294, %v326
      %v334 = vmul.f32 %v295, %v326
      %v335 = vmul.f32 %v296, %v326
      %v336 = vmul.f32 %v297, %v326
      %v337 = vmul.f32 %v298, %v326
      %v338 = vmul.f32 %v299, %v326
      %v339 = vmul.f32 %v300, %v326
      %v340 = vmul.f32 %v301, %v326
      %v341 = vmul.f32 %v302, %v326
      %v342 = vmul.f32 %v303, %v326
      %v343 = vmul.f32 %v304, %v326
      %v344 = vmul.f32 %v305, %v326
      %v345 = vmul.f32 %v306, %v326
      %v346 = vmul.f32 %v307, %v326
      %v347 = vmul.f32 %v308, %v326
      %v348 = vmul.f32 %v309, %v326
      %v349 = vmul.f32 %v310, %v326
      %v350 = vmul.f32 %v311, %v326
      %v351 = vmul.f32 %v312, %v326
      %v352 = vmul.f32 %v313, %v326
      %v353 = vmul.f32 %v314, %v326
      %v354 = vmul.f32 %v315, %v326
      %v355 = vmul.f32 %v316, %v326
      %v356 = vmul.f32 %v317, %v326
      %v357 = vmul.f32 %v318, %v326
      %v358 = vmul.f32 %v319, %v326
      %v359 = vmul.f32 %v320, %v326
      %v360 = vld [vmem:[%s2] sm:$0x1]
      %v362 = vlaneseq
      %v363 = vshrl.u32 %v362, 7
      %v364 = vsub.s32 0, %v363
      %v365 = vrot.slane %v360, %v364
      %v367 = vadd.f32 %v328, %v365
      %v368 = vadd.f32 %v329, %v365
      %v369 = vadd.f32 %v330, %v365
      %v370 = vadd.f32 %v331, %v365
      %v371 = vadd.f32 %v332, %v365
      %v372 = vadd.f32 %v333, %v365
      %v373 = vadd.f32 %v334, %v365
      %v374 = vadd.f32 %v335, %v365
      %v375 = vadd.f32 %v336, %v365
      %v376 = vadd.f32 %v337, %v365
      %v377 = vadd.f32 %v338, %v365
      %v378 = vadd.f32 %v339, %v365
      %v379 = vadd.f32 %v340, %v365
      %v380 = vadd.f32 %v341, %v365
      %v381 = vadd.f32 %v342, %v365
      %v382 = vadd.f32 %v343, %v365
      %v383 = vadd.f32 %v344, %v365
      %v384 = vadd.f32 %v345, %v365
      %v385 = vadd.f32 %v346, %v365
      %v386 = vadd.f32 %v347, %v365
      %v387 = vadd.f32 %v348, %v365
      %v388 = vadd.f32 %v349, %v365
      %v389 = vadd.f32 %v350, %v365
      %v390 = vadd.f32 %v351, %v365
      %v391 = vadd.f32 %v352, %v365
      %v392 = vadd.f32 %v353, %v365
      %v393 = vadd.f32 %v354, %v365
      %v394 = vadd.f32 %v355, %v365
      %v395 = vadd.f32 %v356, %v365
      %v396 = vadd.f32 %v357, %v365
      %v397 = vadd.f32 %v358, %v365
      %v398 = vadd.f32 %v359, %v365
      %v399 = vmax.f32 %v367, 0.0
      %v400 = vmax.f32 %v368, 0.0
      %v401 = vmax.f32 %v369, 0.0
      %v402 = vmax.f32 %v370, 0.0
      %v403 = vmax.f32 %v371, 0.0
      %v404 = vmax.f32 %v372, 0.0
      %v405 = vmax.f32 %v373, 0.0
      %v406 = vmax.f32 %v374, 0.0
      %v407 = vmax.f32 %v375, 0.0
      %v408 = vmax.f32 %v376, 0.0
      %v409 = vmax.f32 %v377, 0.0
      %v410 = vmax.f32 %v378, 0.0
      %v411 = vmax.f32 %v379, 0.0
      %v412 = vmax.f32 %v380, 0.0
      %v413 = vmax.f32 %v381, 0.0
      %v414 = vmax.f32 %v382, 0.0
      %v415 = vmax.f32 %v383, 0.0
      %v416 = vmax.f32 %v384, 0.0
      %v417 = vmax.f32 %v385, 0.0
      %v418 = vmax.f32 %v386, 0.0
      %v419 = vmax.f32 %v387, 0.0
      %v420 = vmax.f32 %v388, 0.0
      %v421 = vmax.f32 %v389, 0.0
      %v422 = vmax.f32 %v390, 0.0
      %v423 = vmax.f32 %v391, 0.0
      %v424 = vmax.f32 %v392, 0.0
      %v425 = vmax.f32 %v393, 0.0
      %v426 = vmax.f32 %v394, 0.0
      %v427 = vmax.f32 %v395, 0.0
      %v428 = vmax.f32 %v396, 0.0
      %v429 = vmax.f32 %v397, 0.0
      %v430 = vmax.f32 %v398, 0.0
      %v431 = vpack.c.bf16 %v400, %v399
      %v432 = vpack.c.bf16 %v402, %v401
      %v433 = vpack.c.bf16 %v404, %v403
      %v434 = vpack.c.bf16 %v406, %v405
      %v435 = vpack.c.bf16 %v408, %v407
      %v436 = vpack.c.bf16 %v410, %v409
      %v437 = vpack.c.bf16 %v412, %v411
      %v438 = vpack.c.bf16 %v414, %v413
      %v439 = vpack.c.bf16 %v416, %v415
      %v440 = vpack.c.bf16 %v418, %v417
      %v441 = vpack.c.bf16 %v420, %v419
      %v442 = vpack.c.bf16 %v422, %v421
      %v443 = vpack.c.bf16 %v424, %v423
      %v444 = vpack.c.bf16 %v426, %v425
      %v445 = vpack.c.bf16 %v428, %v427
      %v446 = vpack.c.bf16 %v430, %v429
      %v447 = vld [vmem:[%s3] sm:$0xf]
      %v448 = vld [vmem:[%s3 + $0x4] sm:$0xf]
      %v451 = vunpack.c.l.b16 %v447
      %v452 = vunpack.c.l.b16 %v448
      %v453 = vpack.c.b16 %v452, %v451
      %vm455 = vcmask 130048
      %v457 = vsel %vm455, %v431, 0
      %v460 = vsel %vm455, %v432, 0
      %v463 = vsel %vm455, %v433, 0
      %v466 = vsel %vm455, %v434, 0
      %v469 = vsel %vm455, %v435, 0
      %v472 = vsel %vm455, %v436, 0
      %v475 = vsel %vm455, %v437, 0
      %v478 = vsel %vm455, %v438, 0
      %v481 = vsel %vm455, %v439, 0
      %v484 = vsel %vm455, %v440, 0
      %v487 = vsel %vm455, %v441, 0
      %v490 = vsel %vm455, %v442, 0
      %v493 = vsel %vm455, %v443, 0
      %v496 = vsel %vm455, %v444, 0
      %v499 = vsel %vm455, %v445, 0
      %v502 = vsel %vm455, %v446, 0
      %504 = vmatprep.subr.bf16.mxu0 0
      %505 = vmatpush1.bf16.msra.mxu0 %v453
      %506 = vmatprep.subr.bf16.mxu0 0
      %507 = vmatpush1.bf16.msra.mxu0 0
      %508 = vmatprep.subr.bf16.mxu0 0
      %509 = vmatpush1.bf16.msra.mxu0 0
      %510 = vmatprep.subr.bf16.mxu0 0
      %511 = vmatpush1.bf16.msra.mxu0 0
      %512 = vmatprep.subr.bf16.mxu0 0
      %513 = vmatpush1.bf16.msra.mxu0 0
      %514 = vmatprep.subr.bf16.mxu0 0
      %515 = vmatpush1.bf16.msra.mxu0 0
      %516 = vmatprep.subr.bf16.mxu0 0
      %517 = vmatpush1.bf16.msra.mxu0 0
      %518 = vmatprep.subr.bf16.mxu0 0
      %519 = vmatpush1.bf16.msra.mxu0 0
      %520 = vmatprep.subr.bf16.mxu0 0
      %521 = vmatpush1.bf16.msra.mxu0 0
      %522 = vmatprep.subr.bf16.mxu0 0
      %523 = vmatpush1.bf16.msra.mxu0 0
      %524 = vmatprep.subr.bf16.mxu0 0
      %525 = vmatpush1.bf16.msra.mxu0 0
      %526 = vmatprep.subr.bf16.mxu0 0
      %527 = vmatpush1.bf16.msra.mxu0 0
      %528 = vmatprep.subr.bf16.mxu0 0
      %529 = vmatpush1.bf16.msra.mxu0 0
      %530 = vmatprep.subr.bf16.mxu0 0
      %531 = vmatpush1.bf16.msra.mxu0 0
      %532 = vmatprep.subr.bf16.mxu0 0
      %533 = vmatpush1.bf16.msra.mxu0 0
      %534 = vmatprep.subr.bf16.mxu0 0
      %535 = vmatpush1.bf16.msra.mxu0 0
      %536 = vmatprep.mubr.bf16.mxu0 0
      %537 = vmatmul.mubr.bf16.gmra.mrb[0].mxu0 %v457
      %v538 = vpop.f32.mrb[0].mxu0
      %v539 = vadd.f32 0.0, %v538
      %v540 = vpop.f32.mrb[0].mxu0
      %v541 = vpop.f32.mrb[0].mxu0
      %v542 = vadd.f32 0.0, %v541
      %v543 = vpop.f32.mrb[0].mxu0
      %544 = vmatprep.mubr.bf16.mxu0 0
      %545 = vmatmul.mubr.bf16.gmra.mrb[0].mxu0 %v460
      %v546 = vpop.f32.mrb[0].mxu0
      %v547 = vadd.f32 0.0, %v546
      %v548 = vpop.f32.mrb[0].mxu0
      %v549 = vpop.f32.mrb[0].mxu0
      %v550 = vadd.f32 0.0, %v549
      %v551 = vpop.f32.mrb[0].mxu0
      %552 = vmatprep.mubr.bf16.mxu0 0
      %553 = vmatmul.mubr.bf16.gmra.mrb[0].mxu0 %v463
      %v554 = vpop.f32.mrb[0].mxu0
      %v555 = vadd.f32 0.0, %v554
      %v556 = vpop.f32.mrb[0].mxu0
      %v557 = vpop.f32.mrb[0].mxu0
      %v558 = vadd.f32 0.0, %v557
      %v559 = vpop.f32.mrb[0].mxu0
      %560 = vmatprep.mubr.bf16.mxu0 0
      %561 = vmatmul.mubr.bf16.gmra.mrb[0].mxu0 %v466
      %v562 = vpop.f32.mrb[0].mxu0
      %v563 = vadd.f32 0.0, %v562
      %v564 = vpop.f32.mrb[0].mxu0
      %v565 = vpop.f32.mrb[0].mxu0
      %v566 = vadd.f32 0.0, %v565
      %v567 = vpop.f32.mrb[0].mxu0
      %568 = vmatprep.mubr.bf16.mxu0 0
      %569 = vmatmul.mubr.bf16.gmra.mrb[0].mxu0 %v469
      %v570 = vpop.f32.mrb[0].mxu0
      %v571 = vadd.f32 0.0, %v570
      %v572 = vpop.f32.mrb[0].mxu0
      %v573 = vpop.f32.mrb[0].mxu0
      %v574 = vadd.f32 0.0, %v573
      %v575 = vpop.f32.mrb[0].mxu0
      %576 = vmatprep.mubr.bf16.mxu0 0
      %577 = vmatmul.mubr.bf16.gmra.mrb[0].mxu0 %v472
      %v578 = vpop.f32.mrb[0].mxu0
      %v579 = vadd.f32 0.0, %v578
      %v580 = vpop.f32.mrb[0].mxu0
      %v581 = vpop.f32.mrb[0].mxu0
      %v582 = vadd.f32 0.0, %v581
      %v583 = vpop.f32.mrb[0].mxu0
      %584 = vmatprep.mubr.bf16.mxu0 0
      %585 = vmatmul.mubr.bf16.gmra.mrb[0].mxu0 %v475
      %v586 = vpop.f32.mrb[0].mxu0
      %v587 = vadd.f32 0.0, %v586
      %v588 = vpop.f32.mrb[0].mxu0
      %v589 = vpop.f32.mrb[0].mxu0
      %v590 = vadd.f32 0.0, %v589
      %v591 = vpop.f32.mrb[0].mxu0
      %592 = vmatprep.mubr.bf16.mxu0 0
      %593 = vmatmul.mubr.bf16.gmra.mrb[0].mxu0 %v478
      %v594 = vpop.f32.mrb[0].mxu0
      %v595 = vadd.f32 0.0, %v594
      %v596 = vpop.f32.mrb[0].mxu0
      %v597 = vpop.f32.mrb[0].mxu0
      %v598 = vadd.f32 0.0, %v597
      %v599 = vpop.f32.mrb[0].mxu0
      %600 = vmatprep.mubr.bf16.mxu0 0
      %601 = vmatmul.mubr.bf16.gmra.mrb[0].mxu0 %v481
      %v602 = vpop.f32.mrb[0].mxu0
      %v603 = vadd.f32 0.0, %v602
      %v604 = vpop.f32.mrb[0].mxu0
      %v605 = vpop.f32.mrb[0].mxu0
      %v606 = vadd.f32 0.0, %v605
      %v607 = vpop.f32.mrb[0].mxu0
      %608 = vmatprep.mubr.bf16.mxu0 0
      %609 = vmatmul.mubr.bf16.gmra.mrb[0].mxu0 %v484
      %v610 = vpop.f32.mrb[0].mxu0
      %v611 = vadd.f32 0.0, %v610
      %v612 = vpop.f32.mrb[0].mxu0
      %v613 = vpop.f32.mrb[0].mxu0
      %v614 = vadd.f32 0.0, %v613
      %v615 = vpop.f32.mrb[0].mxu0
      %616 = vmatprep.mubr.bf16.mxu0 0
      %617 = vmatmul.mubr.bf16.gmra.mrb[0].mxu0 %v487
      %v618 = vpop.f32.mrb[0].mxu0
      %v619 = vadd.f32 0.0, %v618
      %v620 = vpop.f32.mrb[0].mxu0
      %v621 = vpop.f32.mrb[0].mxu0
      %v622 = vadd.f32 0.0, %v621
      %v623 = vpop.f32.mrb[0].mxu0
      %624 = vmatprep.mubr.bf16.mxu0 0
      %625 = vmatmul.mubr.bf16.gmra.mrb[0].mxu0 %v490
      %v626 = vpop.f32.mrb[0].mxu0
      %v627 = vadd.f32 0.0, %v626
      %v628 = vpop.f32.mrb[0].mxu0
      %v629 = vpop.f32.mrb[0].mxu0
      %v630 = vadd.f32 0.0, %v629
      %v631 = vpop.f32.mrb[0].mxu0
      %632 = vmatprep.mubr.bf16.mxu0 0
      %633 = vmatmul.mubr.bf16.gmra.mrb[0].mxu0 %v493
      %v634 = vpop.f32.mrb[0].mxu0
      %v635 = vadd.f32 0.0, %v634
      %v636 = vpop.f32.mrb[0].mxu0
      %v637 = vpop.f32.mrb[0].mxu0
      %v638 = vadd.f32 0.0, %v637
      %v639 = vpop.f32.mrb[0].mxu0
      %640 = vmatprep.mubr.bf16.mxu0 0
      %641 = vmatmul.mubr.bf16.gmra.mrb[0].mxu0 %v496
      %v642 = vpop.f32.mrb[0].mxu0
      %v643 = vadd.f32 0.0, %v642
      %v644 = vpop.f32.mrb[0].mxu0
      %v645 = vpop.f32.mrb[0].mxu0
      %v646 = vadd.f32 0.0, %v645
      %v647 = vpop.f32.mrb[0].mxu0
      %648 = vmatprep.mubr.bf16.mxu0 0
      %649 = vmatmul.mubr.bf16.gmra.mrb[0].mxu0 %v499
      %v650 = vpop.f32.mrb[0].mxu0
      %v651 = vadd.f32 0.0, %v650
      %v652 = vpop.f32.mrb[0].mxu0
      %v653 = vpop.f32.mrb[0].mxu0
      %v654 = vadd.f32 0.0, %v653
      %v655 = vpop.f32.mrb[0].mxu0
      %656 = vmatprep.mubr.bf16.mxu0 0
      %657 = vmatmul.mubr.bf16.gmra.mrb[0].mxu0 %v502
      %v658 = vpop.f32.mrb[0].mxu0
      %v659 = vadd.f32 0.0, %v658
      %v660 = vpop.f32.mrb[0].mxu0
      %v661 = vpop.f32.mrb[0].mxu0
      %v662 = vadd.f32 0.0, %v661
      %v663 = vpop.f32.mrb[0].mxu0
      %664 = vdwg.mxu0
      %v665 = vpack.c.bf16 %v542, %v539
      %v666 = vpack.c.bf16 %v550, %v547
      %v667 = vpack.c.bf16 %v558, %v555
      %v668 = vpack.c.bf16 %v566, %v563
      %v669 = vpack.c.bf16 %v574, %v571
      %v670 = vpack.c.bf16 %v582, %v579
      %v671 = vpack.c.bf16 %v590, %v587
      %v672 = vpack.c.bf16 %v598, %v595
      %v673 = vpack.c.bf16 %v606, %v603
      %v674 = vpack.c.bf16 %v614, %v611
      %v675 = vpack.c.bf16 %v622, %v619
      %v676 = vpack.c.bf16 %v630, %v627
      %v677 = vpack.c.bf16 %v638, %v635
      %v678 = vpack.c.bf16 %v646, %v643
      %v679 = vpack.c.bf16 %v654, %v651
      %v680 = vpack.c.bf16 %v662, %v659
      %v697 = vunpack.c.l.b16 %v665
      %v698 = vunpack.c.h.b16 %v665
      %v699 = vunpack.c.l.b16 %v666
      %v700 = vunpack.c.h.b16 %v666
      %v701 = vunpack.c.l.b16 %v667
      %v702 = vunpack.c.h.b16 %v667
      %v703 = vunpack.c.l.b16 %v668
      %v704 = vunpack.c.h.b16 %v668
      %v705 = vunpack.c.l.b16 %v669
      %v706 = vunpack.c.h.b16 %v669
      %v707 = vunpack.c.l.b16 %v670
      %v708 = vunpack.c.h.b16 %v670
      %v709 = vunpack.c.l.b16 %v671
      %v710 = vunpack.c.h.b16 %v671
      %v711 = vunpack.c.l.b16 %v672
      %v712 = vunpack.c.h.b16 %v672
      %v713 = vunpack.c.l.b16 %v673
      %v714 = vunpack.c.h.b16 %v673
      %v715 = vunpack.c.l.b16 %v674
      %v716 = vunpack.c.h.b16 %v674
      %v717 = vunpack.c.l.b16 %v675
      %v718 = vunpack.c.h.b16 %v675
      %v719 = vunpack.c.l.b16 %v676
      %v720 = vunpack.c.h.b16 %v676
      %v721 = vunpack.c.l.b16 %v677
      %v722 = vunpack.c.h.b16 %v677
      %v723 = vunpack.c.l.b16 %v678
      %v724 = vunpack.c.h.b16 %v678
      %v725 = vunpack.c.l.b16 %v679
      %v726 = vunpack.c.h.b16 %v679
      %v727 = vunpack.c.l.b16 %v680
      %v728 = vunpack.c.h.b16 %v680
      %v729 = vpack.c.b16 %v697, %v697
      %v730 = vpack.c.b16 %v698, %v698
      %v731 = vpack.c.b16 %v699, %v699
      %v732 = vpack.c.b16 %v700, %v700
      %v733 = vpack.c.b16 %v701, %v701
      %v734 = vpack.c.b16 %v702, %v702
      %v735 = vpack.c.b16 %v703, %v703
      %v736 = vpack.c.b16 %v704, %v704
      %v737 = vpack.c.b16 %v705, %v705
      %v738 = vpack.c.b16 %v706, %v706
      %v739 = vpack.c.b16 %v707, %v707
      %v740 = vpack.c.b16 %v708, %v708
      %v741 = vpack.c.b16 %v709, %v709
      %v742 = vpack.c.b16 %v710, %v710
      %v743 = vpack.c.b16 %v711, %v711
      %v744 = vpack.c.b16 %v712, %v712
      %v745 = vpack.c.b16 %v713, %v713
      %v746 = vpack.c.b16 %v714, %v714
      %v747 = vpack.c.b16 %v715, %v715
      %v748 = vpack.c.b16 %v716, %v716
      %v749 = vpack.c.b16 %v717, %v717
      %v750 = vpack.c.b16 %v718, %v718
      %v751 = vpack.c.b16 %v719, %v719
      %v752 = vpack.c.b16 %v720, %v720
      %v753 = vpack.c.b16 %v721, %v721
      %v754 = vpack.c.b16 %v722, %v722
      %v755 = vpack.c.b16 %v723, %v723
      %v756 = vpack.c.b16 %v724, %v724
      %v757 = vpack.c.b16 %v725, %v725
      %v758 = vpack.c.b16 %v726, %v726
      %v759 = vpack.c.b16 %v727, %v727
      %v760 = vpack.c.b16 %v728, %v728
      %vm793 = vcmask 60416
      %794 = vst.msk [vmem:[%s279] sm:$0xf] %vm793, %v729
      %795 = vst.msk [vmem:[%s279 + $0x4] sm:$0xf] %vm793, %v730
      %796 = vst.msk [vmem:[%s279 + $0x8] sm:$0xf] %vm793, %v731
      %797 = vst.msk [vmem:[%s279 + $0xc] sm:$0xf] %vm793, %v732
      %798 = vst.msk [vmem:[%s279 + $0x10] sm:$0xf] %vm793, %v733
      %799 = vst.msk [vmem:[%s279 + $0x14] sm:$0xf] %vm793, %v734
      %800 = vst.msk [vmem:[%s279 + $0x18] sm:$0xf] %vm793, %v735
      %801 = vst.msk [vmem:[%s279 + $0x1c] sm:$0xf] %vm793, %v736
      %802 = vst.msk [vmem:[%s279 + $0x20] sm:$0xf] %vm793, %v737
      %803 = vst.msk [vmem:[%s279 + $0x24] sm:$0xf] %vm793, %v738
      %804 = vst.msk [vmem:[%s279 + $0x28] sm:$0xf] %vm793, %v739
      %805 = vst.msk [vmem:[%s279 + $0x2c] sm:$0xf] %vm793, %v740
      %806 = vst.msk [vmem:[%s279 + $0x30] sm:$0xf] %vm793, %v741
      %807 = vst.msk [vmem:[%s279 + $0x34] sm:$0xf] %vm793, %v742
      %808 = vst.msk [vmem:[%s279 + $0x38] sm:$0xf] %vm793, %v743
      %809 = vst.msk [vmem:[%s279 + $0x3c] sm:$0xf] %vm793, %v744
      %810 = vst.msk [vmem:[%s279 + $0x40] sm:$0xf] %vm793, %v745
      %811 = vst.msk [vmem:[%s279 + $0x44] sm:$0xf] %vm793, %v746
      %812 = vst.msk [vmem:[%s279 + $0x48] sm:$0xf] %vm793, %v747
      %813 = vst.msk [vmem:[%s279 + $0x4c] sm:$0xf] %vm793, %v748
      %814 = vst.msk [vmem:[%s279 + $0x50] sm:$0xf] %vm793, %v749
      %815 = vst.msk [vmem:[%s279 + $0x54] sm:$0xf] %vm793, %v750
      %816 = vst.msk [vmem:[%s279 + $0x58] sm:$0xf] %vm793, %v751
      %817 = vst.msk [vmem:[%s279 + $0x5c] sm:$0xf] %vm793, %v752
      %818 = vst.msk [vmem:[%s279 + $0x60] sm:$0xf] %vm793, %v753
      %819 = vst.msk [vmem:[%s279 + $0x64] sm:$0xf] %vm793, %v754
      %820 = vst.msk [vmem:[%s279 + $0x68] sm:$0xf] %vm793, %v755
      %821 = vst.msk [vmem:[%s279 + $0x6c] sm:$0xf] %vm793, %v756
      %822 = vst.msk [vmem:[%s279 + $0x70] sm:$0xf] %vm793, %v757
      %823 = vst.msk [vmem:[%s279 + $0x74] sm:$0xf] %vm793, %v758
      %824 = vst.msk [vmem:[%s279 + $0x78] sm:$0xf] %vm793, %v759
      %825 = vst.msk [vmem:[%s279 + $0x7c] sm:$0xf] %vm793, %v760
      %vm826 = vcmask 64512
      %v827 = vsel %vm826, %v539, 0.0
      %v828 = vsel %vm826, %v542, 0.0
      %v829 = vadd.f32 %v827, %v828
      %v830 = vsel %vm826, %v547, 0.0
      %v831 = vadd.f32 %v829, %v830
      %v832 = vsel %vm826, %v550, 0.0
      %v833 = vadd.f32 %v831, %v832
      %v834 = vsel %vm826, %v555, 0.0
      %v835 = vadd.f32 %v833, %v834
      %v836 = vsel %vm826, %v558, 0.0
      %v837 = vadd.f32 %v835, %v836
      %v838 = vsel %vm826, %v563, 0.0
      %v839 = vadd.f32 %v837, %v838
      %v840 = vsel %vm826, %v566, 0.0
      %v841 = vadd.f32 %v839, %v840
      %v842 = vsel %vm826, %v571, 0.0
      %v843 = vadd.f32 %v841, %v842
      %v844 = vsel %vm826, %v574, 0.0
      %v845 = vadd.f32 %v843, %v844
      %v846 = vsel %vm826, %v579, 0.0
      %v847 = vadd.f32 %v845, %v846
      %v848 = vsel %vm826, %v582, 0.0
      %v849 = vadd.f32 %v847, %v848
      %v850 = vsel %vm826, %v587, 0.0
      %v851 = vadd.f32 %v849, %v850
      %v852 = vsel %vm826, %v590, 0.0
      %v853 = vadd.f32 %v851, %v852
      %v854 = vsel %vm826, %v595, 0.0
      %v855 = vadd.f32 %v853, %v854
      %v856 = vsel %vm826, %v598, 0.0
      %v857 = vadd.f32 %v855, %v856
      %v858 = vsel %vm826, %v603, 0.0
      %v859 = vadd.f32 %v857, %v858
      %v860 = vsel %vm826, %v606, 0.0
      %v861 = vadd.f32 %v859, %v860
      %v862 = vsel %vm826, %v611, 0.0
      %v863 = vadd.f32 %v861, %v862
      %v864 = vsel %vm826, %v614, 0.0
      %v865 = vadd.f32 %v863, %v864
      %v866 = vsel %vm826, %v619, 0.0
      %v867 = vadd.f32 %v865, %v866
      %v868 = vsel %vm826, %v622, 0.0
      %v869 = vadd.f32 %v867, %v868
      %v870 = vsel %vm826, %v627, 0.0
      %v871 = vadd.f32 %v869, %v870
      %v872 = vsel %vm826, %v630, 0.0
      %v873 = vadd.f32 %v871, %v872
      %v874 = vsel %vm826, %v635, 0.0
      %v875 = vadd.f32 %v873, %v874
      %v876 = vsel %vm826, %v638, 0.0
      %v877 = vadd.f32 %v875, %v876
      %v878 = vsel %vm826, %v643, 0.0
      %v879 = vadd.f32 %v877, %v878
      %v880 = vsel %vm826, %v646, 0.0
      %v881 = vadd.f32 %v879, %v880
      %v882 = vsel %vm826, %v651, 0.0
      %v883 = vadd.f32 %v881, %v882
      %v884 = vsel %vm826, %v654, 0.0
      %v885 = vadd.f32 %v883, %v884
      %v886 = vsel %vm826, %v659, 0.0
      %v887 = vadd.f32 %v885, %v886
      %v888 = vsel %vm826, %v662, 0.0
      %v889 = vadd.f32 %v887, %v888
      %v890 = vrot.slane %v889, 4
      %v891 = vadd.f32 %v889, %v890
      %v892 = vrot.slane %v891, 2
      %v893 = vadd.f32 %v891, %v892
      %v894 = vrot.slane %v893, 1
      %v895 = vadd.f32 %v893, %v894
      %v896 = vmul.f32 %v539, %v539
      %v897 = vmul.f32 %v542, %v542
      %v898 = vmul.f32 %v547, %v547
      %v899 = vmul.f32 %v550, %v550
      %v900 = vmul.f32 %v555, %v555
      %v901 = vmul.f32 %v558, %v558
      %v902 = vmul.f32 %v563, %v563
      %v903 = vmul.f32 %v566, %v566
      %v904 = vmul.f32 %v571, %v571
      %v905 = vmul.f32 %v574, %v574
      %v906 = vmul.f32 %v579, %v579
      %v907 = vmul.f32 %v582, %v582
      %v908 = vmul.f32 %v587, %v587
      %v909 = vmul.f32 %v590, %v590
      %v910 = vmul.f32 %v595, %v595
      %v911 = vmul.f32 %v598, %v598
      %v912 = vmul.f32 %v603, %v603
      %v913 = vmul.f32 %v606, %v606
      %v914 = vmul.f32 %v611, %v611
      %v915 = vmul.f32 %v614, %v614
      %v916 = vmul.f32 %v619, %v619
      %v917 = vmul.f32 %v622, %v622
      %v918 = vmul.f32 %v627, %v627
      %v919 = vmul.f32 %v630, %v630
      %v920 = vmul.f32 %v635, %v635
      %v921 = vmul.f32 %v638, %v638
      %v922 = vmul.f32 %v643, %v643
      %v923 = vmul.f32 %v646, %v646
      %v924 = vmul.f32 %v651, %v651
      %v925 = vmul.f32 %v654, %v654
      %v926 = vmul.f32 %v659, %v659
      %v927 = vmul.f32 %v662, %v662
      %v928 = vsel %vm826, %v896, 0.0
      %v929 = vsel %vm826, %v897, 0.0
      %v930 = vadd.f32 %v928, %v929
      %v931 = vsel %vm826, %v898, 0.0
      %v932 = vadd.f32 %v930, %v931
      %v933 = vsel %vm826, %v899, 0.0
      %v934 = vadd.f32 %v932, %v933
      %v935 = vsel %vm826, %v900, 0.0
      %v936 = vadd.f32 %v934, %v935
      %v937 = vsel %vm826, %v901, 0.0
      %v938 = vadd.f32 %v936, %v937
      %v939 = vsel %vm826, %v902, 0.0
      %v940 = vadd.f32 %v938, %v939
      %v941 = vsel %vm826, %v903, 0.0
      %v942 = vadd.f32 %v940, %v941
      %v943 = vsel %vm826, %v904, 0.0
      %v944 = vadd.f32 %v942, %v943
      %v945 = vsel %vm826, %v905, 0.0
      %v946 = vadd.f32 %v944, %v945
      %v947 = vsel %vm826, %v906, 0.0
      %v948 = vadd.f32 %v946, %v947
      %v949 = vsel %vm826, %v907, 0.0
      %v950 = vadd.f32 %v948, %v949
      %v951 = vsel %vm826, %v908, 0.0
      %v952 = vadd.f32 %v950, %v951
      %v953 = vsel %vm826, %v909, 0.0
      %v954 = vadd.f32 %v952, %v953
      %v955 = vsel %vm826, %v910, 0.0
      %v956 = vadd.f32 %v954, %v955
      %v957 = vsel %vm826, %v911, 0.0
      %v958 = vadd.f32 %v956, %v957
      %v959 = vsel %vm826, %v912, 0.0
      %v960 = vadd.f32 %v958, %v959
      %v961 = vsel %vm826, %v913, 0.0
      %v962 = vadd.f32 %v960, %v961
      %v963 = vsel %vm826, %v914, 0.0
      %v964 = vadd.f32 %v962, %v963
      %v965 = vsel %vm826, %v915, 0.0
      %v966 = vadd.f32 %v964, %v965
      %v967 = vsel %vm826, %v916, 0.0
      %v968 = vadd.f32 %v966, %v967
      %v969 = vsel %vm826, %v917, 0.0
      %v970 = vadd.f32 %v968, %v969
      %v971 = vsel %vm826, %v918, 0.0
      %v972 = vadd.f32 %v970, %v971
      %v973 = vsel %vm826, %v919, 0.0
      %v974 = vadd.f32 %v972, %v973
      %v975 = vsel %vm826, %v920, 0.0
      %v976 = vadd.f32 %v974, %v975
      %v977 = vsel %vm826, %v921, 0.0
      %v978 = vadd.f32 %v976, %v977
      %v979 = vsel %vm826, %v922, 0.0
      %v980 = vadd.f32 %v978, %v979
      %v981 = vsel %vm826, %v923, 0.0
      %v982 = vadd.f32 %v980, %v981
      %v983 = vsel %vm826, %v924, 0.0
      %v984 = vadd.f32 %v982, %v983
      %v985 = vsel %vm826, %v925, 0.0
      %v986 = vadd.f32 %v984, %v985
      %v987 = vsel %vm826, %v926, 0.0
      %v988 = vadd.f32 %v986, %v987
      %v989 = vsel %vm826, %v927, 0.0
      %v990 = vadd.f32 %v988, %v989
      %v991 = vrot.slane %v990, 4
      %v992 = vadd.f32 %v990, %v991
      %v993 = vrot.slane %v992, 2
      %v994 = vadd.f32 %v992, %v993
      %v995 = vrot.slane %v994, 1
      %v996 = vadd.f32 %v994, %v995
      %vm997 = vcmask 1040384
      %v998 = vsel %vm997, %v895, %v996
      %vm999 = vcmask 58368
      %1000 = vst.msk [vmem:[%s287] sm:$0x3] %vm999, %v998
      %s1001 = smul.u32 16, %s22
      %p1002 = scmp.lt.s32.totalorder %s21, 1
      %s1003 = scalar_select %p1002, %s21, 1
      %p1004 = scmp.lt.s32.totalorder %s1001, 15
      %s1005 = scalar_select %p1004, %s1001, 15
      %s1006 = smul.addr %s1005, 2
      %s1007 = smul.addr %s1003, 32
      %s1008 = sadd.s32 %s1006, %s1007
      %s1009 = smul.addr %s1008, 4
      %s1010 = scalar_lea.vmem %s4, %s1009
      %p1011 = scmp.lt.s32.totalorder %s21, 1
      %s1012 = scalar_select %p1011, %s21, 1
      %p1013 = scmp.lt.s32.totalorder %s22, 0
      %s1014 = scalar_select %p1013, %s22, 0
      %s1015 = sadd.s32 %s1014, %s1012
      %s1016 = smul.addr %s1015, 2
      %s1017 = scalar_lea.vmem %s5, %s1016
      // Predicated region
      $region37: #{preact_bottleneck.5} parent=35 // pred_check
        %p1018 = pneg %p140
      $region38: #{preact_bottleneck.5} parent=35 // pred_check_branch
        %1020 = sbr.rel (%p1018) target = $region40
      $region39: #{preact_bottleneck.5} parent=35 // pred_region
        %s1021 = smul.u32 16, %s22
      $region40: #{preact_bottleneck.5} parent=35 // pred_fallthru
        _
      // Predicated region
      $region41: #{preact_bottleneck.5} parent=35 // pred_check
        %p1022 = pneg %p168
      $region42: #{preact_bottleneck.5} parent=35 // pred_check_branch
        %1024 = sbr.rel (%p1022) target = $region44
      $region43: #{preact_bottleneck.5} parent=35 // pred_region
        _
      $region44: #{preact_bottleneck.5} parent=35 // pred_fallthru
        _
    $region36: #{preact_bottleneck.5} parent=5 // pred_fallthru
      _
    %p1025 = scmp.le.s32.totalorder 2, %s12
    // Predicated region
    $region45: #{preact_bottleneck.5} parent=5 // pred_check
      %p1026 = pneg %p1025
    $region46: #{preact_bottleneck.5} parent=5 // pred_check_branch
      %1028 = sbr.rel (%p1026) target = $region48
    $region47: #{preact_bottleneck.5} parent=5 // pred_region
      %s1029 = ssub.s32 %s12, 2
      // Predicated region
      $region49: #{preact_bottleneck.5} parent=47 // pred_check
        %p1030 = pneg %p146
      $region50: #{preact_bottleneck.5} parent=47 // pred_check_branch
        %1032 = sbr.rel (%p1030) target = $region52
      $region51: #{preact_bottleneck.5} parent=47 // pred_region
        %s1033 = smul.u32 16, %s24
        %p1034 = scmp.lt.s32.totalorder %s23, 1
        %s1035 = scalar_select %p1034, %s23, 1
        %p1036 = scmp.lt.s32.totalorder %s1033, 15
        %s1037 = scalar_select %p1036, %s1033, 15
        %s1038 = smul.addr %s1037, 2
        %s1039 = smul.addr %s1035, 32
        %s1040 = sadd.s32 %s1038, %s1039
        %s1041 = smul.addr %s1040, 4
        %s1042 = scalar_lea.vmem %s4, %s1041
      $region52: #{preact_bottleneck.5} parent=47 // pred_fallthru
        _
      // Predicated region
      $region53: #{preact_bottleneck.5} parent=47 // pred_check
        %p1043 = pneg %p174
      $region54: #{preact_bottleneck.5} parent=47 // pred_check_branch
        %1045 = sbr.rel (%p1043) target = $region56
      $region55: #{preact_bottleneck.5} parent=47 // pred_region
        %p1046 = scmp.lt.s32.totalorder %s23, 1
        %s1047 = scalar_select %p1046, %s23, 1
        %p1048 = scmp.lt.s32.totalorder %s24, 0
        %s1049 = scalar_select %p1048, %s24, 0
        %s1050 = sadd.s32 %s1049, %s1047
        %s1051 = smul.addr %s1050, 2
        %s1052 = scalar_lea.vmem %s5, %s1051
      $region56: #{preact_bottleneck.5} parent=47 // pred_fallthru
        _
    $region48: #{preact_bottleneck.5} parent=5 // pred_fallthru
      _
  $region6: #{preact_bottleneck.5} parent=0 // loop_footer
    %s16 = sadd.s32 1, %s12
  $region7: #{preact_bottleneck.5} parent=0 // loop_footer_branch
    %11 = sbr.rel target = $region3
  $region8: #{preact_bottleneck.5} parent=0 // loop_exit
    _

// kernel: preact_bottleneck.7
$region0: #{preact_bottleneck.7}
  #allocation0 [shape = 'u32[]', space=smem, size = 0x4, offset = 0x4, fixed_abs, tag = 'smem constant byte address 0x4 - core index']
  #allocation1 [shape = 'u32[144,128]{1,0:T(1,128)}', space=vmem, size = 0x12000, scoped, tag = 'internal scratch']
  %s0 = inlined_call_operand.vmem [shape: bf16[2,16,16,8], index: 0, kind: input, shape index: {}]
  %s1 = inlined_call_operand.vmem [shape: f32[1,8], index: 1, kind: input, shape index: {}]
  %s2 = inlined_call_operand.vmem [shape: f32[1,8], index: 2, kind: input, shape index: {}]
  %s3 = inlined_call_operand.vmem [shape: bf16[8,32], index: 3, kind: input, shape index: {}]
  %s4 = inlined_call_operand.vmem [shape: f32[2,16,16,16], index: 4, kind: input, shape index: {}]
  %s5 = inlined_call_operand.vmem [shape: f32[1,16], index: 5, kind: input, shape index: {}]
  %s6 = inlined_call_operand.vmem [shape: f32[1,16], index: 6, kind: input, shape index: {}]
  %s7 = inlined_call_operand.vmem [shape: bf16[16,32], index: 7, kind: input, shape index: {}]
  %s8 = inlined_call_operand.hbm [shape: f32[2,16,16,32], index: 8, kind: output, shape index: {}]
  %s9 = sld [smem:[#allocation0]]
  $region65: #{preact_bottleneck.7} parent=0
    _
  %s11 = ssub.s32 1, %s9
  %s12 = scalar_select 0, %s11, %s9
  $region1: #{preact_bottleneck.7} parent=0
    #allocation2 [shape = 'u8[262144]{0}', space=vmem, size = 0x40000, scoped, tag = 'output window, operand 0']
    #allocation3 [shape = 's32[2]{0}', space=sflag, size = 0x8, scoped, tag = 'scoped memory for preact_bottleneck.7']
    %13 = vsyncpa [#allocation3], 0
    %s14 = scalar_lea.sflag [#allocation3], 1
    %15 = vsyncpa %s14, 0
    loop: start=0, step=1, limit=4
    $region2: #{preact_bottleneck.7} parent=1 // loop_pre_header
      _
    $region3: #{preact_bottleneck.7} parent=1 // loop_header
      %s17 = sphi 0, %s21
      %p18 = scmp.ge.s32.totalorder %s17, 4
      %s24 = sphi 0, %s36
      %s25 = sphi 0, %s32
      %s26 = sphi 0, %s24
      %s27 = sphi 0, %s25
      %s28 = sphi 0, %s26
      %s29 = sphi 0, %s27
      %s41 = sphi 0, %s43
      %s44 = sphi 0, %s41
      %s45 = sphi 0, %s44
      %s61 = sphi 0, %s45
      %s65 = sphi 0, %s65
      %s67 = sphi 0, %s65
      %s68 = sphi 0, %s67
      %s82 = sphi 0, %s68
      %s86 = sphi 0, %s86
      %s88 = sphi 0, %s86
      %s89 = sphi 0, %s88
      %s103 = sphi 0, %s89
      %s107 = sphi 0, %s107
      %s109 = sphi 0, %s107
      %s110 = sphi 0, %s109
      %s124 = sphi 0, %s110
      %s132 = sphi 0, %s134
      %s135 = sphi 0, %s132
      %s136 = sphi 0, %s135
      %s152 = sphi 0, %s136
      %s156 = sphi 0, %s156
      %s158 = sphi 0, %s156
      %s159 = sphi 0, %s158
      %s173 = sphi 0, %s159
      %s177 = sphi 0, %s177
      %s179 = sphi 0, %s177
      %s180 = sphi 0, %s179
      %s194 = sphi 0, %s180
      %s198 = sphi 0, %s198
      %s200 = sphi 0, %s198
      %s201 = sphi 0, %s200
      %s215 = sphi 0, %s201
      %s223 = sphi 0, %s225
      %s226 = sphi 0, %s223
      %s227 = sphi 0, %s226
      %s243 = sphi 0, %s227
    $region4: #{preact_bottleneck.7} parent=1 // loop_header_branch
      %20 = sbr.rel (%p18) target = $region8
    $region5: #{preact_bottleneck.7} parent=1 // loop_body
      %s22 = ssub.s32 %s17, 1
      %s23 = ssub.s32 %s17, 2
      %s30 = sadd.s32 1, %s25
      %p31 = scmp.ge.s32.totalorder %s30, 1
      %s32 = scalar_select %p31, 0, %s30
      %s33 = sadd.s32 1, %s24
      %s34 = scalar_select %p31, %s33, %s24
      %p35 = scmp.ge.s32.totalorder %s34, 2
      %s36 = scalar_select %p35, 0, %s34
      %s37 = ssub.s32 %s24, %s36
      %s38 = ssub.s32 %s25, %s32
      %s39 = sor.u32 %s37, %s38
      %p40 = scmp.eq.s32.totalorder %s39, 0
      %s42 = sadd.s32 %s41, 1
      %s43 = scalar_select %p40, %s41, %s42
      %p46 = pneg %p40
      %p47 = scmp.eq.s32.totalorder %s17, 1
      %p48 = por %p46, %p47
      %p49 = scmp.ne.s32.totalorder %s41, %s44
      %p50 = scmp.eq.s32.totalorder %s17, 0
      %p51 = por %p49, %p50
      %p52 = scmp.ne.s32.totalorder %s41, %s44
      %p53 = scmp.eq.s32.totalorder %s22, 1
      %p54 = por %p52, %p53
      %p55 = scmp.ne.s32.totalorder %s44, %s45
      %p56 = scmp.eq.s32.totalorder %s22, 0
      %p57 = por %p55, %p56
      %p58 = scmp.ne.s32.totalorder %s44, %s45
      %p59 = scmp.eq.s32.totalorder %s23, 1
      %p60 = por %p58, %p59
      %p62 = scmp.ne.s32.totalorder %s45, %s61
      %p63 = scmp.eq.s32.totalorder %s23, 0
      %p64 = por %p62, %p63
      %s66 = sadd.s32 %s65, 1
      %p69 = scmp.eq.s32.totalorder %s17, 1
      %p70 = scmp.ne.s32.totalorder %s65, %s67
      %p71 = scmp.eq.s32.totalorder %s17, 0
      %p72 = por %p70, %p71
      %p73 = scmp.ne.s32.totalorder %s65, %s67
      %p74 = scmp.eq.s32.totalorder %s22, 1
      %p75 = por %p73, %p74
      %p76 = scmp.ne.s32.totalorder %s67, %s68
      %p77 = scmp.eq.s32.totalorder %s22, 0
      %p78 = por %p76, %p77
      %p79 = scmp.ne.s32.totalorder %s67, %s68
      %p80 = scmp.eq.s32.totalorder %s23, 1
      %p81 = por %p79, %p80
      %p83 = scmp.ne.s32.totalorder %s68, %s82
      %p84 = scmp.eq.s32.totalorder %s23, 0
      %p85 = por %p83, %p84
      %s87 = sadd.s32 %s86, 1
      %p90 = scmp.eq.s32.totalorder %s17, 1
      %p91 = scmp.ne.s32.totalorder %s86, %s88
      %p92 = scmp.eq.s32.totalorder %s17, 0
      %p93 = por %p91, %p92
      %p94 = scmp.ne.s32.totalorder %s86, %s88
      %p95 = scmp.eq.s32.totalorder %s22, 1
      %p96 = por %p94, %p95
      %p97 = scmp.ne.s32.totalorder %s88, %s89
      %p98 = scmp.eq.s32.totalorder %s22, 0
      %p99 = por %p97, %p98
      %p100 = scmp.ne.s32.totalorder %s88, %s89
      %p101 = scmp.eq.s32.totalorder %s23, 1
      %p102 = por %p100, %p101
      %p104 = scmp.ne.s32.totalorder %s89, %s103
      %p105 = scmp.eq.s32.totalorder %s23, 0
      %p106 = por %p104, %p105
      %s108 = sadd.s32 %s107, 1
      %p111 = scmp.eq.s32.totalorder %s17, 1
      %p112 = scmp.ne.s32.totalorder %s107, %s109
      %p113 = scmp.eq.s32.totalorder %s17, 0
      %p114 = por %p112, %p113
      %p115 = scmp.ne.s32.totalorder %s107, %s109
      %p116 = scmp.eq.s32.totalorder %s22, 1
      %p117 = por %p115, %p116
      %p118 = scmp.ne.s32.totalorder %s109, %s110
      %p119 = scmp.eq.s32.totalorder %s22, 0
      %p120 = por %p118, %p119
      %p121 = scmp.ne.s32.totalorder %s109, %s110
      %p122 = scmp.eq.s32.totalorder %s23, 1
      %p123 = por %p121, %p122
      %p125 = scmp.ne.s32.totalorder %s110, %s124
      %p126 = scmp.eq.s32.totalorder %s23, 0
      %p127 = por %p125, %p126
      %s128 = ssub.s32 %s24, %s36
      %s129 = ssub.s32 %s25, %s32
      %s130 = sor.u32 %s128, %s129
      %p131 = scmp.eq.s32.totalorder %s130, 0
      %s133 = sadd.s32 %s132, 1
      %s134 = scalar_select %p131, %s132, %s133
      %p137 = pneg %p131
      %p138 = scmp.eq.s32.totalorder %s17, 1
      %p139 = por %p137, %p138
      %p140 = scmp.ne.s32.totalorder %s132, %s135
      %p141 = scmp.eq.s32.totalorder %s17, 0
      %p142 = por %p140, %p141
      %p143 = scmp.ne.s32.totalorder %s132, %s135
      %p144 = scmp.eq.s32.totalorder %s22, 1
      %p145 = por %p143, %p144
      %p146 = scmp.ne.s32.totalorder %s135, %s136
      %p147 = scmp.eq.s32.totalorder %s22, 0
      %p148 = por %p146, %p147
      %p149 = scmp.ne.s32.totalorder %s135, %s136
      %p150 = scmp.eq.s32.totalorder %s23, 1
      %p151 = por %p149, %p150
      %p153 = scmp.ne.s32.totalorder %s136, %s152
      %p154 = scmp.eq.s32.totalorder %s23, 0
      %p155 = por %p153, %p154
      %s157 = sadd.s32 %s156, 1
      %p160 = scmp.eq.s32.totalorder %s17, 1
      %p161 = scmp.ne.s32.totalorder %s156, %s158
      %p162 = scmp.eq.s32.totalorder %s17, 0
      %p163 = por %p161, %p162
      %p164 = scmp.ne.s32.totalorder %s156, %s158
      %p165 = scmp.eq.s32.totalorder %s22, 1
      %p166 = por %p164, %p165
      %p167 = scmp.ne.s32.totalorder %s158, %s159
      %p168 = scmp.eq.s32.totalorder %s22, 0
      %p169 = por %p167, %p168
      %p170 = scmp.ne.s32.totalorder %s158, %s159
      %p171 = scmp.eq.s32.totalorder %s23, 1
      %p172 = por %p170, %p171
      %p174 = scmp.ne.s32.totalorder %s159, %s173
      %p175 = scmp.eq.s32.totalorder %s23, 0
      %p176 = por %p174, %p175
      %s178 = sadd.s32 %s177, 1
      %p181 = scmp.eq.s32.totalorder %s17, 1
      %p182 = scmp.ne.s32.totalorder %s177, %s179
      %p183 = scmp.eq.s32.totalorder %s17, 0
      %p184 = por %p182, %p183
      %p185 = scmp.ne.s32.totalorder %s177, %s179
      %p186 = scmp.eq.s32.totalorder %s22, 1
      %p187 = por %p185, %p186
      %p188 = scmp.ne.s32.totalorder %s179, %s180
      %p189 = scmp.eq.s32.totalorder %s22, 0
      %p190 = por %p188, %p189
      %p191 = scmp.ne.s32.totalorder %s179, %s180
      %p192 = scmp.eq.s32.totalorder %s23, 1
      %p193 = por %p191, %p192
      %p195 = scmp.ne.s32.totalorder %s180, %s194
      %p196 = scmp.eq.s32.totalorder %s23, 0
      %p197 = por %p195, %p196
      %s199 = sadd.s32 %s198, 1
      %p202 = scmp.eq.s32.totalorder %s17, 1
      %p203 = scmp.ne.s32.totalorder %s198, %s200
      %p204 = scmp.eq.s32.totalorder %s17, 0
      %p205 = por %p203, %p204
      %p206 = scmp.ne.s32.totalorder %s198, %s200
      %p207 = scmp.eq.s32.totalorder %s22, 1
      %p208 = por %p206, %p207
      %p209 = scmp.ne.s32.totalorder %s200, %s201
      %p210 = scmp.eq.s32.totalorder %s22, 0
      %p211 = por %p209, %p210
      %p212 = scmp.ne.s32.totalorder %s200, %s201
      %p213 = scmp.eq.s32.totalorder %s23, 1
      %p214 = por %p212, %p213
      %p216 = scmp.ne.s32.totalorder %s201, %s215
      %p217 = scmp.eq.s32.totalorder %s23, 0
      %p218 = por %p216, %p217
      %s219 = ssub.s32 %s24, %s36
      %s220 = ssub.s32 %s25, %s32
      %s221 = sor.u32 %s219, %s220
      %p222 = scmp.eq.s32.totalorder %s221, 0
      %s224 = sadd.s32 %s223, 1
      %s225 = scalar_select %p222, %s223, %s224
      %p228 = pneg %p222
      %p229 = scmp.eq.s32.totalorder %s17, 1
      %p230 = por %p228, %p229
      %p231 = scmp.ne.s32.totalorder %s223, %s226
      %p232 = scmp.eq.s32.totalorder %s17, 0
      %p233 = por %p231, %p232
      %p234 = scmp.ne.s32.totalorder %s223, %s226
      %p235 = scmp.eq.s32.totalorder %s22, 1
      %p236 = por %p234, %p235
      %p237 = scmp.ne.s32.totalorder %s226, %s227
      %p238 = scmp.eq.s32.totalorder %s22, 0
      %p239 = por %p237, %p238
      %p240 = scmp.ne.s32.totalorder %s226, %s227
      %p241 = scmp.eq.s32.totalorder %s23, 1
      %p242 = por %p240, %p241
      %p244 = scmp.ne.s32.totalorder %s227, %s243
      %p245 = scmp.eq.s32.totalorder %s23, 0
      %p246 = por %p244, %p245
      %p247 = scmp.le.s32.totalorder 1, %s17
      %p248 = scmp.lt.s32.totalorder %s17, 3
      %p249 = pnand %p247, %p248
      %p250 = pneg %p249
      // Predicated region
      $region9: #{preact_bottleneck.7} parent=5 // pred_check
        _
      $region10: #{preact_bottleneck.7} parent=5 // pred_check_branch
        %252 = sbr.rel (%p249) target = $region12
      $region11: #{preact_bottleneck.7} parent=5 // pred_region
        %s253 = ssub.s32 %s17, 1
        // Predicated region
        $region13: #{preact_bottleneck.7} parent=11 // pred_check
          %p254 = pneg %p78
        $region14: #{preact_bottleneck.7} parent=11 // pred_check_branch
          %256 = sbr.rel (%p254) target = $region16
        $region15: #{preact_bottleneck.7} parent=11 // pred_region
          _
        $region16: #{preact_bottleneck.7} parent=11 // pred_fallthru
          _
        // Predicated region
        $region17: #{preact_bottleneck.7} parent=11 // pred_check
          %p257 = pneg %p99
        $region18: #{preact_bottleneck.7} parent=11 // pred_check_branch
          %259 = sbr.rel (%p257) target = $region20
        $region19: #{preact_bottleneck.7} parent=11 // pred_region
          _
        $region20: #{preact_bottleneck.7} parent=11 // pred_fallthru
          _
        // Predicated region
        $region21: #{preact_bottleneck.7} parent=11 // pred_check
          %p260 = pneg %p120
        $region22: #{preact_bottleneck.7} parent=11 // pred_check_branch
          %262 = sbr.rel (%p260) target = $region24
        $region23: #{preact_bottleneck.7} parent=11 // pred_region
          _
        $region24: #{preact_bottleneck.7} parent=11 // pred_fallthru
          _
        // Predicated region
        $region25: #{preact_bottleneck.7} parent=11 // pred_check
          %p263 = pneg %p169
        $region26: #{preact_bottleneck.7} parent=11 // pred_check_branch
          %265 = sbr.rel (%p263) target = $region28
        $region27: #{preact_bottleneck.7} parent=11 // pred_region
          _
        $region28: #{preact_bottleneck.7} parent=11 // pred_fallthru
          _
        // Predicated region
        $region29: #{preact_bottleneck.7} parent=11 // pred_check
          %p266 = pneg %p190
        $region30: #{preact_bottleneck.7} parent=11 // pred_check_branch
          %268 = sbr.rel (%p266) target = $region32
        $region31: #{preact_bottleneck.7} parent=11 // pred_region
          _
        $region32: #{preact_bottleneck.7} parent=11 // pred_fallthru
          _
        // Predicated region
        $region33: #{preact_bottleneck.7} parent=11 // pred_check
          %p269 = pneg %p211
        $region34: #{preact_bottleneck.7} parent=11 // pred_check_branch
          %271 = sbr.rel (%p269) target = $region36
        $region35: #{preact_bottleneck.7} parent=11 // pred_region
          _
        $region36: #{preact_bottleneck.7} parent=11 // pred_fallthru
          _
      $region12: #{preact_bottleneck.7} parent=5 // pred_fallthru
        _
      %p272 = scmp.lt.s32.totalorder %s17, 2
      // Predicated region
      $region37: #{preact_bottleneck.7} parent=5 // pred_check
        %p273 = pneg %p272
      $region38: #{preact_bottleneck.7} parent=5 // pred_check_branch
        %275 = sbr.rel (%p273) target = $region40
      $region39: #{preact_bottleneck.7} parent=5 // pred_region
        // Predicated region
        $region41: #{preact_bottleneck.7} parent=39 // pred_check
          %p276 = pneg %p51
        $region42: #{preact_bottleneck.7} parent=39 // pred_check_branch
          %278 = sbr.rel (%p276) target = $region44
        $region43: #{preact_bottleneck.7} parent=39 // pred_region
          %s279 = smul.u32 16, %s25
          %p280 = scmp.lt.s32.totalorder %s24, 1
          %s281 = scalar_select %p280, %s24, 1
          %p282 = scmp.lt.s32.totalorder %s279, 15
          %s283 = scalar_select %p282, %s279, 15
          %s284 = smul.addr %s283, 2
          %s285 = smul.addr %s281, 32
          %s286 = sadd.s32 %s284, %s285
          %s287 = smul.addr %s286, 4
          %s288 = scalar_lea.vmem %s0, %s287
          %s289 = smul.u32 16, %s25
        $region44: #{preact_bottleneck.7} parent=39 // pred_fallthru
          _
        // Predicated region
        $region45: #{preact_bottleneck.7} parent=39 // pred_check
          %p290 = pneg %p142
        $region46: #{preact_bottleneck.7} parent=39 // pred_check_branch
          %292 = sbr.rel (%p290) target = $region48
        $region47: #{preact_bottleneck.7} parent=39 // pred_region
          %s293 = smul.u32 16, %s25
          %p294 = scmp.lt.s32.totalorder %s24, 1
          %s295 = scalar_select %p294, %s24, 1
          %p296 = scmp.lt.s32.totalorder %s293, 15
          %s297 = scalar_select %p296, %s293, 15
          %s298 = smul.addr %s297, 2
          %s299 = smul.addr %s295, 32
          %s300 = sadd.s32 %s298, %s299
          %s301 = smul.addr %s300, 8
          %s302 = scalar_lea.vmem %s4, %s301
          %s303 = smul.u32 16, %s25
        $region48: #{preact_bottleneck.7} parent=39 // pred_fallthru
          _
      $region40: #{preact_bottleneck.7} parent=5 // pred_fallthru
        _
      %p304 = scmp.le.s32.totalorder 1, %s17
      %p305 = scmp.lt.s32.totalorder %s17, 3
      %p306 = pnand %p304, %p305
      %p307 = pneg %p306
      // Predicated region
      $region49: #{preact_bottleneck.7} parent=5 // pred_check
        _
      $region50: #{preact_bottleneck.7} parent=5 // pred_check_branch
        %309 = sbr.rel (%p306) target = $region52
      $region51: #{preact_bottleneck.7} parent=5 // pred_region
        %s310 = ssub.s32 %s17, 1
        %s311 = smul.u32 16, %s27
        %p312 = scmp.lt.s32.totalorder %s26, 1
        %s313 = scalar_select %p312, %s26, 1
        %p314 = scmp.lt.s32.totalorder %s311, 15
        %s315 = scalar_select %p314, %s311, 15
        %s316 = smul.addr %s315, 2
        %s317 = smul.addr %s313, 32
        %s318 = sadd.s32 %s316, %s317
        %s319 = smul.addr %s318, 4
        %s320 = scalar_lea.vmem %s0, %s319
        %p321 = pneg %p57
        %p322 = pneg %p54
        %p323 = pneg %p78
        %p324 = pneg %p75
        %p325 = pneg %p99
        %p326 = pneg %p96
        %p327 = pneg %p120
        %p328 = pneg %p117
        %s329 = smul.u32 16, %s27
        %p330 = scmp.lt.s32.totalorder %s26, 1
        %s331 = scalar_select %p330, %s26, 1
        %p332 = scmp.lt.s32.totalorder %s329, 15
        %s333 = scalar_select %p332, %s329, 15
        %s334 = smul.addr %s333, 2
        %s335 = smul.addr %s331, 32
        %s336 = sadd.s32 %s334, %s335
        %s337 = smul.addr %s336, 8
        %s338 = scalar_lea.vmem %s4, %s337
        %p339 = pneg %p148
        %p340 = pneg %p145
        %p341 = pneg %p169
        %p342 = pneg %p166
        %p343 = pneg %p190
        %p344 = pneg %p187
        %p345 = pneg %p211
        %p346 = pneg %p208
        %p347 = pneg %p239
        %p348 = pneg %p236
        %s349 = sand.u32 %s226, 1
        %s350 = scalar_lea.sflag [#allocation3], %s349
        %s351 = sand.u32 %s226, 1
        %s352 = smul.addr %s351, 256
        %s353 = scalar_lea.vmem [#allocation2], %s352
        %s354 = smul.u32 16, %s27
        %p355 = scmp.lt.s32.totalorder %s26, 1
        %s356 = scalar_select %p355, %s26, 1
        %p357 = scmp.lt.s32.totalorder %s354, 15
        %s358 = scalar_select %p357, %s354, 15
        %s359 = smul.addr %s358, 2
        %s360 = smul.addr %s356, 32
        %s361 = sadd.s32 %s359, %s360
        %s362 = smul.addr %s361, 4
        %s363 = scalar_lea.vmem %s0, %s362
        %s364 = smul.u32 16, %s27
        %s365 = smul.u32 16, %s27
        %p366 = scmp.lt.s32.totalorder %s26, 1
        %s367 = scalar_select %p366, %s26, 1
        %p368 = scmp.lt.s32.totalorder %s365, 15
        %s369 = scalar_select %p368, %s365, 15
        %s370 = smul.addr %s369, 2
        %s371 = smul.addr %s367, 32
        %s372 = sadd.s32 %s370, %s371
        %s373 = smul.addr %s372, 8
        %s374 = scalar_lea.vmem %s4, %s373
        %s375 = smul.u32 16, %s27
        %s376 = smul.u32 16, %s27
        %v378 = vld [vmem:[%s363] sm:$0xf]
        %v379 = vld [vmem:[%s363 + $0x4] sm:$0xf]
        %v380 = vld [vmem:[%s363 + $0x8] sm:$0xf]
        %v381 = vld [vmem:[%s363 + $0xc] sm:$0xf]
        %v382 = vld [vmem:[%s363 + $0x10] sm:$0xf]
        %v383 = vld [vmem:[%s363 + $0x14] sm:$0xf]
        %v384 = vld [vmem:[%s363 + $0x18] sm:$0xf]
        %v385 = vld [vmem:[%s363 + $0x1c] sm:$0xf]
        %v386 = vld [vmem:[%s363 + $0x20] sm:$0xf]
        %v387 = vld [vmem:[%s363 + $0x24] sm:$0xf]
        %v388 = vld [vmem:[%s363 + $0x28] sm:$0xf]
        %v389 = vld [vmem:[%s363 + $0x2c] sm:$0xf]
        %v390 = vld [vmem:[%s363 + $0x30] sm:$0xf]
        %v391 = vld [vmem:[%s363 + $0x34] sm:$0xf]
        %v392 = vld [vmem:[%s363 + $0x38] sm:$0xf]
        %v393 = vld [vmem:[%s363 + $0x3c] sm:$0xf]
        %v394 = vld [vmem:[%s363 + $0x40] sm:$0xf]
        %v395 = vld [vmem:[%s363 + $0x44] sm:$0xf]
        %v396 = vld [vmem:[%s363 + $0x48] sm:$0xf]
        %v397 = vld [vmem:[%s363 + $0x4c] sm:$0xf]
        %v398 = vld [vmem:[%s363 + $0x50] sm:$0xf]
        %v399 = vld [vmem:[%s363 + $0x54] sm:$0xf]
        %v400 = vld [vmem:[%s363 + $0x58] sm:$0xf]
        %v401 = vld [vmem:[%s363 + $0x5c] sm:$0xf]
        %v402 = vld [vmem:[%s363 + $0x60] sm:$0xf]
        %v403 = vld [vmem:[%s363 + $0x64] sm:$0xf]
        %v404 = vld [vmem:[%s363 + $0x68] sm:$0xf]
        %v405 = vld [vmem:[%s363 + $0x6c] sm:$0xf]
        %v406 = vld [vmem:[%s363 + $0x70] sm:$0xf]
        %v407 = vld [vmem:[%s363 + $0x74] sm:$0xf]
        %v408 = vld [vmem:[%s363 + $0x78] sm:$0xf]
        %v409 = vld [vmem:[%s363 + $0x7c] sm:$0xf]
        %v410 = vunpack.c.l.bf16 %v378
        %v411 = vunpack.c.l.bf16 %v379
        %v412 = vunpack.c.l.bf16 %v380
        %v413 = vunpack.c.l.bf16 %v381
        %v414 = vunpack.c.l.bf16 %v382
        %v415 = vunpack.c.l.bf16 %v383
        %v416 = vunpack.c.l.bf16 %v384
        %v417 = vunpack.c.l.bf16 %v385
        %v418 = vunpack.c.l.bf16 %v386
        %v419 = vunpack.c.l.bf16 %v387
        %v420 = vunpack.c.l.bf16 %v388
        %v421 = vunpack.c.l.bf16 %v389
        %v422 = vunpack.c.l.bf16 %v390
        %v423 = vunpack.c.l.bf16 %v391
        %v424 = vunpack.c.l.bf16 %v392
        %v425 = vunpack.c.l.bf16 %v393
        %v426 = vunpack.c.l.bf16 %v394
        %v427 = vunpack.c.l.bf16 %v395
        %v428 = vunpack.c.l.bf16 %v396
        %v429 = vunpack.c.l.bf16 %v397
        %v430 = vunpack.c.l.bf16 %v398
        %v431 = vunpack.c.l.bf16 %v399
        %v432 = vunpack.c.l.bf16 %v400
        %v433 = vunpack.c.l.bf16 %v401
        %v434 = vunpack.c.l.bf16 %v402
        %v435 = vunpack.c.l.bf16 %v403
        %v436 = vunpack.c.l.bf16 %v404
        %v437 = vunpack.c.l.bf16 %v405
        %v438 = vunpack.c.l.bf16 %v406
        %v439 = vunpack.c.l.bf16 %v407
        %v440 = vunpack.c.l.bf16 %v408
        %v441 = vunpack.c.l.bf16 %v409
        %v442 = vld [vmem:[%s1] sm:$0x1]
        %v444 = vlaneseq
        %v445 = vshrl.u32 %v444, 7
        %v446 = vsub.s32 0, %v445
        %v447 = vrot.slane %v442, %v446
        %v449 = vmul.f32 %v410, %v447
        %v450 = vmul.f32 %v411, %v447
        %v451 = vmul.f32 %v412, %v447
        %v452 = vmul.f32 %v413, %v447
        %v453 = vmul.f32 %v414, %v447
        %v454 = vmul.f32 %v415, %v447
        %v455 = vmul.f32 %v416, %v447
        %v456 = vmul.f32 %v417, %v447
        %v457 = vmul.f32 %v418, %v447
        %v458 = vmul.f32 %v419, %v447
        %v459 = vmul.f32 %v420, %v447
        %v460 = vmul.f32 %v421, %v447
        %v461 = vmul.f32 %v422, %v447
        %v462 = vmul.f32 %v423, %v447
        %v463 = vmul.f32 %v424, %v447
        %v464 = vmul.f32 %v425, %v447
        %v465 = vmul.f32 %v426, %v447
        %v466 = vmul.f32 %v427, %v447
        %v467 = vmul.f32 %v428, %v447
        %v468 = vmul.f32 %v429, %v447
        %v469 = vmul.f32 %v430, %v447
        %v470 = vmul.f32 %v431, %v447
        %v471 = vmul.f32 %v432, %v447
        %v472 = vmul.f32 %v433, %v447
        %v473 = vmul.f32 %v434, %v447
        %v474 = vmul.f32 %v435, %v447
        %v475 = vmul.f32 %v436, %v447
        %v476 = vmul.f32 %v437, %v447
        %v477 = vmul.f32 %v438, %v447
        %v478 = vmul.f32 %v439, %v447
        %v479 = vmul.f32 %v440, %v447
        %v480 = vmul.f32 %v441, %v447
        %v481 = vld [vmem:[%s2] sm:$0x1]
        %v483 = vlaneseq
        %v484 = vshrl.u32 %v483, 7
        %v485 = vsub.s32 0, %v484
        %v486 = vrot.slane %v481, %v485
        %v488 = vadd.f32 %v449, %v486
        %v489 = vadd.f32 %v450, %v486
        %v490 = vadd.f32 %v451, %v486
        %v491 = vadd.f32 %v452, %v486
        %v492 = vadd.f32 %v453, %v486
        %v493 = vadd.f32 %v454, %v486
        %v494 = vadd.f32 %v455, %v486
        %v495 = vadd.f32 %v456, %v486
        %v496 = vadd.f32 %v457, %v486
        %v497 = vadd.f32 %v458, %v486
        %v498 = vadd.f32 %v459, %v486
        %v499 = vadd.f32 %v460, %v486
        %v500 = vadd.f32 %v461, %v486
        %v501 = vadd.f32 %v462, %v486
        %v502 = vadd.f32 %v463, %v486
        %v503 = vadd.f32 %v464, %v486
        %v504 = vadd.f32 %v465, %v486
        %v505 = vadd.f32 %v466, %v486
        %v506 = vadd.f32 %v467, %v486
        %v507 = vadd.f32 %v468, %v486
        %v508 = vadd.f32 %v469, %v486
        %v509 = vadd.f32 %v470, %v486
        %v510 = vadd.f32 %v471, %v486
        %v511 = vadd.f32 %v472, %v486
        %v512 = vadd.f32 %v473, %v486
        %v513 = vadd.f32 %v474, %v486
        %v514 = vadd.f32 %v475, %v486
        %v515 = vadd.f32 %v476, %v486
        %v516 = vadd.f32 %v477, %v486
        %v517 = vadd.f32 %v478, %v486
        %v518 = vadd.f32 %v479, %v486
        %v519 = vadd.f32 %v480, %v486
        %v520 = vmax.f32 %v488, 0.0
        %v521 = vmax.f32 %v489, 0.0
        %v522 = vmax.f32 %v490, 0.0
        %v523 = vmax.f32 %v491, 0.0
        %v524 = vmax.f32 %v492, 0.0
        %v525 = vmax.f32 %v493, 0.0
        %v526 = vmax.f32 %v494, 0.0
        %v527 = vmax.f32 %v495, 0.0
        %v528 = vmax.f32 %v496, 0.0
        %v529 = vmax.f32 %v497, 0.0
        %v530 = vmax.f32 %v498, 0.0
        %v531 = vmax.f32 %v499, 0.0
        %v532 = vmax.f32 %v500, 0.0
        %v533 = vmax.f32 %v501, 0.0
        %v534 = vmax.f32 %v502, 0.0
        %v535 = vmax.f32 %v503, 0.0
        %v536 = vmax.f32 %v504, 0.0
        %v537 = vmax.f32 %v505, 0.0
        %v538 = vmax.f32 %v506, 0.0
        %v539 = vmax.f32 %v507, 0.0
        %v540 = vmax.f32 %v508, 0.0
        %v541 = vmax.f32 %v509, 0.0
        %v542 = vmax.f32 %v510, 0.0
        %v543 = vmax.f32 %v511, 0.0
        %v544 = vmax.f32 %v512, 0.0
        %v545 = vmax.f32 %v513, 0.0
        %v546 = vmax.f32 %v514, 0.0
        %v547 = vmax.f32 %v515, 0.0
        %v548 = vmax.f32 %v516, 0.0
        %v549 = vmax.f32 %v517, 0.0
        %v550 = vmax.f32 %v518, 0.0
        %v551 = vmax.f32 %v519, 0.0
        %v552 = vld [vmem:[%s374] sm:$0xff]
        %v553 = vld [vmem:[%s374 + $0x8] sm:$0xff]
        %v554 = vld [vmem:[%s374 + $0x10] sm:$0xff]
        %v555 = vld [vmem:[%s374 + $0x18] sm:$0xff]
        %v556 = vld [vmem:[%s374 + $0x20] sm:$0xff]
        %v557 = vld [vmem:[%s374 + $0x28] sm:$0xff]
        %v558 = vld [vmem:[%s374 + $0x30] sm:$0xff]
        %v559 = vld [vmem:[%s374 + $0x38] sm:$0xff]
        %v560 = vld [vmem:[%s374 + $0x40] sm:$0xff]
        %v561 = vld [vmem:[%s374 + $0x48] sm:$0xff]
        %v562 = vld [vmem:[%s374 + $0x50] sm:$0xff]
        %v563 = vld [vmem:[%s374 + $0x58] sm:$0xff]
        %v564 = vld [vmem:[%s374 + $0x60] sm:$0xff]
        %v565 = vld [vmem:[%s374 + $0x68] sm:$0xff]
        %v566 = vld [vmem:[%s374 + $0x70] sm:$0xff]
        %v567 = vld [vmem:[%s374 + $0x78] sm:$0xff]
        %v568 = vld [vmem:[%s374 + $0x80] sm:$0xff]
        %v569 = vld [vmem:[%s374 + $0x88] sm:$0xff]
        %v570 = vld [vmem:[%s374 + $0x90] sm:$0xff]
        %v571 = vld [vmem:[%s374 + $0x98] sm:$0xff]
        %v572 = vld [vmem:[%s374 + $0xa0] sm:$0xff]
        %v573 = vld [vmem:[%s374 + $0xa8] sm:$0xff]
        %v574 = vld [vmem:[%s374 + $0xb0] sm:$0xff]
        %v575 = vld [vmem:[%s374 + $0xb8] sm:$0xff]
        %v576 = vld [vmem:[%s374 + $0xc0] sm:$0xff]
        %v577 = vld [vmem:[%s374 + $0xc8] sm:$0xff]
        %v578 = vld [vmem:[%s374 + $0xd0] sm:$0xff]
        %v579 = vld [vmem:[%s374 + $0xd8] sm:$0xff]
        %v580 = vld [vmem:[%s374 + $0xe0] sm:$0xff]
        %v581 = vld [vmem:[%s374 + $0xe8] sm:$0xff]
        %v582 = vld [vmem:[%s374 + $0xf0] sm:$0xff]
        %v583 = vld [vmem:[%s374 + $0xf8] sm:$0xff]
        %v584 = vld [vmem:[%s5] sm:$0x1]
        %v586 = vlaneseq
        %v587 = vshrl.u32 %v586, 7
        %v588 = vsub.s32 0, %v587
        %v589 = vrot.slane %v584, %v588
        %v591 = vmul.f32 %v552, %v589
        %v592 = vmul.f32 %v553, %v589
        %v593 = vmul.f32 %v554, %v589
        %v594 = vmul.f32 %v555, %v589
        %v595 = vmul.f32 %v556, %v589
        %v596 = vmul.f32 %v557, %v589
        %v597 = vmul.f32 %v558, %v589
        %v598 = vmul.f32 %v559, %v589
        %v599 = vmul.f32 %v560, %v589
        %v600 = vmul.f32 %v561, %v589
        %v601 = vmul.f32 %v562, %v589
        %v602 = vmul.f32 %v563, %v589
        %v603 = vmul.f32 %v564, %v589
        %v604 = vmul.f32 %v565, %v589
        %v605 = vmul.f32 %v566, %v589
        %v606 = vmul.f32 %v567, %v589
        %v607 = vmul.f32 %v568, %v589
        %v608 = vmul.f32 %v569, %v589
        %v609 = vmul.f32 %v570, %v589
        %v610 = vmul.f32 %v571, %v589
        %v611 = vmul.f32 %v572, %v589
        %v612 = vmul.f32 %v573, %v589
        %v613 = vmul.f32 %v574, %v589
        %v614 = vmul.f32 %v575, %v589
        %v615 = vmul.f32 %v576, %v589
        %v616 = vmul.f32 %v577, %v589
        %v617 = vmul.f32 %v578, %v589
        %v618 = vmul.f32 %v579, %v589
        %v619 = vmul.f32 %v580, %v589
        %v620 = vmul.f32 %v581, %v589
        %v621 = vmul.f32 %v582, %v589
        %v622 = vmul.f32 %v583, %v589
        %v623 = vld [vmem:[%s6] sm:$0x1]
        %v625 = vlaneseq
        %v626 = vshrl.u32 %v625, 7
        %v627 = vsub.s32 0, %v626
        %v628 = vrot.slane %v623, %v627
        %v630 = vadd.f32 %v591, %v628
        %v631 = vadd.f32 %v592, %v628
        %v632 = vadd.f32 %v593, %v628
        %v633 = vadd.f32 %v594, %v628
        %v634 = vadd.f32 %v595, %v628
        %v635 = vadd.f32 %v596, %v628
        %v636 = vadd.f32 %v597, %v628
        %v637 = vadd.f32 %v598, %v628
        %v638 = vadd.f32 %v599, %v628
        %v639 = vadd.f32 %v600, %v628
        %v640 = vadd.f32 %v601, %v628
        %v641 = vadd.f32 %v602, %v628
        %v642 = vadd.f32 %v603, %v628
        %v643 = vadd.f32 %v604, %v628
        %v644 = vadd.f32 %v605, %v628
        %v645 = vadd.f32 %v606, %v628
        %v646 = vadd.f32 %v607, %v628
        %v647 = vadd.f32 %v608, %v628
        %v648 = vadd.f32 %v609, %v628
        %v649 = vadd.f32 %v610, %v628
        %v650 = vadd.f32 %v611, %v628
        %v651 = vadd.f32 %v612, %v628
        %v652 = vadd.f32 %v613, %v628
        %v653 = vadd.f32 %v614, %v628
        %v654 = vadd.f32 %v615, %v628
        %v655 = vadd.f32 %v616, %v628
        %v656 = vadd.f32 %v617, %v628
        %v657 = vadd.f32 %v618, %v628
        %v658 = vadd.f32 %v619, %v628
        %v659 = vadd.f32 %v620, %v628
        %v660 = vadd.f32 %v621, %v628
        %v661 = vadd.f32 %v622, %v628
        %v662 = vmax.f32 %v630, 0.0
        %v663 = vmax.f32 %v631, 0.0
        %v664 = vmax.f32 %v632, 0.0
        %v665 = vmax.f32 %v633, 0.0
        %v666 = vmax.f32 %v634, 0.0
        %v667 = vmax.f32 %v635, 0.0
        %v668 = vmax.f32 %v636, 0.0
        %v669 = vmax.f32 %v637, 0.0
        %v670 = vmax.f32 %v638, 0.0
        %v671 = vmax.f32 %v639, 0.0
        %v672 = vmax.f32 %v640, 0.0
        %v673 = vmax.f32 %v641, 0.0
        %v674 = vmax.f32 %v642, 0.0
        %v675 = vmax.f32 %v643, 0.0
        %v676 = vmax.f32 %v644, 0.0
        %v677 = vmax.f32 %v645, 0.0
        %v678 = vmax.f32 %v646, 0.0
        %v679 = vmax.f32 %v647, 0.0
        %v680 = vmax.f32 %v648, 0.0
        %v681 = vmax.f32 %v649, 0.0
        %v682 = vmax.f32 %v650, 0.0
        %v683 = vmax.f32 %v651, 0.0
        %v684 = vmax.f32 %v652, 0.0
        %v685 = vmax.f32 %v653, 0.0
        %v686 = vmax.f32 %v654, 0.0
        %v687 = vmax.f32 %v655, 0.0
        %v688 = vmax.f32 %v656, 0.0
        %v689 = vmax.f32 %v657, 0.0
        %v690 = vmax.f32 %v658, 0.0
        %v691 = vmax.f32 %v659, 0.0
        %v692 = vmax.f32 %v660, 0.0
        %v693 = vmax.f32 %v661, 0.0
        %v694 = vpack.c.bf16 %v521, %v520
        %v695 = vpack.c.bf16 %v523, %v522
        %v696 = vpack.c.bf16 %v525, %v524
        %v697 = vpack.c.bf16 %v527, %v526
        %v698 = vpack.c.bf16 %v529, %v528
        %v699 = vpack.c.bf16 %v531, %v530
        %v700 = vpack.c.bf16 %v533, %v532
        %v701 = vpack.c.bf16 %v535, %v534
        %v702 = vpack.c.bf16 %v537, %v536
        %v703 = vpack.c.bf16 %v539, %v538
        %v704 = vpack.c.bf16 %v541, %v540
        %v705 = vpack.c.bf16 %v543, %v542
        %v706 = vpack.c.bf16 %v545, %v544
        %v707 = vpack.c.bf16 %v547, %v546
        %v708 = vpack.c.bf16 %v549, %v548
        %v709 = vpack.c.bf16 %v551, %v550
        %v710 = vld [vmem:[%s3] sm:$0xf]
        %v711 = vpack.c.bf16 %v663, %v662
        %v712 = vpack.c.bf16 %v665, %v664
        %v713 = vpack.c.bf16 %v667, %v666
        %v714 = vpack.c.bf16 %v669, %v668
        %v715 = vpack.c.bf16 %v671, %v670
        %v716 = vpack.c.bf16 %v673, %v672
        %v717 = vpack.c.bf16 %v675, %v674
        %v718 = vpack.c.bf16 %v677, %v676
        %v719 = vpack.c.bf16 %v679, %v678
        %v720 = vpack.c.bf16 %v681, %v680
        %v721 = vpack.c.bf16 %v683, %v682
        %v722 = vpack.c.bf16 %v685, %v684
        %v723 = vpack.c.bf16 %v687, %v686
        %v724 = vpack.c.bf16 %v689, %v688
        %v725 = vpack.c.bf16 %v691, %v690
        %v726 = vpack.c.bf16 %v693, %v692
        %v727 = vld [vmem:[%s7] sm:$0xf]
        %v728 = vld [vmem:[%s7 + $0x4] sm:$0xf]
        %v731 = vunpack.c.l.b16 %v727
        %v732 = vunpack.c.l.b16 %v728
        %v733 = vpack.c.b16 %v732, %v731
        %vm735 = vcmask 130048
        %v737 = vsel %vm735, %v711, 0
        %v740 = vsel %vm735, %v712, 0
        %v743 = vsel %vm735, %v713, 0
        %v746 = vsel %vm735, %v714, 0
        %v749 = vsel %vm735, %v715, 0
        %v752 = vsel %vm735, %v716, 0
        %v755 = vsel %vm735, %v717, 0
        %v758 = vsel %vm735, %v718, 0
        %v761 = vsel %vm735, %v719, 0
        %v764 = vsel %vm735, %v720, 0
        %v767 = vsel %vm735, %v721, 0
        %v770 = vsel %vm735, %v722, 0
        %v773 = vsel %vm735, %v723, 0
        %v776 = vsel %vm735, %v724, 0
        %v779 = vsel %vm735, %v725, 0
        %v782 = vsel %vm735, %v726, 0
        %784 = vmatprep.subr.bf16.mxu0 0
        %785 = vmatpush1.bf16.msra.mxu0 %v733
        %786 = vmatprep.subr.bf16.mxu0 0
        %787 = vmatpush1.bf16.msra.mxu0 0
        %788 = vmatprep.subr.bf16.mxu0 0
        %789 = vmatpush1.bf16.msra.mxu0 0
        %790 = vmatprep.subr.bf16.mxu0 0
        %791 = vmatpush1.bf16.msra.mxu0 0
        %792 = vmatprep.subr.bf16.mxu0 0
        %793 = vmatpush1.bf16.msra.mxu0 0
        %794 = vmatprep.subr.bf16.mxu0 0
        %795 = vmatpush1.bf16.msra.mxu0 0
        %796 = vmatprep.subr.bf16.mxu0 0
        %797 = vmatpush1.bf16.msra.mxu0 0
        %798 = vmatprep.subr.bf16.mxu0 0
        %799 = vmatpush1.bf16.msra.mxu0 0
        %800 = vmatprep.subr.bf16.mxu0 0
        %801 = vmatpush1.bf16.msra.mxu0 0
        %802 = vmatprep.subr.bf16.mxu0 0
        %803 = vmatpush1.bf16.msra.mxu0 0
        %804 = vmatprep.subr.bf16.mxu0 0
        %805 = vmatpush1.bf16.msra.mxu0 0
        %806 = vmatprep.subr.bf16.mxu0 0
        %807 = vmatpush1.bf16.msra.mxu0 0
        %808 = vmatprep.subr.bf16.mxu0 0
        %809 = vmatpush1.bf16.msra.mxu0 0
        %810 = vmatprep.subr.bf16.mxu0 0
        %811 = vmatpush1.bf16.msra.mxu0 0
        %812 = vmatprep.subr.bf16.mxu0 0
        %813 = vmatpush1.bf16.msra.mxu0 0
        %814 = vmatprep.subr.bf16.mxu0 0
        %815 = vmatpush1.bf16.msra.mxu0 0
        %816 = vmatprep.mubr.bf16.mxu0 0
        %817 = vmatmul.mubr.bf16.gmra.mrb[0].mxu0 %v737
        %v818 = vpop.f32.mrb[0].mxu0
        %v819 = vadd.f32 0.0, %v818
        %v820 = vpop.f32.mrb[0].mxu0
        %v821 = vpop.f32.mrb[0].mxu0
        %v822 = vadd.f32 0.0, %v821
        %v823 = vpop.f32.mrb[0].mxu0
        %824 = vmatprep.mubr.bf16.mxu0 0
        %825 = vmatmul.mubr.bf16.gmra.mrb[0].mxu0 %v740
        %v826 = vpop.f32.mrb[0].mxu0
        %v827 = vadd.f32 0.0, %v826
        %v828 = vpop.f32.mrb[0].mxu0
        %v829 = vpop.f32.mrb[0].mxu0
        %v830 = vadd.f32 0.0, %v829
        %v831 = vpop.f32.mrb[0].mxu0
        %832 = vmatprep.mubr.bf16.mxu0 0
        %833 = vmatmul.mubr.bf16.gmra.mrb[0].mxu0 %v743
        %v834 = vpop.f32.mrb[0].mxu0
        %v835 = vadd.f32 0.0, %v834
        %v836 = vpop.f32.mrb[0].mxu0
        %v837 = vpop.f32.mrb[0].mxu0
        %v838 = vadd.f32 0.0, %v837
        %v839 = vpop.f32.mrb[0].mxu0
        %840 = vmatprep.mubr.bf16.mxu0 0
        %841 = vmatmul.mubr.bf16.gmra.mrb[0].mxu0 %v746
        %v842 = vpop.f32.mrb[0].mxu0
        %v843 = vadd.f32 0.0, %v842
        %v844 = vpop.f32.mrb[0].mxu0
        %v845 = vpop.f32.mrb[0].mxu0
        %v846 = vadd.f32 0.0, %v845
        %v847 = vpop.f32.mrb[0].mxu0
        %848 = vmatprep.mubr.bf16.mxu0 0
        %849 = vmatmul.mubr.bf16.gmra.mrb[0].mxu0 %v749
        %v850 = vpop.f32.mrb[0].mxu0
        %v851 = vadd.f32 0.0, %v850
        %v852 = vpop.f32.mrb[0].mxu0
        %v853 = vpop.f32.mrb[0].mxu0
        %v854 = vadd.f32 0.0, %v853
        %v855 = vpop.f32.mrb[0].mxu0
        %856 = vmatprep.mubr.bf16.mxu0 0
        %857 = vmatmul.mubr.bf16.gmra.mrb[0].mxu0 %v752
        %v858 = vpop.f32.mrb[0].mxu0
        %v859 = vadd.f32 0.0, %v858
        %v860 = vpop.f32.mrb[0].mxu0
        %v861 = vpop.f32.mrb[0].mxu0
        %v862 = vadd.f32 0.0, %v861
        %v863 = vpop.f32.mrb[0].mxu0
        %864 = vmatprep.mubr.bf16.mxu0 0
        %865 = vmatmul.mubr.bf16.gmra.mrb[0].mxu0 %v755
        %v866 = vpop.f32.mrb[0].mxu0
        %v867 = vadd.f32 0.0, %v866
        %v868 = vpop.f32.mrb[0].mxu0
        %v869 = vpop.f32.mrb[0].mxu0
        %v870 = vadd.f32 0.0, %v869
        %v871 = vpop.f32.mrb[0].mxu0
        %872 = vmatprep.mubr.bf16.mxu0 0
        %873 = vmatmul.mubr.bf16.gmra.mrb[0].mxu0 %v758
        %v874 = vpop.f32.mrb[0].mxu0
        %v875 = vadd.f32 0.0, %v874
        %v876 = vpop.f32.mrb[0].mxu0
        %v877 = vpop.f32.mrb[0].mxu0
        %v878 = vadd.f32 0.0, %v877
        %v879 = vpop.f32.mrb[0].mxu0
        %880 = vmatprep.mubr.bf16.mxu0 0
        %881 = vmatmul.mubr.bf16.gmra.mrb[0].mxu0 %v761
        %v882 = vpop.f32.mrb[0].mxu0
        %v883 = vadd.f32 0.0, %v882
        %v884 = vpop.f32.mrb[0].mxu0
        %v885 = vpop.f32.mrb[0].mxu0
        %v886 = vadd.f32 0.0, %v885
        %v887 = vpop.f32.mrb[0].mxu0
        %888 = vmatprep.mubr.bf16.mxu0 0
        %889 = vmatmul.mubr.bf16.gmra.mrb[0].mxu0 %v764
        %v890 = vpop.f32.mrb[0].mxu0
        %v891 = vadd.f32 0.0, %v890
        %v892 = vpop.f32.mrb[0].mxu0
        %v893 = vpop.f32.mrb[0].mxu0
        %v894 = vadd.f32 0.0, %v893
        %v895 = vpop.f32.mrb[0].mxu0
        %896 = vmatprep.mubr.bf16.mxu0 0
        %897 = vmatmul.mubr.bf16.gmra.mrb[0].mxu0 %v767
        %v898 = vpop.f32.mrb[0].mxu0
        %v899 = vadd.f32 0.0, %v898
        %v900 = vpop.f32.mrb[0].mxu0
        %v901 = vpop.f32.mrb[0].mxu0
        %v902 = vadd.f32 0.0, %v901
        %v903 = vpop.f32.mrb[0].mxu0
        %904 = vmatprep.mubr.bf16.mxu0 0
        %905 = vmatmul.mubr.bf16.gmra.mrb[0].mxu0 %v770
        %v906 = vpop.f32.mrb[0].mxu0
        %v907 = vadd.f32 0.0, %v906
        %v908 = vpop.f32.mrb[0].mxu0
        %v909 = vpop.f32.mrb[0].mxu0
        %v910 = vadd.f32 0.0, %v909
        %v911 = vpop.f32.mrb[0].mxu0
        %912 = vmatprep.mubr.bf16.mxu0 0
        %913 = vmatmul.mubr.bf16.gmra.mrb[0].mxu0 %v773
        %v914 = vpop.f32.mrb[0].mxu0
        %v915 = vadd.f32 0.0, %v914
        %v916 = vpop.f32.mrb[0].mxu0
        %v917 = vpop.f32.mrb[0].mxu0
        %v918 = vadd.f32 0.0, %v917
        %v919 = vpop.f32.mrb[0].mxu0
        %920 = vmatprep.mubr.bf16.mxu0 0
        %921 = vmatmul.mubr.bf16.gmra.mrb[0].mxu0 %v776
        %v922 = vpop.f32.mrb[0].mxu0
        %v923 = vadd.f32 0.0, %v922
        %v924 = vpop.f32.mrb[0].mxu0
        %v925 = vpop.f32.mrb[0].mxu0
        %v926 = vadd.f32 0.0, %v925
        %v927 = vpop.f32.mrb[0].mxu0
        %928 = vmatprep.mubr.bf16.mxu0 0
        %929 = vmatmul.mubr.bf16.gmra.mrb[0].mxu0 %v779
        %v930 = vpop.f32.mrb[0].mxu0
        %v931 = vadd.f32 0.0, %v930
        %v932 = vpop.f32.mrb[0].mxu0
        %v933 = vpop.f32.mrb[0].mxu0
        %v934 = vadd.f32 0.0, %v933
        %v935 = vpop.f32.mrb[0].mxu0
        %936 = vmatprep.mubr.bf16.mxu0 0
        %937 = vmatmul.mubr.bf16.gmra.mrb[0].mxu0 %v782
        %v938 = vpop.f32.mrb[0].mxu0
        %v939 = vadd.f32 0.0, %v938
        %v940 = vpop.f32.mrb[0].mxu0
        %v941 = vpop.f32.mrb[0].mxu0
        %v942 = vadd.f32 0.0, %v941
        %v943 = vpop.f32.mrb[0].mxu0
        %944 = vdwg.mxu0
        %vm945 = vcmask 64512
        %v947 = vsel %vm945, %v694, 0
        %v950 = vsel %vm945, %v695, 0
        %v953 = vsel %vm945, %v696, 0
        %v956 = vsel %vm945, %v697, 0
        %v959 = vsel %vm945, %v698, 0
        %v962 = vsel %vm945, %v699, 0
        %v965 = vsel %vm945, %v700, 0
        %v968 = vsel %vm945, %v701, 0
        %v971 = vsel %vm945, %v702, 0
        %v974 = vsel %vm945, %v703, 0
        %v977 = vsel %vm945, %v704, 0
        %v980 = vsel %vm945, %v705, 0
        %v983 = vsel %vm945, %v706, 0
        %v986 = vsel %vm945, %v707, 0
        %v989 = vsel %vm945, %v708, 0
        %v992 = vsel %vm945, %v709, 0
        %vm994 = vcmask 1043456
        %v996 = vsel %vm994, %v710, 0
        %998 = vmatprep.subr.bf16.mxu0 0
        %999 = vmatpush1.bf16.msra.mxu0 %v996
        %1000 = vmatprep.subr.bf16.mxu0 0
        %1001 = vmatpush1.bf16.msra.mxu0 0
        %1002 = vmatprep.subr.bf16.mxu0 0
        %1003 = vmatpush1.bf16.msra.mxu0 0
        %1004 = vmatprep.subr.bf16.mxu0 0
        %1005 = vmatpush1.bf16.msra.mxu0 0
        %1006 = vmatprep.subr.bf16.mxu0 0
        %1007 = vmatpush1.bf16.msra.mxu0 0
        %1008 = vmatprep.subr.bf16.mxu0 0
        %1009 = vmatpush1.bf16.msra.mxu0 0
        %1010 = vmatprep.subr.bf16.mxu0 0
        %1011 = vmatpush1.bf16.msra.mxu0 0
        %1012 = vmatprep.subr.bf16.mxu0 0
        %1013 = vmatpush1.bf16.msra.mxu0 0
        %1014 = vmatprep.subr.bf16.mxu0 0
        %1015 = vmatpush1.bf16.msra.mxu0 0
        %1016 = vmatprep.subr.bf16.mxu0 0
        %1017 = vmatpush1.bf16.msra.mxu0 0
        %1018 = vmatprep.subr.bf16.mxu0 0
        %1019 = vmatpush1.bf16.msra.mxu0 0
        %1020 = vmatprep.subr.bf16.mxu0 0
        %1021 = vmatpush1.bf16.msra.mxu0 0
        %1022 = vmatprep.subr.bf16.mxu0 0
        %1023 = vmatpush1.bf16.msra.mxu0 0
        %1024 = vmatprep.subr.bf16.mxu0 0
        %1025 = vmatpush1.bf16.msra.mxu0 0
        %1026 = vmatprep.subr.bf16.mxu0 0
        %1027 = vmatpush1.bf16.msra.mxu0 0
        %1028 = vmatprep.subr.bf16.mxu0 0
        %1029 = vmatpush1.bf16.msra.mxu0 0
        %1030 = vmatprep.mubr.bf16.mxu0 0
        %1031 = vmatmul.mubr.bf16.gmra.mrb[0].mxu0 %v947
        %v1032 = vpop.f32.mrb[0].mxu0
        %v1033 = vadd.f32 %v819, %v1032
        %v1034 = vpop.f32.mrb[0].mxu0
        %v1035 = vpop.f32.mrb[0].mxu0
        %v1036 = vadd.f32 %v822, %v1035
        %v1037 = vpop.f32.mrb[0].mxu0
        %1038 = vmatprep.mubr.bf16.mxu0 0
        %1039 = vmatmul.mubr.bf16.gmra.mrb[0].mxu0 %v950
        %v1040 = vpop.f32.mrb[0].mxu0
        %v1041 = vadd.f32 %v827, %v1040
        %v1042 = vpop.f32.mrb[0].mxu0
        %v1043 = vpop.f32.mrb[0].mxu0
        %v1044 = vadd.f32 %v830, %v1043
        %v1045 = vpop.f32.mrb[0].mxu0
        %1046 = vmatprep.mubr.bf16.mxu0 0
        %1047 = vmatmul.mubr.bf16.gmra.mrb[0].mxu0 %v953
        %v1048 = vpop.f32.mrb[0].mxu0
        %v1049 = vadd.f32 %v835, %v1048
        %v1050 = vpop.f32.mrb[0].mxu0
        %v1051 = vpop.f32.mrb[0].mxu0
        %v1052 = vadd.f32 %v838, %v1051
        %v1053 = vpop.f32.mrb[0].mxu0
        %1054 = vmatprep.mubr.bf16.mxu0 0
        %1055 = vmatmul.mubr.bf16.gmra.mrb[0].mxu0 %v956
        %v1056 = vpop.f32.mrb[0].mxu0
        %v1057 = vadd.f32 %v843, %v1056
        %v1058 = vpop.f32.mrb[0].mxu0
        %v1059 = vpop.f32.mrb[0].mxu0
        %v1060 = vadd.f32 %v846, %v1059
        %v1061 = vpop.f32.mrb[0].mxu0
        %1062 = vmatprep.mubr.bf16.mxu0 0
        %1063 = vmatmul.mubr.bf16.gmra.mrb[0].mxu0 %v959
        %v1064 = vpop.f32.mrb[0].mxu0
        %v1065 = vadd.f32 %v851, %v1064
        %v1066 = vpop.f32.mrb[0].mxu0
        %v1067 = vpop.f32.mrb[0].mxu0
        %v1068 = vadd.f32 %v854, %v1067
        %v1069 = vpop.f32.mrb[0].mxu0
        %1070 = vmatprep.mubr.bf16.mxu0 0
        %1071 = vmatmul.mubr.bf16.gmra.mrb[0].mxu0 %v962
        %v1072 = vpop.f32.mrb[0].mxu0
        %v1073 = vadd.f32 %v859, %v1072
        %v1074 = vpop.f32.mrb[0].mxu0
        %v1075 = vpop.f32.mrb[0].mxu0
        %v1076 = vadd.f32 %v862, %v1075
        %v1077 = vpop.f32.mrb[0].mxu0
        %1078 = vmatprep.mubr.bf16.mxu0 0
        %1079 = vmatmul.mubr.bf16.gmra.mrb[0].mxu0 %v965
        %v1080 = vpop.f32.mrb[0].mxu0
        %v1081 = vadd.f32 %v867, %v1080
        %v1082 = vpop.f32.mrb[0].mxu0
        %v1083 = vpop.f32.mrb[0].mxu0
        %v1084 = vadd.f32 %v870, %v1083
        %v1085 = vpop.f32.mrb[0].mxu0
        %1086 = vmatprep.mubr.bf16.mxu0 0
        %1087 = vmatmul.mubr.bf16.gmra.mrb[0].mxu0 %v968
        %v1088 = vpop.f32.mrb[0].mxu0
        %v1089 = vadd.f32 %v875, %v1088
        %v1090 = vpop.f32.mrb[0].mxu0
        %v1091 = vpop.f32.mrb[0].mxu0
        %v1092 = vadd.f32 %v878, %v1091
        %v1093 = vpop.f32.mrb[0].mxu0
        %1094 = vmatprep.mubr.bf16.mxu0 0
        %1095 = vmatmul.mubr.bf16.gmra.mrb[0].mxu0 %v971
        %v1096 = vpop.f32.mrb[0].mxu0
        %v1097 = vadd.f32 %v883, %v1096
        %v1098 = vpop.f32.mrb[0].mxu0
        %v1099 = vpop.f32.mrb[0].mxu0
        %v1100 = vadd.f32 %v886, %v1099
        %v1101 = vpop.f32.mrb[0].mxu0
        %1102 = vmatprep.mubr.bf16.mxu0 0
        %1103 = vmatmul.mubr.bf16.gmra.mrb[0].mxu0 %v974
        %v1104 = vpop.f32.mrb[0].mxu0
        %v1105 = vadd.f32 %v891, %v1104
        %v1106 = vpop.f32.mrb[0].mxu0
        %v1107 = vpop.f32.mrb[0].mxu0
        %v1108 = vadd.f32 %v894, %v1107
        %v1109 = vpop.f32.mrb[0].mxu0
        %1110 = vmatprep.mubr.bf16.mxu0 0
        %1111 = vmatmul.mubr.bf16.gmra.mrb[0].mxu0 %v977
        %v1112 = vpop.f32.mrb[0].mxu0
        %v1113 = vadd.f32 %v899, %v1112
        %v1114 = vpop.f32.mrb[0].mxu0
        %v1115 = vpop.f32.mrb[0].mxu0
        %v1116 = vadd.f32 %v902, %v1115
        %v1117 = vpop.f32.mrb[0].mxu0
        %1118 = vmatprep.mubr.bf16.mxu0 0
        %1119 = vmatmul.mubr.bf16.gmra.mrb[0].mxu0 %v980
        %v1120 = vpop.f32.mrb[0].mxu0
        %v1121 = vadd.f32 %v907, %v1120
        %v1122 = vpop.f32.mrb[0].mxu0
        %v1123 = vpop.f32.mrb[0].mxu0
        %v1124 = vadd.f32 %v910, %v1123
        %v1125 = vpop.f32.mrb[0].mxu0
        %1126 = vmatprep.mubr.bf16.mxu0 0
        %1127 = vmatmul.mubr.bf16.gmra.mrb[0].mxu0 %v983
        %v1128 = vpop.f32.mrb[0].mxu0
        %v1129 = vadd.f32 %v915, %v1128
        %v1130 = vpop.f32.mrb[0].mxu0
        %v1131 = vpop.f32.mrb[0].mxu0
        %v1132 = vadd.f32 %v918, %v1131
        %v1133 = vpop.f32.mrb[0].mxu0
        %1134 = vmatprep.mubr.bf16.mxu0 0
        %1135 = vmatmul.mubr.bf16.gmra.mrb[0].mxu0 %v986
        %v1136 = vpop.f32.mrb[0].mxu0
        %v1137 = vadd.f32 %v923, %v1136
        %v1138 = vpop.f32.mrb[0].mxu0
        %v1139 = vpop.f32.mrb[0].mxu0
        %v1140 = vadd.f32 %v926, %v1139
        %v1141 = vpop.f32.mrb[0].mxu0
        %1142 = vmatprep.mubr.bf16.mxu0 0
        %1143 = vmatmul.mubr.bf16.gmra.mrb[0].mxu0 %v989
        %v1144 = vpop.f32.mrb[0].mxu0
        %v1145 = vadd.f32 %v931, %v1144
        %v1146 = vpop.f32.mrb[0].mxu0
        %v1147 = vpop.f32.mrb[0].mxu0
        %v1148 = vadd.f32 %v934, %v1147
        %v1149 = vpop.f32.mrb[0].mxu0
        %1150 = vmatprep.mubr.bf16.mxu0 0
        %1151 = vmatmul.mubr.bf16.gmra.mrb[0].mxu0 %v992
        %v1152 = vpop.f32.mrb[0].mxu0
        %v1153 = vadd.f32 %v939, %v1152
        %v1154 = vpop.f32.mrb[0].mxu0
        %v1155 = vpop.f32.mrb[0].mxu0
        %v1156 = vadd.f32 %v942, %v1155
        %v1157 = vpop.f32.mrb[0].mxu0
        %1158 = vdwg.mxu0
        %vm1159 = vcmask 261120
        %1160 = vst.msk [vmem:[%s353] sm:$0xff] %vm1159, %v1033
        %1161 = vst.msk [vmem:[%s353 + $0x8] sm:$0xff] %vm1159, %v1036
        %1162 = vst.msk [vmem:[%s353 + $0x10] sm:$0xff] %vm1159, %v1041
        %1163 = vst.msk [vmem:[%s353 + $0x18] sm:$0xff] %vm1159, %v1044
        %1164 = vst.msk [vmem:[%s353 + $0x20] sm:$0xff] %vm1159, %v1049
        %1165 = vst.msk [vmem:[%s353 + $0x28] sm:$0xff] %vm1159, %v1052
        %1166 = vst.msk [vmem:[%s353 + $0x30] sm:$0xff] %vm1159, %v1057
        %1167 = vst.msk [vmem:[%s353 + $0x38] sm:$0xff] %vm1159, %v1060
        %1168 = vst.msk [vmem:[%s353 + $0x40] sm:$0xff] %vm1159, %v1065
        %1169 = vst.msk [vmem:[%s353 + $0x48] sm:$0xff] %vm1159, %v1068
        %1170 = vst.msk [vmem:[%s353 + $0x50] sm:$0xff] %vm1159, %v1073
        %1171 = vst.msk [vmem:[%s353 + $0x58] sm:$0xff] %vm1159, %v1076
        %1172 = vst.msk [vmem:[%s353 + $0x60] sm:$0xff] %vm1159, %v1081
        %1173 = vst.msk [vmem:[%s353 + $0x68] sm:$0xff] %vm1159, %v1084
        %1174 = vst.msk [vmem:[%s353 + $0x70] sm:$0xff] %vm1159, %v1089
        %1175 = vst.msk [vmem:[%s353 + $0x78] sm:$0xff] %vm1159, %v1092
        %1176 = vst.msk [vmem:[%s353 + $0x80] sm:$0xff] %vm1159, %v1097
        %1177 = vst.msk [vmem:[%s353 + $0x88] sm:$0xff] %vm1159, %v1100
        %1178 = vst.msk [vmem:[%s353 + $0x90] sm:$0xff] %vm1159, %v1105
        %1179 = vst.msk [vmem:[%s353 + $0x98] sm:$0xff] %vm1159, %v1108
        %1180 = vst.msk [vmem:[%s353 + $0xa0] sm:$0xff] %vm1159, %v1113
        %1181 = vst.msk [vmem:[%s353 + $0xa8] sm:$0xff] %vm1159, %v1116
        %1182 = vst.msk [vmem:[%s353 + $0xb0] sm:$0xff] %vm1159, %v1121
        %1183 = vst.msk [vmem:[%s353 + $0xb8] sm:$0xff] %vm1159, %v1124
        %1184 = vst.msk [vmem:[%s353 + $0xc0] sm:$0xff] %vm1159, %v1129
        %1185 = vst.msk [vmem:[%s353 + $0xc8] sm:$0xff] %vm1159, %v1132
        %1186 = vst.msk [vmem:[%s353 + $0xd0] sm:$0xff] %vm1159, %v1137
        %1187 = vst.msk [vmem:[%s353 + $0xd8] sm:$0xff] %vm1159, %v1140
        %1188 = vst.msk [vmem:[%s353 + $0xe0] sm:$0xff] %vm1159, %v1145
        %1189 = vst.msk [vmem:[%s353 + $0xe8] sm:$0xff] %vm1159, %v1148
        %1190 = vst.msk [vmem:[%s353 + $0xf0] sm:$0xff] %vm1159, %v1153
        %1191 = vst.msk [vmem:[%s353 + $0xf8] sm:$0xff] %vm1159, %v1156
        %s1192 = sand.u32 %s226, 1
        %s1193 = scalar_lea.sflag [#allocation3], %s1192
        %s1194 = sand.u32 %s226, 1
        %s1195 = smul.addr %s1194, 256
        %s1196 = scalar_lea.vmem [#allocation2], %s1195
        // Predicated region
        $region53: #{preact_bottleneck.7} parent=51 // pred_check
          %p1197 = pneg %p236
        $region54: #{preact_bottleneck.7} parent=51 // pred_check_branch
          %1199 = sbr.rel (%p1197) target = $region56
        $region55: #{preact_bottleneck.7} parent=51 // pred_region
          %s1200 = smul.u32 16, %s27
          %s1202 = ssub.s32 4096, 4096
          %1203 = vsyncadd %s1193, %s1202
          %s1204 = smul.addr %s1200, 2
          %s1205 = smul.addr %s26, 32
          %s1206 = sadd.s32 %s1204, %s1205
          %s1207 = smul.addr %s1206, 128
          %s1208 = scalar_lea.hbm %s8, %s1207
          %s1209 = sshll.u32 %s1196, 4
          %s1210 = int_to_ptr.vmem [resolvable:$true] %s1209
          %1215 = dma.vmem_to_hbm [thread:$0]  %s1210, 4096, %s1208, %s1193, 128, 128, 8
        $region56: #{preact_bottleneck.7} parent=51 // pred_fallthru
          _
      $region52: #{preact_bottleneck.7} parent=5 // pred_fallthru
        _
      %p1216 = scmp.le.s32.totalorder 2, %s17
      // Predicated region
      $region57: #{preact_bottleneck.7} parent=5 // pred_check
        %p1217 = pneg %p1216
      $region58: #{preact_bottleneck.7} parent=5 // pred_check_branch
        %1219 = sbr.rel (%p1217) target = $region60
      $region59: #{preact_bottleneck.7} parent=5 // pred_region
        %s1220 = ssub.s32 %s17, 2
        // Predicated region
        $region61: #{preact_bottleneck.7} parent=59 // pred_check
          %p1221 = pneg %p242
        $region62: #{preact_bottleneck.7} parent=59 // pred_check_branch
          %1223 = sbr.rel (%p1221) target = $region64
        $region63: #{preact_bottleneck.7} parent=59 // pred_region
          %s1224 = sand.u32 %s227, 1
          %s1225 = scalar_lea.sflag [#allocation3], %s1224
          %s1226 = sand.u32 %s227, 1
          %s1227 = smul.addr %s1226, 256
          %s1228 = scalar_lea.vmem [#allocation2], %s1227
          %1229 = dma.done %s1225, 4096
        $region64: #{preact_bottleneck.7} parent=59 // pred_fallthru
          _
      $region60: #{preact_bottleneck.7} parent=5 // pred_fallthru
        _
    $region6: #{preact_bottleneck.7} parent=1 // loop_footer
      %s21 = sadd.s32 1, %s17
    $region7: #{preact_bottleneck.7} parent=1 // loop_footer_branch
      %16 = sbr.rel target = $region3
    $region8: #{preact_bottleneck.7} parent=1 // loop_exit
      _
    %1230 = vsyncpa [#allocation3], 1
    %s1231 = scalar_lea.sflag [#allocation3], 1
    %1232 = vsyncpa %s1231, 1

// kernel: preact_bottleneck.6
$region0: #{preact_bottleneck.6}
  #allocation0 [shape = 'u32[]', space=smem, size = 0x4, offset = 0x4, fixed_abs, tag = 'smem constant byte address 0x4 - core index']
  #allocation1 [shape = 'u32[144,128]{1,0:T(1,128)}', space=vmem, size = 0x12000, scoped, tag = 'internal scratch']
  %s0 = inlined_call_operand.vmem [shape: bf16[2,16,16,8], index: 0, kind: input, shape index: {}]
  %s1 = inlined_call_operand.vmem [shape: f32[1,8], index: 1, kind: input, shape index: {}]
  %s2 = inlined_call_operand.vmem [shape: f32[1,8], index: 2, kind: input, shape index: {}]
  %s3 = inlined_call_operand.vmem [shape: bf16[9,8,8], index: 3, kind: input, shape index: {}]
  %s4 = inlined_call_operand.vmem [shape: bf16[2,16,16,8], index: 4, kind: output, shape index: {0}]
  %s5 = inlined_call_operand.vmem [shape: f32[2,2,8], index: 5, kind: output, shape index: {1}]
  %6 = xla_tuple %s4, %s5
  %s7 = sld [smem:[#allocation0]]
  $region57: #{preact_bottleneck.6} parent=0
    _
  %s9 = ssub.s32 1, %s7
  %s10 = scalar_select 0, %s9, %s7
  loop: start=0, step=1, limit=4
  $region2: #{preact_bottleneck.6} parent=0 // loop_pre_header
    _
  $region3: #{preact_bottleneck.6} parent=0 // loop_header
    %s12 = sphi 0, %s16
    %p13 = scmp.ge.s32.totalorder %s12, 4
    %s22 = sphi 0, %s24
    %s25 = sphi 0, %s22
    %s26 = sphi 0, %s25
    %s42 = sphi 0, %s26
    %s46 = sphi 0, %s46
    %s48 = sphi 0, %s46
    %s49 = sphi 0, %s48
    %s63 = sphi 0, %s49
    %s67 = sphi 0, %s67
    %s69 = sphi 0, %s67
    %s70 = sphi 0, %s69
    %s84 = sphi 0, %s70
    %s88 = sphi 0, %s88
    %s90 = sphi 0, %s88
    %s91 = sphi 0, %s90
    %s105 = sphi 0, %s91
    %s111 = sphi 0, %s113
    %s114 = sphi 0, %s111
    %s115 = sphi 0, %s114
    %s131 = sphi 0, %s115
    %s137 = sphi 0, %s139
    %s140 = sphi 0, %s137
    %s141 = sphi 0, %s140
    %s157 = sphi 0, %s141
  $region4: #{preact_bottleneck.6} parent=0 // loop_header_branch
    %15 = sbr.rel (%p13) target = $region8
  $region5: #{preact_bottleneck.6} parent=0 // loop_body
    %s17 = ssub.s32 %s12, 1
    %s18 = ssub.s32 %s12, 2
    %s19 = sadd.s32 %s12, 1
    %s20 = ssub.s32 %s12, %s19
    %p21 = scmp.eq.s32.totalorder %s20, 0
    %s23 = sadd.s32 %s22, 1
    %s24 = scalar_select %p21, %s22, %s23
    %p27 = pneg %p21
    %p28 = scmp.eq.s32.totalorder %s12, 1
    %p29 = por %p27, %p28
    %p30 = scmp.ne.s32.totalorder %s22, %s25
    %p31 = scmp.eq.s32.totalorder %s12, 0
    %p32 = por %p30, %p31
    %p33 = scmp.ne.s32.totalorder %s22, %s25
    %p34 = scmp.eq.s32.totalorder %s17, 1
    %p35 = por %p33, %p34
    %p36 = scmp.ne.s32.totalorder %s25, %s26
    %p37 = scmp.eq.s32.totalorder %s17, 0
    %p38 = por %p36, %p37
    %p39 = scmp.ne.s32.totalorder %s25, %s26
    %p40 = scmp.eq.s32.totalorder %s18, 1
    %p41 = por %p39, %p40
    %p43 = scmp.ne.s32.totalorder %s26, %s42
    %p44 = scmp.eq.s32.totalorder %s18, 0
    %p45 = por %p43, %p44
    %s47 = sadd.s32 %s46, 1
    %p50 = scmp.eq.s32.totalorder %s12, 1
    %p51 = scmp.ne.s32.totalorder %s46, %s48
    %p52 = scmp.eq.s32.totalorder %s12, 0
    %p53 = por %p51, %p52
    %p54 = scmp.ne.s32.totalorder %s46, %s48
    %p55 = scmp.eq.s32.totalorder %s17, 1
    %p56 = por %p54, %p55
    %p57 = scmp.ne.s32.totalorder %s48, %s49
    %p58 = scmp.eq.s32.totalorder %s17, 0
    %p59 = por %p57, %p58
    %p60 = scmp.ne.s32.totalorder %s48, %s49
    %p61 = scmp.eq.s32.totalorder %s18, 1
    %p62 = por %p60, %p61
    %p64 = scmp.ne.s32.totalorder %s49, %s63
    %p65 = scmp.eq.s32.totalorder %s18, 0
    %p66 = por %p64, %p65
    %s68 = sadd.s32 %s67, 1
    %p71 = scmp.eq.s32.totalorder %s12, 1
    %p72 = scmp.ne.s32.totalorder %s67, %s69
    %p73 = scmp.eq.s32.totalorder %s12, 0
    %p74 = por %p72, %p73
    %p75 = scmp.ne.s32.totalorder %s67, %s69
    %p76 = scmp.eq.s32.totalorder %s17, 1
    %p77 = por %p75, %p76
    %p78 = scmp.ne.s32.totalorder %s69, %s70
    %p79 = scmp.eq.s32.totalorder %s17, 0
    %p80 = por %p78, %p79
    %p81 = scmp.ne.s32.totalorder %s69, %s70
    %p82 = scmp.eq.s32.totalorder %s18, 1
    %p83 = por %p81, %p82
    %p85 = scmp.ne.s32.totalorder %s70, %s84
    %p86 = scmp.eq.s32.totalorder %s18, 0
    %p87 = por %p85, %p86
    %s89 = sadd.s32 %s88, 1
    %p92 = scmp.eq.s32.totalorder %s12, 1
    %p93 = scmp.ne.s32.totalorder %s88, %s90
    %p94 = scmp.eq.s32.totalorder %s12, 0
    %p95 = por %p93, %p94
    %p96 = scmp.ne.s32.totalorder %s88, %s90
    %p97 = scmp.eq.s32.totalorder %s17, 1
    %p98 = por %p96, %p97
    %p99 = scmp.ne.s32.totalorder %s90, %s91
    %p100 = scmp.eq.s32.totalorder %s17, 0
    %p101 = por %p99, %p100
    %p102 = scmp.ne.s32.totalorder %s90, %s91
    %p103 = scmp.eq.s32.totalorder %s18, 1
    %p104 = por %p102, %p103
    %p106 = scmp.ne.s32.totalorder %s91, %s105
    %p107 = scmp.eq.s32.totalorder %s18, 0
    %p108 = por %p106, %p107
    %s109 = ssub.s32 %s12, %s19
    %p110 = scmp.eq.s32.totalorder %s109, 0
    %s112 = sadd.s32 %s111, 1
    %s113 = scalar_select %p110, %s111, %s112
    %p116 = pneg %p110
    %p117 = scmp.eq.s32.totalorder %s12, 1
    %p118 = por %p116, %p117
    %p119 = scmp.ne.s32.totalorder %s111, %s114
    %p120 = scmp.eq.s32.totalorder %s12, 0
    %p121 = por %p119, %p120
    %p122 = scmp.ne.s32.totalorder %s111, %s114
    %p123 = scmp.eq.s32.totalorder %s17, 1
    %p124 = por %p122, %p123
    %p125 = scmp.ne.s32.totalorder %s114, %s115
    %p126 = scmp.eq.s32.totalorder %s17, 0
    %p127 = por %p125, %p126
    %p128 = scmp.ne.s32.totalorder %s114, %s115
    %p129 = scmp.eq.s32.totalorder %s18, 1
    %p130 = por %p128, %p129
    %p132 = scmp.ne.s32.totalorder %s115, %s131
    %p133 = scmp.eq.s32.totalorder %s18, 0
    %p134 = por %p132, %p133
    %s135 = ssub.s32 %s12, %s19
    %p136 = scmp.eq.s32.totalorder %s135, 0
    %s138 = sadd.s32 %s137, 1
    %s139 = scalar_select %p136, %s137, %s138
    %p142 = pneg %p136
    %p143 = scmp.eq.s32.totalorder %s12, 1
    %p144 = por %p142, %p143
    %p145 = scmp.ne.s32.totalorder %s137, %s140
    %p146 = scmp.eq.s32.totalorder %s12, 0
    %p147 = por %p145, %p146
    %p148 = scmp.ne.s32.totalorder %s137, %s140
    %p149 = scmp.eq.s32.totalorder %s17, 1
    %p150 = por %p148, %p149
    %p151 = scmp.ne.s32.totalorder %s140, %s141
    %p152 = scmp.eq.s32.totalorder %s17, 0
    %p153 = por %p151, %p152
    %p154 = scmp.ne.s32.totalorder %s140, %s141
    %p155 = scmp.eq.s32.totalorder %s18, 1
    %p156 = por %p154, %p155
    %p158 = scmp.ne.s32.totalorder %s141, %s157
    %p159 = scmp.eq.s32.totalorder %s18, 0
    %p160 = por %p158, %p159
    %p161 = scmp.le.s32.totalorder 1, %s12
    %p162 = scmp.lt.s32.totalorder %s12, 3
    %p163 = pnand %p161, %p162
    %p164 = pneg %p163
    // Predicated region
    $region9: #{preact_bottleneck.6} parent=5 // pred_check
      _
    $region10: #{preact_bottleneck.6} parent=5 // pred_check_branch
      %166 = sbr.rel (%p163) target = $region12
    $region11: #{preact_bottleneck.6} parent=5 // pred_region
      %s167 = ssub.s32 %s12, 1
      // Predicated region
      $region13: #{preact_bottleneck.6} parent=11 // pred_check
        %p168 = pneg %p59
      $region14: #{preact_bottleneck.6} parent=11 // pred_check_branch
        %170 = sbr.rel (%p168) target = $region16
      $region15: #{preact_bottleneck.6} parent=11 // pred_region
        _
      $region16: #{preact_bottleneck.6} parent=11 // pred_fallthru
        _
      // Predicated region
      $region17: #{preact_bottleneck.6} parent=11 // pred_check
        %p171 = pneg %p80
      $region18: #{preact_bottleneck.6} parent=11 // pred_check_branch
        %173 = sbr.rel (%p171) target = $region20
      $region19: #{preact_bottleneck.6} parent=11 // pred_region
        _
      $region20: #{preact_bottleneck.6} parent=11 // pred_fallthru
        _
      // Predicated region
      $region21: #{preact_bottleneck.6} parent=11 // pred_check
        %p174 = pneg %p101
      $region22: #{preact_bottleneck.6} parent=11 // pred_check_branch
        %176 = sbr.rel (%p174) target = $region24
      $region23: #{preact_bottleneck.6} parent=11 // pred_region
        _
      $region24: #{preact_bottleneck.6} parent=11 // pred_fallthru
        _
    $region12: #{preact_bottleneck.6} parent=5 // pred_fallthru
      _
    %p177 = scmp.lt.s32.totalorder %s12, 2
    // Predicated region
    $region25: #{preact_bottleneck.6} parent=5 // pred_check
      %p178 = pneg %p177
    $region26: #{preact_bottleneck.6} parent=5 // pred_check_branch
      %180 = sbr.rel (%p178) target = $region28
    $region27: #{preact_bottleneck.6} parent=5 // pred_region
      // Predicated region
      $region29: #{preact_bottleneck.6} parent=27 // pred_check
        %p181 = pneg %p32
      $region30: #{preact_bottleneck.6} parent=27 // pred_check_branch
        %183 = sbr.rel (%p181) target = $region32
      $region31: #{preact_bottleneck.6} parent=27 // pred_region
        %p184 = scmp.lt.s32.totalorder %s12, 1
        %s185 = scalar_select %p184, %s12, 1
        %s186 = smul.addr %s185, 32
        %s187 = smul.addr %s186, 4
        %s188 = scalar_lea.vmem %s0, %s187
      $region32: #{preact_bottleneck.6} parent=27 // pred_fallthru
        _
    $region28: #{preact_bottleneck.6} parent=5 // pred_fallthru
      _
    %p189 = scmp.le.s32.totalorder 1, %s12
    %p190 = scmp.lt.s32.totalorder %s12, 3
    %p191 = pnand %p189, %p190
    %p192 = pneg %p191
    // Predicated region
    $region33: #{preact_bottleneck.6} parent=5 // pred_check
      _
    $region34: #{preact_bottleneck.6} parent=5 // pred_check_branch
      %194 = sbr.rel (%p191) target = $region36
    $region35: #{preact_bottleneck.6} parent=5 // pred_region
      %s195 = ssub.s32 %s12, 1
      %p196 = scmp.lt.s32.totalorder %s17, 1
      %s197 = scalar_select %p196, %s17, 1
      %s198 = smul.addr %s197, 32
      %s199 = smul.addr %s198, 4
      %s200 = scalar_lea.vmem %s0, %s199
      %p201 = pneg %p38
      %p202 = pneg %p35
      %p203 = pneg %p59
      %p204 = pneg %p56
      %p205 = pneg %p80
      %p206 = pneg %p77
      %p207 = pneg %p101
      %p208 = pneg %p98
      %p209 = pneg %p127
      %p210 = pneg %p124
      %p211 = scmp.lt.s32.totalorder %s17, 1
      %s212 = scalar_select %p211, %s17, 1
      %s213 = smul.addr %s212, 32
      %s214 = smul.addr %s213, 4
      %s215 = scalar_lea.vmem %s4, %s214
      %p216 = pneg %p153
      %p217 = pneg %p150
      %p218 = scmp.lt.s32.totalorder %s17, 1
      %s219 = scalar_select %p218, %s17, 1
      %s220 = smul.addr %s219, 2
      %s221 = scalar_lea.vmem %s5, %s220
      %p222 = scmp.lt.s32.totalorder %s17, 1
      %s223 = scalar_select %p222, %s17, 1
      %s224 = smul.addr %s223, 32
      %s225 = smul.addr %s224, 4
      %s226 = scalar_lea.vmem %s0, %s225
      %p227 = scmp.lt.s32.totalorder %s17, 1
      %s228 = scalar_select %p227, %s17, 1
      %s229 = smul.addr %s228, 32
      %s230 = smul.addr %s229, 4
      %s231 = scalar_lea.vmem %s4, %s230
      %p232 = scmp.lt.s32.totalorder %s17, 1
      %s233 = scalar_select %p232, %s17, 1
      %s234 = smul.addr %s233, 2
      %s235 = scalar_lea.vmem %s5, %s234
      %v237 = vld [vmem:[%s226] sm:$0xf]
      %v238 = vld [vmem:[%s226 + $0x4] sm:$0xf]
      %v239 = vld [vmem:[%s226 + $0x8] sm:$0xf]
      %v240 = vld [vmem:[%s226 + $0xc] sm:$0xf]
      %v241 = vld [vmem:[%s226 + $0x10] sm:$0xf]
      %v242 = vld [vmem:[%s226 + $0x14] sm:$0xf]
      %v243 = vld [vmem:[%s226 + $0x18] sm:$0xf]
      %v244 = vld [vmem:[%s226 + $0x1c] sm:$0xf]
      %v245 = vld [vmem:[%s226 + $0x20] sm:$0xf]
      %v246 = vld [vmem:[%s226 + $0x24] sm:$0xf]
      %v247 = vld [vmem:[%s226 + $0x28] sm:$0xf]
      %v248 = vld [vmem:[%s226 + $0x2c] sm:$0xf]
      %v249 = vld [vmem:[%s226 + $0x30] sm:$0xf]
      %v250 = vld [vmem:[%s226 + $0x34] sm:$0xf]
      %v251 = vld [vmem:[%s226 + $0x38] sm:$0xf]
      %v252 = vld [vmem:[%s226 + $0x3c] sm:$0xf]
      %v253 = vld [vmem:[%s226 + $0x40] sm:$0xf]
      %v254 = vld [vmem:[%s226 + $0x44] sm:$0xf]
      %v255 = vld [vmem:[%s226 + $0x48] sm:$0xf]
      %v256 = vld [vmem:[%s226 + $0x4c] sm:$0xf]
      %v257 = vld [vmem:[%s226 + $0x50] sm:$0xf]
      %v258 = vld [vmem:[%s226 + $0x54] sm:$0xf]
      %v259 = vld [vmem:[%s226 + $0x58] sm:$0xf]
      %v260 = vld [vmem:[%s226 + $0x5c] sm:$0xf]
      %v261 = vld [vmem:[%s226 + $0x60] sm:$0xf]
      %v262 = vld [vmem:[%s226 + $0x64] sm:$0xf]
      %v263 = vld [vmem:[%s226 + $0x68] sm:$0xf]
      %v264 = vld [vmem:[%s226 + $0x6c] sm:$0xf]
      %v265 = vld [vmem:[%s226 + $0x70] sm:$0xf]
      %v266 = vld [vmem:[%s226 + $0x74] sm:$0xf]
      %v267 = vld [vmem:[%s226 + $0x78] sm:$0xf]
      %v268 = vld [vmem:[%s226 + $0x7c] sm:$0xf]
      %v269 = vunpack.c.l.bf16 %v237
      %v270 = vunpack.c.l.bf16 %v238
      %v271 = vunpack.c.l.bf16 %v239
      %v272 = vunpack.c.l.bf16 %v240
      %v273 = vunpack.c.l.bf16 %v241
      %v274 = vunpack.c.l.bf16 %v242
      %v275 = vunpack.c.l.bf16 %v243
      %v276 = vunpack.c.l.bf16 %v244
      %v277 = vunpack.c.l.bf16 %v245
      %v278 = vunpack.c.l.bf16 %v246
      %v279 = vunpack.c.l.bf16 %v247
      %v280 = vunpack.c.l.bf16 %v248
      %v281 = vunpack.c.l.bf16 %v249
      %v282 = vunpack.c.l.bf16 %v250
      %v283 = vunpack.c.l.bf16 %v251
      %v284 = vunpack.c.l.bf16 %v252
      %v285 = vunpack.c.l.bf16 %v253
      %v286 = vunpack.c.l.bf16 %v254
      %v287 = vunpack.c.l.bf16 %v255
      %v288 = vunpack.c.l.bf16 %v256
      %v289 = vunpack.c.l.bf16 %v257
      %v290 = vunpack.c.l.bf16 %v258
      %v291 = vunpack.c.l.bf16 %v259
      %v292 = vunpack.c.l.bf16 %v260
      %v293 = vunpack.c.l.bf16 %v261
      %v294 = vunpack.c.l.bf16 %v262
      %v295 = vunpack.c.l.bf16 %v263
      %v296 = vunpack.c.l.bf16 %v264
      %v297 = vunpack.c.l.bf16 %v265
      %v298 = vunpack.c.l.bf16 %v266
      %v299 = vunpack.c.l.bf16 %v267
      %v300 = vunpack.c.l.bf16 %v268
      %v301 = vld [vmem:[%s1] sm:$0x1]
      %v303 = vlaneseq
      %v304 = vshrl.u32 %v303, 7
      %v305 = vsub.s32 0, %v304
      %v306 = vrot.slane %v301, %v305
      %v308 = vmul.f32 %v269, %v306
      %v309 = vmul.f32 %v270, %v306
      %v310 = vmul.f32 %v271, %v306
      %v311 = vmul.f32 %v272, %v306
      %v312 = vmul.f32 %v273, %v306
      %v313 = vmul.f32 %v274, %v306
      %v314 = vmul.f32 %v275, %v306
      %v315 = vmul.f32 %v276, %v306
      %v316 = vmul.f32 %v277, %v306
      %v317 = vmul.f32 %v278, %v306
      %v318 = vmul.f32 %v279, %v306
      %v319 = vmul.f32 %v280, %v306
      %v320 = vmul.f32 %v281, %v306
      %v321 = vmul.f32 %v282, %v306
      %v322 = vmul.f32 %v283, %v306
      %v323 = vmul.f32 %v284, %v306
      %v324 = vmul.f32 %v285, %v306
      %v325 = vmul.f32 %v286, %v306
      %v326 = vmul.f32 %v287, %v306
      %v327 = vmul.f32 %v288, %v306
      %v328 = vmul.f32 %v289, %v306
      %v329 = vmul.f32 %v290, %v306
      %v330 = vmul.f32 %v291, %v306
      %v331 = vmul.f32 %v292, %v306
      %v332 = vmul.f32 %v293, %v306
      %v333 = vmul.f32 %v294, %v306
      %v334 = vmul.f32 %v295, %v306
      %v335 = vmul.f32 %v296, %v306
      %v336 = vmul.f32 %v297, %v306
      %v337 = vmul.f32 %v298, %v306
      %v338 = vmul.f32 %v299, %v306
      %v339 = vmul.f32 %v300, %v306
      %v340 = vld [vmem:[%s2] sm:$0x1]
      %v342 = vlaneseq
      %v343 = vshrl.u32 %v342, 7
      %v344 = vsub.s32 0, %v343
      %v345 = vrot.slane %v340, %v344
      %v347 = vadd.f32 %v308, %v345
      %v348 = vadd.f32 %v309, %v345
      %v349 = vadd.f32 %v310, %v345
      %v350 = vadd.f32 %v311, %v345
      %v351 = vadd.f32 %v312, %v345
      %v352 = vadd.f32 %v313, %v345
      %v353 = vadd.f32 %v314, %v345
      %v354 = vadd.f32 %v315, %v345
      %v355 = vadd.f32 %v316, %v345
      %v356 = vadd.f32 %v317, %v345
      %v357 = vadd.f32 %v318, %v345
      %v358 = vadd.f32 %v319, %v345
      %v359 = vadd.f32 %v320, %v345
      %v360 = vadd.f32 %v321, %v345
      %v361 = vadd.f32 %v322, %v345
      %v362 = vadd.f32 %v323, %v345
      %v363 = vadd.f32 %v324, %v345
      %v364 = vadd.f32 %v325, %v345
      %v365 = vadd.f32 %v326, %v345
      %v366 = vadd.f32 %v327, %v345
      %v367 = vadd.f32 %v328, %v345
      %v368 = vadd.f32 %v329, %v345
      %v369 = vadd.f32 %v330, %v345
      %v370 = vadd.f32 %v331, %v345
      %v371 = vadd.f32 %v332, %v345
      %v372 = vadd.f32 %v333, %v345
      %v373 = vadd.f32 %v334, %v345
      %v374 = vadd.f32 %v335, %v345
      %v375 = vadd.f32 %v336, %v345
      %v376 = vadd.f32 %v337, %v345
      %v377 = vadd.f32 %v338, %v345
      %v378 = vadd.f32 %v339, %v345
      %v379 = vmax.f32 %v347, 0.0
      %v380 = vmax.f32 %v348, 0.0
      %v381 = vmax.f32 %v349, 0.0
      %v382 = vmax.f32 %v350, 0.0
      %v383 = vmax.f32 %v351, 0.0
      %v384 = vmax.f32 %v352, 0.0
      %v385 = vmax.f32 %v353, 0.0
      %v386 = vmax.f32 %v354, 0.0
      %v387 = vmax.f32 %v355, 0.0
      %v388 = vmax.f32 %v356, 0.0
      %v389 = vmax.f32 %v357, 0.0
      %v390 = vmax.f32 %v358, 0.0
      %v391 = vmax.f32 %v359, 0.0
      %v392 = vmax.f32 %v360, 0.0
      %v393 = vmax.f32 %v361, 0.0
      %v394 = vmax.f32 %v362, 0.0
      %v395 = vmax.f32 %v363, 0.0
      %v396 = vmax.f32 %v364, 0.0
      %v397 = vmax.f32 %v365, 0.0
      %v398 = vmax.f32 %v366, 0.0
      %v399 = vmax.f32 %v367, 0.0
      %v400 = vmax.f32 %v368, 0.0
      %v401 = vmax.f32 %v369, 0.0
      %v402 = vmax.f32 %v370, 0.0
      %v403 = vmax.f32 %v371, 0.0
      %v404 = vmax.f32 %v372, 0.0
      %v405 = vmax.f32 %v373, 0.0
      %v406 = vmax.f32 %v374, 0.0
      %v407 = vmax.f32 %v375, 0.0
      %v408 = vmax.f32 %v376, 0.0
      %v409 = vmax.f32 %v377, 0.0
      %v410 = vmax.f32 %v378, 0.0
      %v411 = vlaneseq
      %v412 = vshrl.u32 %v411, 7
      %v413 = vadd.s32 %v412, 8
      %v415 = vrot.slane %v410, 7
      %vm447 = vcmask 1040384
      %v448 = vrot.slane %v379, 7
      %v449 = vrot.slane %v380, 7
      %v450 = vsel %vm447, %v448, %v449
      %v451 = vrot.slane %v381, 7
      %v452 = vsel %vm447, %v449, %v451
      %v453 = vrot.slane %v382, 7
      %v454 = vsel %vm447, %v451, %v453
      %v455 = vrot.slane %v383, 7
      %v456 = vsel %vm447, %v453, %v455
      %v457 = vrot.slane %v384, 7
      %v458 = vsel %vm447, %v455, %v457
      %v459 = vrot.slane %v385, 7
      %v460 = vsel %vm447, %v457, %v459
      %v461 = vrot.slane %v386, 7
      %v462 = vsel %vm447, %v459, %v461
      %v463 = vrot.slane %v387, 7
      %v464 = vsel %vm447, %v461, %v463
      %v465 = vrot.slane %v388, 7
      %v466 = vsel %vm447, %v463, %v465
      %v467 = vrot.slane %v389, 7
      %v468 = vsel %vm447, %v465, %v467
      %v469 = vrot.slane %v390, 7
      %v470 = vsel %vm447, %v467, %v469
      %v471 = vrot.slane %v391, 7
      %v472 = vsel %vm447, %v469, %v471
      %v473 = vrot.slane %v392, 7
      %v474 = vsel %vm447, %v471, %v473
      %v475 = vrot.slane %v393, 7
      %v476 = vsel %vm447, %v473, %v475
      %v477 = vrot.slane %v394, 7
      %v478 = vsel %vm447, %v475, %v477
      %v479 = vrot.slane %v395, 7
      %v480 = vsel %vm447, %v477, %v479
      %v481 = vrot.slane %v396, 7
      %v482 = vsel %vm447, %v479, %v481
      %v483 = vrot.slane %v397, 7
      %v484 = vsel %vm447, %v481, %v483
      %v485 = vrot.slane %v398, 7
      %v486 = vsel %vm447, %v483, %v485
      %v487 = vrot.slane %v399, 7
      %v488 = vsel %vm447, %v485, %v487
      %v489 = vrot.slane %v400, 7
      %v490 = vsel %vm447, %v487, %v489
      %v491 = vrot.slane %v401, 7
      %v492 = vsel %vm447, %v489, %v491
      %v493 = vrot.slane %v402, 7
      %v494 = vsel %vm447, %v491, %v493
      %v495 = vrot.slane %v403, 7
      %v496 = vsel %vm447, %v493, %v495
      %v497 = vrot.slane %v404, 7
      %v498 = vsel %vm447, %v495, %v497
      %v499 = vrot.slane %v405, 7
      %v500 = vsel %vm447, %v497, %v499
      %v501 = vrot.slane %v406, 7
      %v502 = vsel %vm447, %v499, %v501
      %v503 = vrot.slane %v407, 7
      %v504 = vsel %vm447, %v501, %v503
      %v505 = vrot.slane %v408, 7
      %v506 = vsel %vm447, %v503, %v505
      %v537 = vsel %vm447, %v415, %v448
      %vm538 = vcmp.ge.s32.totalorder %v412, 1
      %vm539 = vcmp.ge.s32.totalorder %v413, 1
      %v540 = vsel %vm538, 1, 0
      %v541 = vsel %vm539, 1, 0
      %vm542 = vcmp.eq.s32.totalorder %v540, 1
      %vm543 = vcmp.eq.s32.totalorder %v541, 1
      %v544 = vsel %vm542, %v537, 0.0
      %v545 = vsel %vm543, %v450, 0.0
      %v546 = vsel %vm542, %v452, 0.0
      %v547 = vsel %vm543, %v454, 0.0
      %v548 = vsel %vm542, %v456, 0.0
      %v549 = vsel %vm543, %v458, 0.0
      %v550 = vsel %vm542, %v460, 0.0
      %v551 = vsel %vm543, %v462, 0.0
      %v552 = vsel %vm542, %v464, 0.0
      %v553 = vsel %vm543, %v466, 0.0
      %v554 = vsel %vm542, %v468, 0.0
      %v555 = vsel %vm543, %v470, 0.0
      %v556 = vsel %vm542, %v472, 0.0
      %v557 = vsel %vm543, %v474, 0.0
      %v558 = vsel %vm542, %v476, 0.0
      %v559 = vsel %vm543, %v478, 0.0
      %v560 = vsel %vm542, %v480, 0.0
      %v561 = vsel %vm543, %v482, 0.0
      %v562 = vsel %vm542, %v484, 0.0
      %v563 = vsel %vm543, %v486, 0.0
      %v564 = vsel %vm542, %v488, 0.0
      %v565 = vsel %vm543, %v490, 0.0
      %v566 = vsel %vm542, %v492, 0.0
      %v567 = vsel %vm543, %v494, 0.0
      %v568 = vsel %vm542, %v496, 0.0
      %v569 = vsel %vm543, %v498, 0.0
      %v570 = vsel %vm542, %v500, 0.0
      %v571 = vsel %vm543, %v502, 0.0
      %v572 = vsel %vm542, %v504, 0.0
      %v573 = vsel %vm543, %v506, 0.0
      %v574 = vpack.c.bf16 0.0, 0.0
      %v575 = vpack.c.bf16 %v545, %v544
      %v576 = vpack.c.bf16 %v547, %v546
      %v577 = vpack.c.bf16 %v549, %v548
      %v578 = vpack.c.bf16 %v551, %v550
      %v579 = vpack.c.bf16 %v553, %v552
      %v580 = vpack.c.bf16 %v555, %v554
      %v581 = vpack.c.bf16 %v557, %v556
      %v582 = vpack.c.bf16 %v559, %v558
      %v583 = vpack.c.bf16 %v561, %v560
      %v584 = vpack.c.bf16 %v563, %v562
      %v585 = vpack.c.bf16 %v565, %v564
      %v586 = vpack.c.bf16 %v567, %v566
      %v587 = vpack.c.bf16 %v569, %v568
      %v588 = vpack.c.bf16 %v571, %v570
      %v589 = vpack.c.bf16 %v573, %v572
      %v590 = vld [vmem:[%s3] sm:$0xf]
      %v591 = vpack.c.bf16 %v380, %v379
      %v592 = vpack.c.bf16 %v382, %v381
      %v593 = vpack.c.bf16 %v384, %v383
      %v594 = vpack.c.bf16 %v386, %v385
      %v595 = vpack.c.bf16 %v388, %v387
      %v596 = vpack.c.bf16 %v390, %v389
      %v597 = vpack.c.bf16 %v392, %v391
      %v598 = vpack.c.bf16 %v394, %v393
      %v599 = vpack.c.bf16 %v396, %v395
      %v600 = vpack.c.bf16 %v398, %v397
      %v601 = vpack.c.bf16 %v400, %v399
      %v602 = vpack.c.bf16 %v402, %v401
      %v603 = vpack.c.bf16 %v404, %v403
      %v604 = vpack.c.bf16 %v406, %v405
      %v605 = vpack.c.bf16 %v408, %v407
      %s606 = scalar_lea.vmem %s3, 4
      %v607 = vld [vmem:[%s606] sm:$0xf]
      %vm608 = vcmask 64512
      %v610 = vsel %vm608, %v574, 0
      %v613 = vsel %vm608, %v591, 0
      %v616 = vsel %vm608, %v592, 0
      %v619 = vsel %vm608, %v593, 0
      %v622 = vsel %vm608, %v594, 0
      %v625 = vsel %vm608, %v595, 0
      %v628 = vsel %vm608, %v596, 0
      %v631 = vsel %vm608, %v597, 0
      %v634 = vsel %vm608, %v598, 0
      %v637 = vsel %vm608, %v599, 0
      %v640 = vsel %vm608, %v600, 0
      %v643 = vsel %vm608, %v601, 0
      %v646 = vsel %vm608, %v602, 0
      %v649 = vsel %vm608, %v603, 0
      %v652 = vsel %vm608, %v604, 0
      %v655 = vsel %vm608, %v605, 0
      %vm657 = vcmask 1043456
      %v659 = vsel %vm657, %v607, 0
      %661 = vmatprep.subr.bf16.mxu0 0
      %662 = vmatpush1.bf16.msra.mxu0 %v659
      %663 = vmatprep.subr.bf16.mxu0 0
      %664 = vmatpush1.bf16.msra.mxu0 0
      %665 = vmatprep.subr.bf16.mxu0 0
      %666 = vmatpush1.bf16.msra.mxu0 0
      %667 = vmatprep.subr.bf16.mxu0 0
      %668 = vmatpush1.bf16.msra.mxu0 0
      %669 = vmatprep.subr.bf16.mxu0 0
      %670 = vmatpush1.bf16.msra.mxu0 0
      %671 = vmatprep.subr.bf16.mxu0 0
      %672 = vmatpush1.bf16.msra.mxu0 0
      %673 = vmatprep.subr.bf16.mxu0 0
      %674 = vmatpush1.bf16.msra.mxu0 0
      %675 = vmatprep.subr.bf16.mxu0 0
      %676 = vmatpush1.bf16.msra.mxu0 0
      %677 = vmatprep.subr.bf16.mxu0 0
      %678 = vmatpush1.bf16.msra.mxu0 0
      %679 = vmatprep.subr.bf16.mxu0 0
      %680 = vmatpush1.bf16.msra.mxu0 0
      %681 = vmatprep.subr.bf16.mxu0 0
      %682 = vmatpush1.bf16.msra.mxu0 0
      %683 = vmatprep.subr.bf16.mxu0 0
      %684 = vmatpush1.bf16.msra.mxu0 0
      %685 = vmatprep.subr.bf16.mxu0 0
      %686 = vmatpush1.bf16.msra.mxu0 0
      %687 = vmatprep.subr.bf16.mxu0 0
      %688 = vmatpush1.bf16.msra.mxu0 0
      %689 = vmatprep.subr.bf16.mxu0 0
      %690 = vmatpush1.bf16.msra.mxu0 0
      %691 = vmatprep.subr.bf16.mxu0 0
      %692 = vmatpush1.bf16.msra.mxu0 0
      %693 = vmatprep.mubr.bf16.mxu0 0
      %694 = vmatmul.mubr.bf16.gmra.mrb[0].mxu0 %v610
      %v695 = vpop.f32.mrb[0].mxu0
      %v696 = vadd.f32 0.0, %v695
      %v697 = vpop.f32.mrb[0].mxu0
      %v698 = vpop.f32.mrb[0].mxu0
      %v699 = vadd.f32 0.0, %v698
      %v700 = vpop.f32.mrb[0].mxu0
      %701 = vmatprep.mubr.bf16.mxu0 0
      %702 = vmatmul.mubr.bf16.gmra.mrb[0].mxu0 %v613
      %v703 = vpop.f32.mrb[0].mxu0
      %v704 = vadd.f32 0.0, %v703
      %v705 = vpop.f32.mrb[0].mxu0
      %v706 = vpop.f32.mrb[0].mxu0
      %v707 = vadd.f32 0.0, %v706
      %v708 = vpop.f32.mrb[0].mxu0
      %709 = vmatprep.mubr.bf16.mxu0 0
      %710 = vmatmul.mubr.bf16.gmra.mrb[0].mxu0 %v616
      %v711 = vpop.f32.mrb[0].mxu0
      %v712 = vadd.f32 0.0, %v711
      %v713 = vpop.f32.mrb[0].mxu0
      %v714 = vpop.f32.mrb[0].mxu0
      %v715 = vadd.f32 0.0, %v714
      %v716 = vpop.f32.mrb[0].mxu0
      %717 = vmatprep.mubr.bf16.mxu0 0
      %718 = vmatmul.mubr.bf16.gmra.mrb[0].mxu0 %v619
      %v719 = vpop.f32.mrb[0].mxu0
      %v720 = vadd.f32 0.0, %v719
      %v721 = vpop.f32.mrb[0].mxu0
      %v722 = vpop.f32.mrb[0].mxu0
      %v723 = vadd.f32 0.0, %v722
      %v724 = vpop.f32.mrb[0].mxu0
      %725 = vmatprep.mubr.bf16.mxu0 0
      %726 = vmatmul.mubr.bf16.gmra.mrb[0].mxu0 %v622
      %v727 = vpop.f32.mrb[0].mxu0
      %v728 = vadd.f32 0.0, %v727
      %v729 = vpop.f32.mrb[0].mxu0
      %v730 = vpop.f32.mrb[0].mxu0
      %v731 = vadd.f32 0.0, %v730
      %v732 = vpop.f32.mrb[0].mxu0
      %733 = vmatprep.mubr.bf16.mxu0 0
      %734 = vmatmul.mubr.bf16.gmra.mrb[0].mxu0 %v625
      %v735 = vpop.f32.mrb[0].mxu0
      %v736 = vadd.f32 0.0, %v735
      %v737 = vpop.f32.mrb[0].mxu0
      %v738 = vpop.f32.mrb[0].mxu0
      %v739 = vadd.f32 0.0, %v738
      %v740 = vpop.f32.mrb[0].mxu0
      %741 = vmatprep.mubr.bf16.mxu0 0
      %742 = vmatmul.mubr.bf16.gmra.mrb[0].mxu0 %v628
      %v743 = vpop.f32.mrb[0].mxu0
      %v744 = vadd.f32 0.0, %v743
      %v745 = vpop.f32.mrb[0].mxu0
      %v746 = vpop.f32.mrb[0].mxu0
      %v747 = vadd.f32 0.0, %v746
      %v748 = vpop.f32.mrb[0].mxu0
      %749 = vmatprep.mubr.bf16.mxu0 0
      %750 = vmatmul.mubr.bf16.gmra.mrb[0].mxu0 %v631
      %v751 = vpop.f32.mrb[0].mxu0
      %v752 = vadd.f32 0.0, %v751
      %v753 = vpop.f32.mrb[0].mxu0
      %v754 = vpop.f32.mrb[0].mxu0
      %v755 = vadd.f32 0.0, %v754
      %v756 = vpop.f32.mrb[0].mxu0
      %757 = vmatprep.mubr.bf16.mxu0 0
      %758 = vmatmul.mubr.bf16.gmra.mrb[0].mxu0 %v634
      %v759 = vpop.f32.mrb[0].mxu0
      %v760 = vadd.f32 0.0, %v759
      %v761 = vpop.f32.mrb[0].mxu0
      %v762 = vpop.f32.mrb[0].mxu0
      %v763 = vadd.f32 0.0, %v762
      %v764 = vpop.f32.mrb[0].mxu0
      %765 = vmatprep.mubr.bf16.mxu0 0
      %766 = vmatmul.mubr.bf16.gmra.mrb[0].mxu0 %v637
      %v767 = vpop.f32.mrb[0].mxu0
      %v768 = vadd.f32 0.0, %v767
      %v769 = vpop.f32.mrb[0].mxu0
      %v770 = vpop.f32.mrb[0].mxu0
      %v771 = vadd.f32 0.0, %v770
      %v772 = vpop.f32.mrb[0].mxu0
      %773 = vmatprep.mubr.bf16.mxu0 0
      %774 = vmatmul.mubr.bf16.gmra.mrb[0].mxu0 %v640
      %v775 = vpop.f32.mrb[0].mxu0
      %v776 = vadd.f32 0.0, %v775
      %v777 = vpop.f32.mrb[0].mxu0
      %v778 = vpop.f32.mrb[0].mxu0
      %v779 = vadd.f32 0.0, %v778
      %v780 = vpop.f32.mrb[0].mxu0
      %781 = vmatprep.mubr.bf16.mxu0 0
      %782 = vmatmul.mubr.bf16.gmra.mrb[0].mxu0 %v643
      %v783 = vpop.f32.mrb[0].mxu0
      %v784 = vadd.f32 0.0, %v783
      %v785 = vpop.f32.mrb[0].mxu0
      %v786 = vpop.f32.mrb[0].mxu0
      %v787 = vadd.f32 0.0, %v786
      %v788 = vpop.f32.mrb[0].mxu0
      %789 = vmatprep.mubr.bf16.mxu0 0
      %790 = vmatmul.mubr.bf16.gmra.mrb[0].mxu0 %v646
      %v791 = vpop.f32.mrb[0].mxu0
      %v792 = vadd.f32 0.0, %v791
      %v793 = vpop.f32.mrb[0].mxu0
      %v794 = vpop.f32.mrb[0].mxu0
      %v795 = vadd.f32 0.0, %v794
      %v796 = vpop.f32.mrb[0].mxu0
      %797 = vmatprep.mubr.bf16.mxu0 0
      %798 = vmatmul.mubr.bf16.gmra.mrb[0].mxu0 %v649
      %v799 = vpop.f32.mrb[0].mxu0
      %v800 = vadd.f32 0.0, %v799
      %v801 = vpop.f32.mrb[0].mxu0
      %v802 = vpop.f32.mrb[0].mxu0
      %v803 = vadd.f32 0.0, %v802
      %v804 = vpop.f32.mrb[0].mxu0
      %805 = vmatprep.mubr.bf16.mxu0 0
      %806 = vmatmul.mubr.bf16.gmra.mrb[0].mxu0 %v652
      %v807 = vpop.f32.mrb[0].mxu0
      %v808 = vadd.f32 0.0, %v807
      %v809 = vpop.f32.mrb[0].mxu0
      %v810 = vpop.f32.mrb[0].mxu0
      %v811 = vadd.f32 0.0, %v810
      %v812 = vpop.f32.mrb[0].mxu0
      %813 = vmatprep.mubr.bf16.mxu0 0
      %814 = vmatmul.mubr.bf16.gmra.mrb[0].mxu0 %v655
      %v815 = vpop.f32.mrb[0].mxu0
      %v816 = vadd.f32 0.0, %v815
      %v817 = vpop.f32.mrb[0].mxu0
      %v818 = vpop.f32.mrb[0].mxu0
      %v819 = vadd.f32 0.0, %v818
      %v820 = vpop.f32.mrb[0].mxu0
      %821 = vdwg.mxu0
      %v823 = vsel %vm608, %v575, 0
      %v826 = vsel %vm608, %v576, 0
      %v829 = vsel %vm608, %v577, 0
      %v832 = vsel %vm608, %v578, 0
      %v835 = vsel %vm608, %v579, 0
      %v838 = vsel %vm608, %v580, 0
      %v841 = vsel %vm608, %v581, 0
      %v844 = vsel %vm608, %v582, 0
      %v847 = vsel %vm608, %v583, 0
      %v850 = vsel %vm608, %v584, 0
      %v853 = vsel %vm608, %v585, 0
      %v856 = vsel %vm608, %v586, 0
      %v859 = vsel %vm608, %v587, 0
      %v862 = vsel %vm608, %v588, 0
      %v865 = vsel %vm608, %v589, 0
      %v868 = vsel %vm657, %v590, 0
      %870 = vmatprep.subr.bf16.mxu0 0
      %871 = vmatpush1.bf16.msra.mxu0 %v868
      %872 = vmatprep.subr.bf16.mxu0 0
      %873 = vmatpush1.bf16.msra.mxu0 0
      %874 = vmatprep.subr.bf16.mxu0 0
      %875 = vmatpush1.bf16.msra.mxu0 0
      %876 = vmatprep.subr.bf16.mxu0 0
      %877 = vmatpush1.bf16.msra.mxu0 0
      %878 = vmatprep.subr.bf16.mxu0 0
      %879 = vmatpush1.bf16.msra.mxu0 0
      %880 = vmatprep.subr.bf16.mxu0 0
      %881 = vmatpush1.bf16.msra.mxu0 0
      %882 = vmatprep.subr.bf16.mxu0 0
      %883 = vmatpush1.bf16.msra.mxu0 0
      %884 = vmatprep.subr.bf16.mxu0 0
      %885 = vmatpush1.bf16.msra.mxu0 0
      %886 = vmatprep.subr.bf16.mxu0 0
      %887 = vmatpush1.bf16.msra.mxu0 0
      %888 = vmatprep.subr.bf16.mxu0 0
      %889 = vmatpush1.bf16.msra.mxu0 0
      %890 = vmatprep.subr.bf16.mxu0 0
      %891 = vmatpush1.bf16.msra.mxu0 0
      %892 = vmatprep.subr.bf16.mxu0 0
      %893 = vmatpush1.bf16.msra.mxu0 0
      %894 = vmatprep.subr.bf16.mxu0 0
      %895 = vmatpush1.bf16.msra.mxu0 0
      %896 = vmatprep.subr.bf16.mxu0 0
      %897 = vmatpush1.bf16.msra.mxu0 0
      %898 = vmatprep.subr.bf16.mxu0 0
      %899 = vmatpush1.bf16.msra.mxu0 0
      %900 = vmatprep.subr.bf16.mxu0 0
      %901 = vmatpush1.bf16.msra.mxu0 0
      %902 = vmatprep.mubr.bf16.mxu0 0
      %903 = vmatmul.mubr.bf16.gmra.mrb[0].mxu0 %v610
      %v904 = vpop.f32.mrb[0].mxu0
      %v905 = vadd.f32 %v696, %v904
      %v906 = vpop.f32.mrb[0].mxu0
      %v907 = vpop.f32.mrb[0].mxu0
      %v908 = vadd.f32 %v699, %v907
      %v909 = vpop.f32.mrb[0].mxu0
      %910 = vmatprep.mubr.bf16.mxu0 0
      %911 = vmatmul.mubr.bf16.gmra.mrb[0].mxu0 %v823
      %v912 = vpop.f32.mrb[0].mxu0
      %v913 = vadd.f32 %v704, %v912
      %v914 = vpop.f32.mrb[0].mxu0
      %v915 = vpop.f32.mrb[0].mxu0
      %v916 = vadd.f32 %v707, %v915
      %v917 = vpop.f32.mrb[0].mxu0
      %918 = vmatprep.mubr.bf16.mxu0 0
      %919 = vmatmul.mubr.bf16.gmra.mrb[0].mxu0 %v826
      %v920 = vpop.f32.mrb[0].mxu0
      %v921 = vadd.f32 %v712, %v920
      %v922 = vpop.f32.mrb[0].mxu0
      %v923 = vpop.f32.mrb[0].mxu0
      %v924 = vadd.f32 %v715, %v923
      %v925 = vpop.f32.mrb[0].mxu0
      %926 = vmatprep.mubr.bf16.mxu0 0
      %927 = vmatmul.mubr.bf16.gmra.mrb[0].mxu0 %v829
      %v928 = vpop.f32.mrb[0].mxu0
      %v929 = vadd.f32 %v720, %v928
      %v930 = vpop.f32.mrb[0].mxu0
      %v931 = vpop.f32.mrb[0].mxu0
      %v932 = vadd.f32 %v723, %v931
      %v933 = vpop.f32.mrb[0].mxu0
      %934 = vmatprep.mubr.bf16.mxu0 0
      %935 = vmatmul.mubr.bf16.gmra.mrb[0].mxu0 %v832
      %v936 = vpop.f32.mrb[0].mxu0
      %v937 = vadd.f32 %v728, %v936
      %v938 = vpop.f32.mrb[0].mxu0
      %v939 = vpop.f32.mrb[0].mxu0
      %v940 = vadd.f32 %v731, %v939
      %v941 = vpop.f32.mrb[0].mxu0
      %942 = vmatprep.mubr.bf16.mxu0 0
      %943 = vmatmul.mubr.bf16.gmra.mrb[0].mxu0 %v835
      %v944 = vpop.f32.mrb[0].mxu0
      %v945 = vadd.f32 %v736, %v944
      %v946 = vpop.f32.mrb[0].mxu0
      %v947 = vpop.f32.mrb[0].mxu0
      %v948 = vadd.f32 %v739, %v947
      %v949 = vpop.f32.mrb[0].mxu0
      %950 = vmatprep.mubr.bf16.mxu0 0
      %951 = vmatmul.mubr.bf16.gmra.mrb[0].mxu0 %v838
      %v952 = vpop.f32.mrb[0].mxu0
      %v953 = vadd.f32 %v744, %v952
      %v954 = vpop.f32.mrb[0].mxu0
      %v955 = vpop.f32.mrb[0].mxu0
      %v956 = vadd.f32 %v747, %v955
      %v957 = vpop.f32.mrb[0].mxu0
      %958 = vmatprep.mubr.bf16.mxu0 0
      %959 = vmatmul.mubr.bf16.gmra.mrb[0].mxu0 %v841
      %v960 = vpop.f32.mrb[0].mxu0
      %v961 = vadd.f32 %v752, %v960
      %v962 = vpop.f32.mrb[0].mxu0
      %v963 = vpop.f32.mrb[0].mxu0
      %v964 = vadd.f32 %v755, %v963
      %v965 = vpop.f32.mrb[0].mxu0
      %966 = vmatprep.mubr.bf16.mxu0 0
      %967 = vmatmul.mubr.bf16.gmra.mrb[0].mxu0 %v844
      %v968 = vpop.f32.mrb[0].mxu0
      %v969 = vadd.f32 %v760, %v968
      %v970 = vpop.f32.mrb[0].mxu0
      %v971 = vpop.f32.mrb[0].mxu0
      %v972 = vadd.f32 %v763, %v971
      %v973 = vpop.f32.mrb[0].mxu0
      %974 = vmatprep.mubr.bf16.mxu0 0
      %975 = vmatmul.mubr.bf16.gmra.mrb[0].mxu0 %v847
      %v976 = vpop.f32.mrb[0].mxu0
      %v977 = vadd.f32 %v768, %v976
      %v978 = vpop.f32.mrb[0].mxu0
      %v979 = vpop.f32.mrb[0].mxu0
      %v980 = vadd.f32 %v771, %v979
      %v981 = vpop.f32.mrb[0].mxu0
      %982 = vmatprep.mubr.bf16.mxu0 0
      %983 = vmatmul.mubr.bf16.gmra.mrb[0].mxu0 %v850
      %v984 = vpop.f32.mrb[0].mxu0
      %v985 = vadd.f32 %v776, %v984
      %v986 = vpop.f32.mrb[0].mxu0
      %v987 = vpop.f32.mrb[0].mxu0
      %v988 = vadd.f32 %v779, %v987
      %v989 = vpop.f32.mrb[0].mxu0
      %990 = vmatprep.mubr.bf16.mxu0 0
      %991 = vmatmul.mubr.bf16.gmra.mrb[0].mxu0 %v853
      %v992 = vpop.f32.mrb[0].mxu0
      %v993 = vadd.f32 %v784, %v992
      %v994 = vpop.f32.mrb[0].mxu0
      %v995 = vpop.f32.mrb[0].mxu0
      %v996 = vadd.f32 %v787, %v995
      %v997 = vpop.f32.mrb[0].mxu0
      %998 = vmatprep.mubr.bf16.mxu0 0
      %999 = vmatmul.mubr.bf16.gmra.mrb[0].mxu0 %v856
      %v1000 = vpop.f32.mrb[0].mxu0
      %v1001 = vadd.f32 %v792, %v1000
      %v1002 = vpop.f32.mrb[0].mxu0
      %v1003 = vpop.f32.mrb[0].mxu0
      %v1004 = vadd.f32 %v795, %v1003
      %v1005 = vpop.f32.mrb[0].mxu0
      %1006 = vmatprep.mubr.bf16.mxu0 0
      %1007 = vmatmul.mubr.bf16.gmra.mrb[0].mxu0 %v859
      %v1008 = vpop.f32.mrb[0].mxu0
      %v1009 = vadd.f32 %v800, %v1008
      %v1010 = vpop.f32.mrb[0].mxu0
      %v1011 = vpop.f32.mrb[0].mxu0
      %v1012 = vadd.f32 %v803, %v1011
      %v1013 = vpop.f32.mrb[0].mxu0
      %1014 = vmatprep.mubr.bf16.mxu0 0
      %1015 = vmatmul.mubr.bf16.gmra.mrb[0].mxu0 %v862
      %v1016 = vpop.f32.mrb[0].mxu0
      %v1017 = vadd.f32 %v808, %v1016
      %v1018 = vpop.f32.mrb[0].mxu0
      %v1019 = vpop.f32.mrb[0].mxu0
      %v1020 = vadd.f32 %v811, %v1019
      %v1021 = vpop.f32.mrb[0].mxu0
      %1022 = vmatprep.mubr.bf16.mxu0 0
      %1023 = vmatmul.mubr.bf16.gmra.mrb[0].mxu0 %v865
      %v1024 = vpop.f32.mrb[0].mxu0
      %v1025 = vadd.f32 %v816, %v1024
      %v1026 = vpop.f32.mrb[0].mxu0
      %v1027 = vpop.f32.mrb[0].mxu0
      %v1028 = vadd.f32 %v819, %v1027
      %v1029 = vpop.f32.mrb[0].mxu0
      %1030 = vdwg.mxu0
      %vm1032 = vcmask 1046528
      %v1033 = vrot.slane %v379, 1
      %v1034 = vrot.slane %v380, 1
      %v1035 = vsel %vm1032, %v1033, %v1034
      %v1036 = vrot.slane %v381, 1
      %v1037 = vsel %vm1032, %v1034, %v1036
      %v1038 = vrot.slane %v382, 1
      %v1039 = vsel %vm1032, %v1036, %v1038
      %v1040 = vrot.slane %v383, 1
      %v1041 = vsel %vm1032, %v1038, %v1040
      %v1042 = vrot.slane %v384, 1
      %v1043 = vsel %vm1032, %v1040, %v1042
      %v1044 = vrot.slane %v385, 1
      %v1045 = vsel %vm1032, %v1042, %v1044
      %v1046 = vrot.slane %v386, 1
      %v1047 = vsel %vm1032, %v1044, %v1046
      %v1048 = vrot.slane %v387, 1
      %v1049 = vsel %vm1032, %v1046, %v1048
      %v1050 = vrot.slane %v388, 1
      %v1051 = vsel %vm1032, %v1048, %v1050
      %v1052 = vrot.slane %v389, 1
      %v1053 = vsel %vm1032, %v1050, %v1052
      %v1054 = vrot.slane %v390, 1
      %v1055 = vsel %vm1032, %v1052, %v1054
      %v1056 = vrot.slane %v391, 1
      %v1057 = vsel %vm1032, %v1054, %v1056
      %v1058 = vrot.slane %v392, 1
      %v1059 = vsel %vm1032, %v1056, %v1058
      %v1060 = vrot.slane %v393, 1
      %v1061 = vsel %vm1032, %v1058, %v1060
      %v1062 = vrot.slane %v394, 1
      %v1063 = vsel %vm1032, %v1060, %v1062
      %v1064 = vrot.slane %v395, 1
      %v1065 = vsel %vm1032, %v1062, %v1064
      %v1066 = vrot.slane %v396, 1
      %v1067 = vsel %vm1032, %v1064, %v1066
      %v1068 = vrot.slane %v397, 1
      %v1069 = vsel %vm1032, %v1066, %v1068
      %v1070 = vrot.slane %v398, 1
      %v1071 = vsel %vm1032, %v1068, %v1070
      %v1072 = vrot.slane %v399, 1
      %v1073 = vsel %vm1032, %v1070, %v1072
      %v1074 = vrot.slane %v400, 1
      %v1075 = vsel %vm1032, %v1072, %v1074
      %v1076 = vrot.slane %v401, 1
      %v1077 = vsel %vm1032, %v1074, %v1076
      %v1078 = vrot.slane %v402, 1
      %v1079 = vsel %vm1032, %v1076, %v1078
      %v1080 = vrot.slane %v403, 1
      %v1081 = vsel %vm1032, %v1078, %v1080
      %v1082 = vrot.slane %v404, 1
      %v1083 = vsel %vm1032, %v1080, %v1082
      %v1084 = vrot.slane %v405, 1
      %v1085 = vsel %vm1032, %v1082, %v1084
      %v1086 = vrot.slane %v406, 1
      %v1087 = vsel %vm1032, %v1084, %v1086
      %v1088 = vrot.slane %v407, 1
      %v1089 = vsel %vm1032, %v1086, %v1088
      %v1090 = vrot.slane %v408, 1
      %v1091 = vsel %vm1032, %v1088, %v1090
      %v1092 = vrot.slane %v409, 1
      %v1093 = vsel %vm1032, %v1090, %v1092
      %vm1124 = vcmp.lt.s32.totalorder %v412, 15
      %vm1125 = vcmp.lt.s32.totalorder %v413, 15
      %v1126 = vsel %vm1124, 1, 0
      %v1127 = vsel %vm1125, 1, 0
      %vm1128 = vcmp.eq.s32.totalorder %v1126, 1
      %vm1129 = vcmp.eq.s32.totalorder %v1127, 1
      %v1130 = vsel %vm1128, %v1035, 0.0
      %v1131 = vsel %vm1129, %v1037, 0.0
      %v1132 = vsel %vm1128, %v1039, 0.0
      %v1133 = vsel %vm1129, %v1041, 0.0
      %v1134 = vsel %vm1128, %v1043, 0.0
      %v1135 = vsel %vm1129, %v1045, 0.0
      %v1136 = vsel %vm1128, %v1047, 0.0
      %v1137 = vsel %vm1129, %v1049, 0.0
      %v1138 = vsel %vm1128, %v1051, 0.0
      %v1139 = vsel %vm1129, %v1053, 0.0
      %v1140 = vsel %vm1128, %v1055, 0.0
      %v1141 = vsel %vm1129, %v1057, 0.0
      %v1142 = vsel %vm1128, %v1059, 0.0
      %v1143 = vsel %vm1129, %v1061, 0.0
      %v1144 = vsel %vm1128, %v1063, 0.0
      %v1145 = vsel %vm1129, %v1065, 0.0
      %v1146 = vsel %vm1128, %v1067, 0.0
      %v1147 = vsel %vm1129, %v1069, 0.0
      %v1148 = vsel %vm1128, %v1071, 0.0
      %v1149 = vsel %vm1129, %v1073, 0.0
      %v1150 = vsel %vm1128, %v1075, 0.0
      %v1151 = vsel %vm1129, %v1077, 0.0
      %v1152 = vsel %vm1128, %v1079, 0.0
      %v1153 = vsel %vm1129, %v1081, 0.0
      %v1154 = vsel %vm1128, %v1083, 0.0
      %v1155 = vsel %vm1129, %v1085, 0.0
      %v1156 = vsel %vm1128, %v1087, 0.0
      %v1157 = vsel %vm1129, %v1089, 0.0
      %v1158 = vsel %vm1128, %v1091, 0.0
      %v1159 = vsel %vm1129, %v1093, 0.0
      %v1160 = vpack.c.bf16 %v1131, %v1130
      %v1161 = vpack.c.bf16 %v1133, %v1132
      %v1162 = vpack.c.bf16 %v1135, %v1134
      %v1163 = vpack.c.bf16 %v1137, %v1136
      %v1164 = vpack.c.bf16 %v1139, %v1138
      %v1165 = vpack.c.bf16 %v1141, %v1140
      %v1166 = vpack.c.bf16 %v1143, %v1142
      %v1167 = vpack.c.bf16 %v1145, %v1144
      %v1168 = vpack.c.bf16 %v1147, %v1146
      %v1169 = vpack.c.bf16 %v1149, %v1148
      %v1170 = vpack.c.bf16 %v1151, %v1150
      %v1171 = vpack.c.bf16 %v1153, %v1152
      %v1172 = vpack.c.bf16 %v1155, %v1154
      %v1173 = vpack.c.bf16 %v1157, %v1156
      %v1174 = vpack.c.bf16 %v1159, %v1158
      %s1175 = scalar_lea.vmem %s3, 8
      %v1176 = vld [vmem:[%s1175] sm:$0xf]
      %v1178 = vsel %vm608, %v1160, 0
      %v1181 = vsel %vm608, %v1161, 0
      %v1184 = vsel %vm608, %v1162, 0
      %v1187 = vsel %vm608, %v1163, 0
      %v1190 = vsel %vm608, %v1164, 0
      %v1193 = vsel %vm608, %v1165, 0
      %v1196 = vsel %vm608, %v1166, 0
      %v1199 = vsel %vm608, %v1167, 0
      %v1202 = vsel %vm608, %v1168, 0
      %v1205 = vsel %vm608, %v1169, 0
      %v1208 = vsel %vm608, %v1170, 0
      %v1211 = vsel %vm608, %v1171, 0
      %v1214 = vsel %vm608, %v1172, 0
      %v1217 = vsel %vm608, %v1173, 0
      %v1220 = vsel %vm608, %v1174, 0
      %v1223 = vsel %vm657, %v1176, 0
      %1225 = vmatprep.subr.bf16.mxu0 0
      %1226 = vmatpush1.bf16.msra.mxu0 %v1223
      %1227 = vmatprep.subr.bf16.mxu0 0
      %1228 = vmatpush1.bf16.msra.mxu0 0
      %1229 = vmatprep.subr.bf16.mxu0 0
      %1230 = vmatpush1.bf16.msra.mxu0 0
      %1231 = vmatprep.subr.bf16.mxu0 0
      %1232 = vmatpush1.bf16.msra.mxu0 0
      %1233 = vmatprep.subr.bf16.mxu0 0
      %1234 = vmatpush1.bf16.msra.mxu0 0
      %1235 = vmatprep.subr.bf16.mxu0 0
      %1236 = vmatpush1.bf16.msra.mxu0 0
      %1237 = vmatprep.subr.bf16.mxu0 0
      %1238 = vmatpush1.bf16.msra.mxu0 0
      %1239 = vmatprep.subr.bf16.mxu0 0
      %1240 = vmatpush1.bf16.msra.mxu0 0
      %1241 = vmatprep.subr.bf16.mxu0 0
      %1242 = vmatpush1.bf16.msra.mxu0 0
      %1243 = vmatprep.subr.bf16.mxu0 0
      %1244 = vmatpush1.bf16.msra.mxu0 0
      %1245 = vmatprep.subr.bf16.mxu0 0
      %1246 = vmatpush1.bf16.msra.mxu0 0
      %1247 = vmatprep.subr.bf16.mxu0 0
      %1248 = vmatpush1.bf16.msra.mxu0 0
      %1249 = vmatprep.subr.bf16.mxu0 0
      %1250 = vmatpush1.bf16.msra.mxu0 0
      %1251 = vmatprep.subr.bf16.mxu0 0
      %1252 = vmatpush1.bf16.msra.mxu0 0
      %1253 = vmatprep.subr.bf16.mxu0 0
      %1254 = vmatpush1.bf16.msra.mxu0 0
      %1255 = vmatprep.subr.bf16.mxu0 0
      %1256 = vmatpush1.bf16.msra.mxu0 0
      %1257 = vmatprep.mubr.bf16.mxu0 0
      %1258 = vmatmul.mubr.bf16.gmra.mrb[0].mxu0 %v610
      %v1259 = vpop.f32.mrb[0].mxu0
      %v1260 = vadd.f32 0.0, %v1259
      %v1261 = vpop.f32.mrb[0].mxu0
      %v1262 = vpop.f32.mrb[0].mxu0
      %v1263 = vadd.f32 0.0, %v1262
      %v1264 = vpop.f32.mrb[0].mxu0
      %1265 = vmatprep.mubr.bf16.mxu0 0
      %1266 = vmatmul.mubr.bf16.gmra.mrb[0].mxu0 %v1178
      %v1267 = vpop.f32.mrb[0].mxu0
      %v1268 = vadd.f32 0.0, %v1267
      %v1269 = vpop.f32.mrb[0].mxu0
      %v1270 = vpop.f32.mrb[0].mxu0
      %v1271 = vadd.f32 0.0, %v1270
      %v1272 = vpop.f32.mrb[0].mxu0
      %1273 = vmatprep.mubr.bf16.mxu0 0
      %1274 = vmatmul.mubr.bf16.gmra.mrb[0].mxu0 %v1181
      %v1275 = vpop.f32.mrb[0].mxu0
      %v1276 = vadd.f32 0.0, %v1275
      %v1277 = vpop.f32.mrb[0].mxu0
      %v1278 = vpop.f32.mrb[0].mxu0
      %v1279 = vadd.f32 0.0, %v1278
      %v1280 = vpop.f32.mrb[0].mxu0
      %1281 = vmatprep.mubr.bf16.mxu0 0
      %1282 = vmatmul.mubr.bf16.gmra.mrb[0].mxu0 %v1184
      %v1283 = vpop.f32.mrb[0].mxu0
      %v1284 = vadd.f32 0.0, %v1283
      %v1285 = vpop.f32.mrb[0].mxu0
      %v1286 = vpop.f32.mrb[0].mxu0
      %v1287 = vadd.f32 0.0, %v1286
      %v1288 = vpop.f32.mrb[0].mxu0
      %1289 = vmatprep.mubr.bf16.mxu0 0
      %1290 = vmatmul.mubr.bf16.gmra.mrb[0].mxu0 %v1187
      %v1291 = vpop.f32.mrb[0].mxu0
      %v1292 = vadd.f32 0.0, %v1291
      %v1293 = vpop.f32.mrb[0].mxu0
      %v1294 = vpop.f32.mrb[0].mxu0
      %v1295 = vadd.f32 0.0, %v1294
      %v1296 = vpop.f32.mrb[0].mxu0
      %1297 = vmatprep.mubr.bf16.mxu0 0
      %1298 = vmatmul.mubr.bf16.gmra.mrb[0].mxu0 %v1190
      %v1299 = vpop.f32.mrb[0].mxu0
      %v1300 = vadd.f32 0.0, %v1299
      %v1301 = vpop.f32.mrb[0].mxu0
      %v1302 = vpop.f32.mrb[0].mxu0
      %v1303 = vadd.f32 0.0, %v1302
      %v1304 = vpop.f32.mrb[0].mxu0
      %1305 = vmatprep.mubr.bf16.mxu0 0
      %1306 = vmatmul.mubr.bf16.gmra.mrb[0].mxu0 %v1193
      %v1307 = vpop.f32.mrb[0].mxu0
      %v1308 = vadd.f32 0.0, %v1307
      %v1309 = vpop.f32.mrb[0].mxu0
      %v1310 = vpop.f32.mrb[0].mxu0
      %v1311 = vadd.f32 0.0, %v1310
      %v1312 = vpop.f32.mrb[0].mxu0
      %1313 = vmatprep.mubr.bf16.mxu0 0
      %1314 = vmatmul.mubr.bf16.gmra.mrb[0].mxu0 %v1196
      %v1315 = vpop.f32.mrb[0].mxu0
      %v1316 = vadd.f32 0.0, %v1315
      %v1317 = vpop.f32.mrb[0].mxu0
      %v1318 = vpop.f32.mrb[0].mxu0
      %v1319 = vadd.f32 0.0, %v1318
      %v1320 = vpop.f32.mrb[0].mxu0
      %1321 = vmatprep.mubr.bf16.mxu0 0
      %1322 = vmatmul.mubr.bf16.gmra.mrb[0].mxu0 %v1199
      %v1323 = vpop.f32.mrb[0].mxu0
      %v1324 = vadd.f32 0.0, %v1323
      %v1325 = vpop.f32.mrb[0].mxu0
      %v1326 = vpop.f32.mrb[0].mxu0
      %v1327 = vadd.f32 0.0, %v1326
      %v1328 = vpop.f32.mrb[0].mxu0
      %1329 = vmatprep.mubr.bf16.mxu0 0
      %1330 = vmatmul.mubr.bf16.gmra.mrb[0].mxu0 %v1202
      %v1331 = vpop.f32.mrb[0].mxu0
      %v1332 = vadd.f32 0.0, %v1331
      %v1333 = vpop.f32.mrb[0].mxu0
      %v1334 = vpop.f32.mrb[0].mxu0
      %v1335 = vadd.f32 0.0, %v1334
      %v1336 = vpop.f32.mrb[0].mxu0
      %1337 = vmatprep.mubr.bf16.mxu0 0
      %1338 = vmatmul.mubr.bf16.gmra.mrb[0].mxu0 %v1205
      %v1339 = vpop.f32.mrb[0].mxu0
      %v1340 = vadd.f32 0.0, %v1339
      %v1341 = vpop.f32.mrb[0].mxu0
      %v1342 = vpop.f32.mrb[0].mxu0
      %v1343 = vadd.f32 0.0, %v1342
      %v1344 = vpop.f32.mrb[0].mxu0
      %1345 = vmatprep.mubr.bf16.mxu0 0
      %1346 = vmatmul.mubr.bf16.gmra.mrb[0].mxu0 %v1208
      %v1347 = vpop.f32.mrb[0].mxu0
      %v1348 = vadd.f32 0.0, %v1347
      %v1349 = vpop.f32.mrb[0].mxu0
      %v1350 = vpop.f32.mrb[0].mxu0
      %v1351 = vadd.f32 0.0, %v1350
      %v1352 = vpop.f32.mrb[0].mxu0
      %1353 = vmatprep.mubr.bf16.mxu0 0
      %1354 = vmatmul.mubr.bf16.gmra.mrb[0].mxu0 %v1211
      %v1355 = vpop.f32.mrb[0].mxu0
      %v1356 = vadd.f32 0.0, %v1355
      %v1357 = vpop.f32.mrb[0].mxu0
      %v1358 = vpop.f32.mrb[0].mxu0
      %v1359 = vadd.f32 0.0, %v1358
      %v1360 = vpop.f32.mrb[0].mxu0
      %1361 = vmatprep.mubr.bf16.mxu0 0
      %1362 = vmatmul.mubr.bf16.gmra.mrb[0].mxu0 %v1214
      %v1363 = vpop.f32.mrb[0].mxu0
      %v1364 = vadd.f32 0.0, %v1363
      %v1365 = vpop.f32.mrb[0].mxu0
      %v1366 = vpop.f32.mrb[0].mxu0
      %v1367 = vadd.f32 0.0, %v1366
      %v1368 = vpop.f32.mrb[0].mxu0
      %1369 = vmatprep.mubr.bf16.mxu0 0
      %1370 = vmatmul.mubr.bf16.gmra.mrb[0].mxu0 %v1217
      %v1371 = vpop.f32.mrb[0].mxu0
      %v1372 = vadd.f32 0.0, %v1371
      %v1373 = vpop.f32.mrb[0].mxu0
      %v1374 = vpop.f32.mrb[0].mxu0
      %v1375 = vadd.f32 0.0, %v1374
      %v1376 = vpop.f32.mrb[0].mxu0
      %1377 = vmatprep.mubr.bf16.mxu0 0
      %1378 = vmatmul.mubr.bf16.gmra.mrb[0].mxu0 %v1220
      %v1379 = vpop.f32.mrb[0].mxu0
      %v1380 = vadd.f32 0.0, %v1379
      %v1381 = vpop.f32.mrb[0].mxu0
      %v1382 = vpop.f32.mrb[0].mxu0
      %v1383 = vadd.f32 0.0, %v1382
      %v1384 = vpop.f32.mrb[0].mxu0
      %1385 = vdwg.mxu0
      %v1386 = vadd.f32 %v905, %v1260
      %v1387 = vadd.f32 %v908, %v1263
      %v1388 = vadd.f32 %v913, %v1268
      %v1389 = vadd.f32 %v916, %v1271
      %v1390 = vadd.f32 %v921, %v1276
      %v1391 = vadd.f32 %v924, %v1279
      %v1392 = vadd.f32 %v929, %v1284
      %v1393 = vadd.f32 %v932, %v1287
      %v1394 = vadd.f32 %v937, %v1292
      %v1395 = vadd.f32 %v940, %v1295
      %v1396 = vadd.f32 %v945, %v1300
      %v1397 = vadd.f32 %v948, %v1303
      %v1398 = vadd.f32 %v953, %v1308
      %v1399 = vadd.f32 %v956, %v1311
      %v1400 = vadd.f32 %v961, %v1316
      %v1401 = vadd.f32 %v964, %v1319
      %v1402 = vadd.f32 %v969, %v1324
      %v1403 = vadd.f32 %v972, %v1327
      %v1404 = vadd.f32 %v977, %v1332
      %v1405 = vadd.f32 %v980, %v1335
      %v1406 = vadd.f32 %v985, %v1340
      %v1407 = vadd.f32 %v988, %v1343
      %v1408 = vadd.f32 %v993, %v1348
      %v1409 = vadd.f32 %v996, %v1351
      %v1410 = vadd.f32 %v1001, %v1356
      %v1411 = vadd.f32 %v1004, %v1359
      %v1412 = vadd.f32 %v1009, %v1364
      %v1413 = vadd.f32 %v1012, %v1367
      %v1414 = vadd.f32 %v1017, %v1372
      %v1415 = vadd.f32 %v1020, %v1375
      %v1416 = vadd.f32 %v1025, %v1380
      %v1417 = vadd.f32 %v1028, %v1383
      %v1418 = vrot.slane %v409, 7
      %v1419 = vsel %vm447, %v505, %v1418
      %v1420 = vsel %vm447, %v1418, %v415
      %v1423 = vsel %vm542, %v1419, 0.0
      %v1424 = vsel %vm543, %v1420, 0.0
      %v1425 = vpack.c.bf16 %v1424, %v1423
      %s1426 = scalar_lea.vmem %s3, 12
      %v1427 = vld [vmem:[%s1426] sm:$0xf]
      %v1429 = vsel %vm608, %v1425, 0
      %v1432 = vsel %vm657, %v1427, 0
      %1434 = vmatprep.subr.bf16.mxu0 0
      %1435 = vmatpush1.bf16.msra.mxu0 %v1432
      %1436 = vmatprep.subr.bf16.mxu0 0
      %1437 = vmatpush1.bf16.msra.mxu0 0
      %1438 = vmatprep.subr.bf16.mxu0 0
      %1439 = vmatpush1.bf16.msra.mxu0 0
      %1440 = vmatprep.subr.bf16.mxu0 0
      %1441 = vmatpush1.bf16.msra.mxu0 0
      %1442 = vmatprep.subr.bf16.mxu0 0
      %1443 = vmatpush1.bf16.msra.mxu0 0
      %1444 = vmatprep.subr.bf16.mxu0 0
      %1445 = vmatpush1.bf16.msra.mxu0 0
      %1446 = vmatprep.subr.bf16.mxu0 0
      %1447 = vmatpush1.bf16.msra.mxu0 0
      %1448 = vmatprep.subr.bf16.mxu0 0
      %1449 = vmatpush1.bf16.msra.mxu0 0
      %1450 = vmatprep.subr.bf16.mxu0 0
      %1451 = vmatpush1.bf16.msra.mxu0 0
      %1452 = vmatprep.subr.bf16.mxu0 0
      %1453 = vmatpush1.bf16.msra.mxu0 0
      %1454 = vmatprep.subr.bf16.mxu0 0
      %1455 = vmatpush1.bf16.msra.mxu0 0
      %1456 = vmatprep.subr.bf16.mxu0 0
      %1457 = vmatpush1.bf16.msra.mxu0 0
      %1458 = vmatprep.subr.bf16.mxu0 0
      %1459 = vmatpush1.bf16.msra.mxu0 0
      %1460 = vmatprep.subr.bf16.mxu0 0
      %1461 = vmatpush1.bf16.msra.mxu0 0
      %1462 = vmatprep.subr.bf16.mxu0 0
      %1463 = vmatpush1.bf16.msra.mxu0 0
      %1464 = vmatprep.subr.bf16.mxu0 0
      %1465 = vmatpush1.bf16.msra.mxu0 0
      %1466 = vmatprep.mubr.bf16.mxu0 0
      %1467 = vmatmul.mubr.bf16.gmra.mrb[0].mxu0 %v823
      %v1468 = vpop.f32.mrb[0].mxu0
      %v1469 = vadd.f32 0.0, %v1468
      %v1470 = vpop.f32.mrb[0].mxu0
      %v1471 = vpop.f32.mrb[0].mxu0
      %v1472 = vadd.f32 0.0, %v1471
      %v1473 = vpop.f32.mrb[0].mxu0
      %1474 = vmatprep.mubr.bf16.mxu0 0
      %1475 = vmatmul.mubr.bf16.gmra.mrb[0].mxu0 %v826
      %v1476 = vpop.f32.mrb[0].mxu0
      %v1477 = vadd.f32 0.0, %v1476
      %v1478 = vpop.f32.mrb[0].mxu0
      %v1479 = vpop.f32.mrb[0].mxu0
      %v1480 = vadd.f32 0.0, %v1479
      %v1481 = vpop.f32.mrb[0].mxu0
      %1482 = vmatprep.mubr.bf16.mxu0 0
      %1483 = vmatmul.mubr.bf16.gmra.mrb[0].mxu0 %v829
      %v1484 = vpop.f32.mrb[0].mxu0
      %v1485 = vadd.f32 0.0, %v1484
      %v1486 = vpop.f32.mrb[0].mxu0
      %v1487 = vpop.f32.mrb[0].mxu0
      %v1488 = vadd.f32 0.0, %v1487
      %v1489 = vpop.f32.mrb[0].mxu0
      %1490 = vmatprep.mubr.bf16.mxu0 0
      %1491 = vmatmul.mubr.bf16.gmra.mrb[0].mxu0 %v832
      %v1492 = vpop.f32.mrb[0].mxu0
      %v1493 = vadd.f32 0.0, %v1492
      %v1494 = vpop.f32.mrb[0].mxu0
      %v1495 = vpop.f32.mrb[0].mxu0
      %v1496 = vadd.f32 0.0, %v1495
      %v1497 = vpop.f32.mrb[0].mxu0
      %1498 = vmatprep.mubr.bf16.mxu0 0
      %1499 = vmatmul.mubr.bf16.gmra.mrb[0].mxu0 %v835
      %v1500 = vpop.f32.mrb[0].mxu0
      %v1501 = vadd.f32 0.0, %v1500
      %v1502 = vpop.f32.mrb[0].mxu0
      %v1503 = vpop.f32.mrb[0].mxu0
      %v1504 = vadd.f32 0.0, %v1503
      %v1505 = vpop.f32.mrb[0].mxu0
      %1506 = vmatprep.mubr.bf16.mxu0 0
      %1507 = vmatmul.mubr.bf16.gmra.mrb[0].mxu0 %v838
      %v1508 = vpop.f32.mrb[0].mxu0
      %v1509 = vadd.f32 0.0, %v1508
      %v1510 = vpop.f32.mrb[0].mxu0
      %v1511 = vpop.f32.mrb[0].mxu0
      %v1512 = vadd.f32 0.0, %v1511
      %v1513 = vpop.f32.mrb[0].mxu0
      %1514 = vmatprep.mubr.bf16.mxu0 0
      %1515 = vmatmul.mubr.bf16.gmra.mrb[0].mxu0 %v841
      %v1516 = vpop.f32.mrb[0].mxu0
      %v1517 = vadd.f32 0.0, %v1516
      %v1518 = vpop.f32.mrb[0].mxu0
      %v1519 = vpop.f32.mrb[0].mxu0
      %v1520 = vadd.f32 0.0, %v1519
      %v1521 = vpop.f32.mrb[0].mxu0
      %1522 = vmatprep.mubr.bf16.mxu0 0
      %1523 = vmatmul.mubr.bf16.gmra.mrb[0].mxu0 %v844
      %v1524 = vpop.f32.mrb[0].mxu0
      %v1525 = vadd.f32 0.0, %v1524
      %v1526 = vpop.f32.mrb[0].mxu0
      %v1527 = vpop.f32.mrb[0].mxu0
      %v1528 = vadd.f32 0.0, %v1527
      %v1529 = vpop.f32.mrb[0].mxu0
      %1530 = vmatprep.mubr.bf16.mxu0 0
      %1531 = vmatmul.mubr.bf16.gmra.mrb[0].mxu0 %v847
      %v1532 = vpop.f32.mrb[0].mxu0
      %v1533 = vadd.f32 0.0, %v1532
      %v1534 = vpop.f32.mrb[0].mxu0
      %v1535 = vpop.f32.mrb[0].mxu0
      %v1536 = vadd.f32 0.0, %v1535
      %v1537 = vpop.f32.mrb[0].mxu0
      %1538 = vmatprep.mubr.bf16.mxu0 0
      %1539 = vmatmul.mubr.bf16.gmra.mrb[0].mxu0 %v850
      %v1540 = vpop.f32.mrb[0].mxu0
      %v1541 = vadd.f32 0.0, %v1540
      %v1542 = vpop.f32.mrb[0].mxu0
      %v1543 = vpop.f32.mrb[0].mxu0
      %v1544 = vadd.f32 0.0, %v1543
      %v1545 = vpop.f32.mrb[0].mxu0
      %1546 = vmatprep.mubr.bf16.mxu0 0
      %1547 = vmatmul.mubr.bf16.gmra.mrb[0].mxu0 %v853
      %v1548 = vpop.f32.mrb[0].mxu0
      %v1549 = vadd.f32 0.0, %v1548
      %v1550 = vpop.f32.mrb[0].mxu0
      %v1551 = vpop.f32.mrb[0].mxu0
      %v1552 = vadd.f32 0.0, %v1551
      %v1553 = vpop.f32.mrb[0].mxu0
      %1554 = vmatprep.mubr.bf16.mxu0 0
      %1555 = vmatmul.mubr.bf16.gmra.mrb[0].mxu0 %v856
      %v1556 = vpop.f32.mrb[0].mxu0
      %v1557 = vadd.f32 0.0, %v1556
      %v1558 = vpop.f32.mrb[0].mxu0
      %v1559 = vpop.f32.mrb[0].mxu0
      %v1560 = vadd.f32 0.0, %v1559
      %v1561 = vpop.f32.mrb[0].mxu0
      %1562 = vmatprep.mubr.bf16.mxu0 0
      %1563 = vmatmul.mubr.bf16.gmra.mrb[0].mxu0 %v859
      %v1564 = vpop.f32.mrb[0].mxu0
      %v1565 = vadd.f32 0.0, %v1564
      %v1566 = vpop.f32.mrb[0].mxu0
      %v1567 = vpop.f32.mrb[0].mxu0
      %v1568 = vadd.f32 0.0, %v1567
      %v1569 = vpop.f32.mrb[0].mxu0
      %1570 = vmatprep.mubr.bf16.mxu0 0
      %1571 = vmatmul.mubr.bf16.gmra.mrb[0].mxu0 %v862
      %v1572 = vpop.f32.mrb[0].mxu0
      %v1573 = vadd.f32 0.0, %v1572
      %v1574 = vpop.f32.mrb[0].mxu0
      %v1575 = vpop.f32.mrb[0].mxu0
      %v1576 = vadd.f32 0.0, %v1575
      %v1577 = vpop.f32.mrb[0].mxu0
      %1578 = vmatprep.mubr.bf16.mxu0 0
      %1579 = vmatmul.mubr.bf16.gmra.mrb[0].mxu0 %v865
      %v1580 = vpop.f32.mrb[0].mxu0
      %v1581 = vadd.f32 0.0, %v1580
      %v1582 = vpop.f32.mrb[0].mxu0
      %v1583 = vpop.f32.mrb[0].mxu0
      %v1584 = vadd.f32 0.0, %v1583
      %v1585 = vpop.f32.mrb[0].mxu0
      %1586 = vmatprep.mubr.bf16.mxu0 0
      %1587 = vmatmul.mubr.bf16.gmra.mrb[0].mxu0 %v1429
      %v1588 = vpop.f32.mrb[0].mxu0
      %v1589 = vadd.f32 0.0, %v1588
      %v1590 = vpop.f32.mrb[0].mxu0
      %v1591 = vpop.f32.mrb[0].mxu0
      %v1592 = vadd.f32 0.0, %v1591
      %v1593 = vpop.f32.mrb[0].mxu0
      %1594 = vdwg.mxu0
      %v1595 = vadd.f32 %v1386, %v1469
      %v1596 = vadd.f32 %v1387, %v1472
      %v1597 = vadd.f32 %v1388, %v1477
      %v1598 = vadd.f32 %v1389, %v1480
      %v1599 = vadd.f32 %v1390, %v1485
      %v1600 = vadd.f32 %v1391, %v1488
      %v1601 = vadd.f32 %v1392, %v1493
      %v1602 = vadd.f32 %v1393, %v1496
      %v1603 = vadd.f32 %v1394, %v1501
      %v1604 = vadd.f32 %v1395, %v1504
      %v1605 = vadd.f32 %v1396, %v1509
      %v1606 = vadd.f32 %v1397, %v1512
      %v1607 = vadd.f32 %v1398, %v1517
      %v1608 = vadd.f32 %v1399, %v1520
      %v1609 = vadd.f32 %v1400, %v1525
      %v1610 = vadd.f32 %v1401, %v1528
      %v1611 = vadd.f32 %v1402, %v1533
      %v1612 = vadd.f32 %v1403, %v1536
      %v1613 = vadd.f32 %v1404, %v1541
      %v1614 = vadd.f32 %v1405, %v1544
      %v1615 = vadd.f32 %v1406, %v1549
      %v1616 = vadd.f32 %v1407, %v1552
      %v1617 = vadd.f32 %v1408, %v1557
      %v1618 = vadd.f32 %v1409, %v1560
      %v1619 = vadd.f32 %v1410, %v1565
      %v1620 = vadd.f32 %v1411, %v1568
      %v1621 = vadd.f32 %v1412, %v1573
      %v1622 = vadd.f32 %v1413, %v1576
      %v1623 = vadd.f32 %v1414, %v1581
      %v1624 = vadd.f32 %v1415, %v1584
      %v1625 = vadd.f32 %v1416, %v1589
      %v1626 = vadd.f32 %v1417, %v1592
      %v1627 = vpack.c.bf16 %v410, %v409
      %s1628 = scalar_lea.vmem %s3, 16
      %v1629 = vld [vmem:[%s1628] sm:$0xf]
      %v1631 = vsel %vm608, %v1627, 0
      %v1634 = vsel %vm657, %v1629, 0
      %1636 = vmatprep.subr.bf16.mxu0 0
      %1637 = vmatpush1.bf16.msra.mxu0 %v1634
      %1638 = vmatprep.subr.bf16.mxu0 0
      %1639 = vmatpush1.bf16.msra.mxu0 0
      %1640 = vmatprep.subr.bf16.mxu0 0
      %1641 = vmatpush1.bf16.msra.mxu0 0
      %1642 = vmatprep.subr.bf16.mxu0 0
      %1643 = vmatpush1.bf16.msra.mxu0 0
      %1644 = vmatprep.subr.bf16.mxu0 0
      %1645 = vmatpush1.bf16.msra.mxu0 0
      %1646 = vmatprep.subr.bf16.mxu0 0
      %1647 = vmatpush1.bf16.msra.mxu0 0
      %1648 = vmatprep.subr.bf16.mxu0 0
      %1649 = vmatpush1.bf16.msra.mxu0 0
      %1650 = vmatprep.subr.bf16.mxu0 0
      %1651 = vmatpush1.bf16.msra.mxu0 0
      %1652 = vmatprep.subr.bf16.mxu0 0
      %1653 = vmatpush1.bf16.msra.mxu0 0
      %1654 = vmatprep.subr.bf16.mxu0 0
      %1655 = vmatpush1.bf16.msra.mxu0 0
      %1656 = vmatprep.subr.bf16.mxu0 0
      %1657 = vmatpush1.bf16.msra.mxu0 0
      %1658 = vmatprep.subr.bf16.mxu0 0
      %1659 = vmatpush1.bf16.msra.mxu0 0
      %1660 = vmatprep.subr.bf16.mxu0 0
      %1661 = vmatpush1.bf16.msra.mxu0 0
      %1662 = vmatprep.subr.bf16.mxu0 0
      %1663 = vmatpush1.bf16.msra.mxu0 0
      %1664 = vmatprep.subr.bf16.mxu0 0
      %1665 = vmatpush1.bf16.msra.mxu0 0
      %1666 = vmatprep.subr.bf16.mxu0 0
      %1667 = vmatpush1.bf16.msra.mxu0 0
      %1668 = vmatprep.mubr.bf16.mxu0 0
      %1669 = vmatmul.mubr.bf16.gmra.mrb[0].mxu0 %v613
      %v1670 = vpop.f32.mrb[0].mxu0
      %v1671 = vadd.f32 0.0, %v1670
      %v1672 = vpop.f32.mrb[0].mxu0
      %v1673 = vpop.f32.mrb[0].mxu0
      %v1674 = vadd.f32 0.0, %v1673
      %v1675 = vpop.f32.mrb[0].mxu0
      %1676 = vmatprep.mubr.bf16.mxu0 0
      %1677 = vmatmul.mubr.bf16.gmra.mrb[0].mxu0 %v616
      %v1678 = vpop.f32.mrb[0].mxu0
      %v1679 = vadd.f32 0.0, %v1678
      %v1680 = vpop.f32.mrb[0].mxu0
      %v1681 = vpop.f32.mrb[0].mxu0
      %v1682 = vadd.f32 0.0, %v1681
      %v1683 = vpop.f32.mrb[0].mxu0
      %1684 = vmatprep.mubr.bf16.mxu0 0
      %1685 = vmatmul.mubr.bf16.gmra.mrb[0].mxu0 %v619
      %v1686 = vpop.f32.mrb[0].mxu0
      %v1687 = vadd.f32 0.0, %v1686
      %v1688 = vpop.f32.mrb[0].mxu0
      %v1689 = vpop.f32.mrb[0].mxu0
      %v1690 = vadd.f32 0.0, %v1689
      %v1691 = vpop.f32.mrb[0].mxu0
      %1692 = vmatprep.mubr.bf16.mxu0 0
      %1693 = vmatmul.mubr.bf16.gmra.mrb[0].mxu0 %v622
      %v1694 = vpop.f32.mrb[0].mxu0
      %v1695 = vadd.f32 0.0, %v1694
      %v1696 = vpop.f32.mrb[0].mxu0
      %v1697 = vpop.f32.mrb[0].mxu0
      %v1698 = vadd.f32 0.0, %v1697
      %v1699 = vpop.f32.mrb[0].mxu0
      %1700 = vmatprep.mubr.bf16.mxu0 0
      %1701 = vmatmul.mubr.bf16.gmra.mrb[0].mxu0 %v625
      %v1702 = vpop.f32.mrb[0].mxu0
      %v1703 = vadd.f32 0.0, %v1702
      %v1704 = vpop.f32.mrb[0].mxu0
      %v1705 = vpop.f32.mrb[0].mxu0
      %v1706 = vadd.f32 0.0, %v1705
      %v1707 = vpop.f32.mrb[0].mxu0
      %1708 = vmatprep.mubr.bf16.mxu0 0
      %1709 = vmatmul.mubr.bf16.gmra.mrb[0].mxu0 %v628
      %v1710 = vpop.f32.mrb[0].mxu0
      %v1711 = vadd.f32 0.0, %v1710
      %v1712 = vpop.f32.mrb[0].mxu0
      %v1713 = vpop.f32.mrb[0].mxu0
      %v1714 = vadd.f32 0.0, %v1713
      %v1715 = vpop.f32.mrb[0].mxu0
      %1716 = vmatprep.mubr.bf16.mxu0 0
      %1717 = vmatmul.mubr.bf16.gmra.mrb[0].mxu0 %v631
      %v1718 = vpop.f32.mrb[0].mxu0
      %v1719 = vadd.f32 0.0, %v1718
      %v1720 = vpop.f32.mrb[0].mxu0
      %v1721 = vpop.f32.mrb[0].mxu0
      %v1722 = vadd.f32 0.0, %v1721
      %v1723 = vpop.f32.mrb[0].mxu0
      %1724 = vmatprep.mubr.bf16.mxu0 0
      %1725 = vmatmul.mubr.bf16.gmra.mrb[0].mxu0 %v634
      %v1726 = vpop.f32.mrb[0].mxu0
      %v1727 = vadd.f32 0.0, %v1726
      %v1728 = vpop.f32.mrb[0].mxu0
      %v1729 = vpop.f32.mrb[0].mxu0
      %v1730 = vadd.f32 0.0, %v1729
      %v1731 = vpop.f32.mrb[0].mxu0
      %1732 = vmatprep.mubr.bf16.mxu0 0
      %1733 = vmatmul.mubr.bf16.gmra.mrb[0].mxu0 %v637
      %v1734 = vpop.f32.mrb[0].mxu0
      %v1735 = vadd.f32 0.0, %v1734
      %v1736 = vpop.f32.mrb[0].mxu0
      %v1737 = vpop.f32.mrb[0].mxu0
      %v1738 = vadd.f32 0.0, %v1737
      %v1739 = vpop.f32.mrb[0].mxu0
      %1740 = vmatprep.mubr.bf16.mxu0 0
      %1741 = vmatmul.mubr.bf16.gmra.mrb[0].mxu0 %v640
      %v1742 = vpop.f32.mrb[0].mxu0
      %v1743 = vadd.f32 0.0, %v1742
      %v1744 = vpop.f32.mrb[0].mxu0
      %v1745 = vpop.f32.mrb[0].mxu0
      %v1746 = vadd.f32 0.0, %v1745
      %v1747 = vpop.f32.mrb[0].mxu0
      %1748 = vmatprep.mubr.bf16.mxu0 0
      %1749 = vmatmul.mubr.bf16.gmra.mrb[0].mxu0 %v643
      %v1750 = vpop.f32.mrb[0].mxu0
      %v1751 = vadd.f32 0.0, %v1750
      %v1752 = vpop.f32.mrb[0].mxu0
      %v1753 = vpop.f32.mrb[0].mxu0
      %v1754 = vadd.f32 0.0, %v1753
      %v1755 = vpop.f32.mrb[0].mxu0
      %1756 = vmatprep.mubr.bf16.mxu0 0
      %1757 = vmatmul.mubr.bf16.gmra.mrb[0].mxu0 %v646
      %v1758 = vpop.f32.mrb[0].mxu0
      %v1759 = vadd.f32 0.0, %v1758
      %v1760 = vpop.f32.mrb[0].mxu0
      %v1761 = vpop.f32.mrb[0].mxu0
      %v1762 = vadd.f32 0.0, %v1761
      %v1763 = vpop.f32.mrb[0].mxu0
      %1764 = vmatprep.mubr.bf16.mxu0 0
      %1765 = vmatmul.mubr.bf16.gmra.mrb[0].mxu0 %v649
      %v1766 = vpop.f32.mrb[0].mxu0
      %v1767 = vadd.f32 0.0, %v1766
      %v1768 = vpop.f32.mrb[0].mxu0
      %v1769 = vpop.f32.mrb[0].mxu0
      %v1770 = vadd.f32 0.0, %v1769
      %v1771 = vpop.f32.mrb[0].mxu0
      %1772 = vmatprep.mubr.bf16.mxu0 0
      %1773 = vmatmul.mubr.bf16.gmra.mrb[0].mxu0 %v652
      %v1774 = vpop.f32.mrb[0].mxu0
      %v1775 = vadd.f32 0.0, %v1774
      %v1776 = vpop.f32.mrb[0].mxu0
      %v1777 = vpop.f32.mrb[0].mxu0
      %v1778 = vadd.f32 0.0, %v1777
      %v1779 = vpop.f32.mrb[0].mxu0
      %1780 = vmatprep.mubr.bf16.mxu0 0
      %1781 = vmatmul.mubr.bf16.gmra.mrb[0].mxu0 %v655
      %v1782 = vpop.f32.mrb[0].mxu0
      %v1783 = vadd.f32 0.0, %v1782
      %v1784 = vpop.f32.mrb[0].mxu0
      %v1785 = vpop.f32.mrb[0].mxu0
      %v1786 = vadd.f32 0.0, %v1785
      %v1787 = vpop.f32.mrb[0].mxu0
      %1788 = vmatprep.mubr.bf16.mxu0 0
      %1789 = vmatmul.mubr.bf16.gmra.mrb[0].mxu0 %v1631
      %v1790 = vpop.f32.mrb[0].mxu0
      %v1791 = vadd.f32 0.0, %v1790
      %v1792 = vpop.f32.mrb[0].mxu0
      %v1793 = vpop.f32.mrb[0].mxu0
      %v1794 = vadd.f32 0.0, %v1793
      %v1795 = vpop.f32.mrb[0].mxu0
      %1796 = vdwg.mxu0
      %v1797 = vadd.f32 %v1595, %v1671
      %v1798 = vadd.f32 %v1596, %v1674
      %v1799 = vadd.f32 %v1597, %v1679
      %v1800 = vadd.f32 %v1598, %v1682
      %v1801 = vadd.f32 %v1599, %v1687
      %v1802 = vadd.f32 %v1600, %v1690
      %v1803 = vadd.f32 %v1601, %v1695
      %v1804 = vadd.f32 %v1602, %v1698
      %v1805 = vadd.f32 %v1603, %v1703
      %v1806 = vadd.f32 %v1604, %v1706
      %v1807 = vadd.f32 %v1605, %v1711
      %v1808 = vadd.f32 %v1606, %v1714
      %v1809 = vadd.f32 %v1607, %v1719
      %v1810 = vadd.f32 %v1608, %v1722
      %v1811 = vadd.f32 %v1609, %v1727
      %v1812 = vadd.f32 %v1610, %v1730
      %v1813 = vadd.f32 %v1611, %v1735
      %v1814 = vadd.f32 %v1612, %v1738
      %v1815 = vadd.f32 %v1613, %v1743
      %v1816 = vadd.f32 %v1614, %v1746
      %v1817 = vadd.f32 %v1615, %v1751
      %v1818 = vadd.f32 %v1616, %v1754
      %v1819 = vadd.f32 %v1617, %v1759
      %v1820 = vadd.f32 %v1618, %v1762
      %v1821 = vadd.f32 %v1619, %v1767
      %v1822 = vadd.f32 %v1620, %v1770
      %v1823 = vadd.f32 %v1621, %v1775
      %v1824 = vadd.f32 %v1622, %v1778
      %v1825 = vadd.f32 %v1623, %v1783
      %v1826 = vadd.f32 %v1624, %v1786
      %v1827 = vadd.f32 %v1625, %v1791
      %v1828 = vadd.f32 %v1626, %v1794
      %v1829 = vrot.slane %v410, 1
      %v1830 = vsel %vm1032, %v1092, %v1829
      %v1834 = vsel %vm1032, %v1829, %v1033
      %v1835 = vsel %vm1128, %v1830, 0.0
      %v1836 = vsel %vm1129, %v1834, 0.0
      %v1837 = vpack.c.bf16 %v1836, %v1835
      %s1838 = scalar_lea.vmem %s3, 20
      %v1839 = vld [vmem:[%s1838] sm:$0xf]
      %v1841 = vsel %vm608, %v1837, 0
      %v1844 = vsel %vm657, %v1839, 0
      %1846 = vmatprep.subr.bf16.mxu0 0
      %1847 = vmatpush1.bf16.msra.mxu0 %v1844
      %1848 = vmatprep.subr.bf16.mxu0 0
      %1849 = vmatpush1.bf16.msra.mxu0 0
      %1850 = vmatprep.subr.bf16.mxu0 0
      %1851 = vmatpush1.bf16.msra.mxu0 0
      %1852 = vmatprep.subr.bf16.mxu0 0
      %1853 = vmatpush1.bf16.msra.mxu0 0
      %1854 = vmatprep.subr.bf16.mxu0 0
      %1855 = vmatpush1.bf16.msra.mxu0 0
      %1856 = vmatprep.subr.bf16.mxu0 0
      %1857 = vmatpush1.bf16.msra.mxu0 0
      %1858 = vmatprep.subr.bf16.mxu0 0
      %1859 = vmatpush1.bf16.msra.mxu0 0
      %1860 = vmatprep.subr.bf16.mxu0 0
      %1861 = vmatpush1.bf16.msra.mxu0 0
      %1862 = vmatprep.subr.bf16.mxu0 0
      %1863 = vmatpush1.bf16.msra.mxu0 0
      %1864 = vmatprep.subr.bf16.mxu0 0
      %1865 = vmatpush1.bf16.msra.mxu0 0
      %1866 = vmatprep.subr.bf16.mxu0 0
      %1867 = vmatpush1.bf16.msra.mxu0 0
      %1868 = vmatprep.subr.bf16.mxu0 0
      %1869 = vmatpush1.bf16.msra.mxu0 0
      %1870 = vmatprep.subr.bf16.mxu0 0
      %1871 = vmatpush1.bf16.msra.mxu0 0
      %1872 = vmatprep.subr.bf16.mxu0 0
      %1873 = vmatpush1.bf16.msra.mxu0 0
      %1874 = vmatprep.subr.bf16.mxu0 0
      %1875 = vmatpush1.bf16.msra.mxu0 0
      %1876 = vmatprep.subr.bf16.mxu0 0
      %1877 = vmatpush1.bf16.msra.mxu0 0
      %1878 = vmatprep.mubr.bf16.mxu0 0
      %1879 = vmatmul.mubr.bf16.gmra.mrb[0].mxu0 %v1178
      %v1880 = vpop.f32.mrb[0].mxu0
      %v1881 = vadd.f32 0.0, %v1880
      %v1882 = vpop.f32.mrb[0].mxu0
      %v1883 = vpop.f32.mrb[0].mxu0
      %v1884 = vadd.f32 0.0, %v1883
      %v1885 = vpop.f32.mrb[0].mxu0
      %1886 = vmatprep.mubr.bf16.mxu0 0
      %1887 = vmatmul.mubr.bf16.gmra.mrb[0].mxu0 %v1181
      %v1888 = vpop.f32.mrb[0].mxu0
      %v1889 = vadd.f32 0.0, %v1888
      %v1890 = vpop.f32.mrb[0].mxu0
      %v1891 = vpop.f32.mrb[0].mxu0
      %v1892 = vadd.f32 0.0, %v1891
      %v1893 = vpop.f32.mrb[0].mxu0
      %1894 = vmatprep.mubr.bf16.mxu0 0
      %1895 = vmatmul.mubr.bf16.gmra.mrb[0].mxu0 %v1184
      %v1896 = vpop.f32.mrb[0].mxu0
      %v1897 = vadd.f32 0.0, %v1896
      %v1898 = vpop.f32.mrb[0].mxu0
      %v1899 = vpop.f32.mrb[0].mxu0
      %v1900 = vadd.f32 0.0, %v1899
      %v1901 = vpop.f32.mrb[0].mxu0
      %1902 = vmatprep.mubr.bf16.mxu0 0
      %1903 = vmatmul.mubr.bf16.gmra.mrb[0].mxu0 %v1187
      %v1904 = vpop.f32.mrb[0].mxu0
      %v1905 = vadd.f32 0.0, %v1904
      %v1906 = vpop.f32.mrb[0].mxu0
      %v1907 = vpop.f32.mrb[0].mxu0
      %v1908 = vadd.f32 0.0, %v1907
      %v1909 = vpop.f32.mrb[0].mxu0
      %1910 = vmatprep.mubr.bf16.mxu0 0
      %1911 = vmatmul.mubr.bf16.gmra.mrb[0].mxu0 %v1190
      %v1912 = vpop.f32.mrb[0].mxu0
      %v1913 = vadd.f32 0.0, %v1912
      %v1914 = vpop.f32.mrb[0].mxu0
      %v1915 = vpop.f32.mrb[0].mxu0
      %v1916 = vadd.f32 0.0, %v1915
      %v1917 = vpop.f32.mrb[0].mxu0
      %1918 = vmatprep.mubr.bf16.mxu0 0
      %1919 = vmatmul.mubr.bf16.gmra.mrb[0].mxu0 %v1193
      %v1920 = vpop.f32.mrb[0].mxu0
      %v1921 = vadd.f32 0.0, %v1920
      %v1922 = vpop.f32.mrb[0].mxu0
      %v1923 = vpop.f32.mrb[0].mxu0
      %v1924 = vadd.f32 0.0, %v1923
      %v1925 = vpop.f32.mrb[0].mxu0
      %1926 = vmatprep.mubr.bf16.mxu0 0
      %1927 = vmatmul.mubr.bf16.gmra.mrb[0].mxu0 %v1196
      %v1928 = vpop.f32.mrb[0].mxu0
      %v1929 = vadd.f32 0.0, %v1928
      %v1930 = vpop.f32.mrb[0].mxu0
      %v1931 = vpop.f32.mrb[0].mxu0
      %v1932 = vadd.f32 0.0, %v1931
      %v1933 = vpop.f32.mrb[0].mxu0
      %1934 = vmatprep.mubr.bf16.mxu0 0
      %1935 = vmatmul.mubr.bf16.gmra.mrb[0].mxu0 %v1199
      %v1936 = vpop.f32.mrb[0].mxu0
      %v1937 = vadd.f32 0.0, %v1936
      %v1938 = vpop.f32.mrb[0].mxu0
      %v1939 = vpop.f32.mrb[0].mxu0
      %v1940 = vadd.f32 0.0, %v1939
      %v1941 = vpop.f32.mrb[0].mxu0
      %1942 = vmatprep.mubr.bf16.mxu0 0
      %1943 = vmatmul.mubr.bf16.gmra.mrb[0].mxu0 %v1202
      %v1944 = vpop.f32.mrb[0].mxu0
      %v1945 = vadd.f32 0.0, %v1944
      %v1946 = vpop.f32.mrb[0].mxu0
      %v1947 = vpop.f32.mrb[0].mxu0
      %v1948 = vadd.f32 0.0, %v1947
      %v1949 = vpop.f32.mrb[0].mxu0
      %1950 = vmatprep.mubr.bf16.mxu0 0
      %1951 = vmatmul.mubr.bf16.gmra.mrb[0].mxu0 %v1205
      %v1952 = vpop.f32.mrb[0].mxu0
      %v1953 = vadd.f32 0.0, %v1952
      %v1954 = vpop.f32.mrb[0].mxu0
      %v1955 = vpop.f32.mrb[0].mxu0
      %v1956 = vadd.f32 0.0, %v1955
      %v1957 = vpop.f32.mrb[0].mxu0
      %1958 = vmatprep.mubr.bf16.mxu0 0
      %1959 = vmatmul.mubr.bf16.gmra.mrb[0].mxu0 %v1208
      %v1960 = vpop.f32.mrb[0].mxu0
      %v1961 = vadd.f32 0.0, %v1960
      %v1962 = vpop.f32.mrb[0].mxu0
      %v1963 = vpop.f32.mrb[0].mxu0
      %v1964 = vadd.f32 0.0, %v1963
      %v1965 = vpop.f32.mrb[0].mxu0
      %1966 = vmatprep.mubr.bf16.mxu0 0
      %1967 = vmatmul.mubr.bf16.gmra.mrb[0].mxu0 %v1211
      %v1968 = vpop.f32.mrb[0].mxu0
      %v1969 = vadd.f32 0.0, %v1968
      %v1970 = vpop.f32.mrb[0].mxu0
      %v1971 = vpop.f32.mrb[0].mxu0
      %v1972 = vadd.f32 0.0, %v1971
      %v1973 = vpop.f32.mrb[0].mxu0
      %1974 = vmatprep.mubr.bf16.mxu0 0
      %1975 = vmatmul.mubr.bf16.gmra.mrb[0].mxu0 %v1214
      %v1976 = vpop.f32.mrb[0].mxu0
      %v1977 = vadd.f32 0.0, %v1976
      %v1978 = vpop.f32.mrb[0].mxu0
      %v1979 = vpop.f32.mrb[0].mxu0
      %v1980 = vadd.f32 0.0, %v1979
      %v1981 = vpop.f32.mrb[0].mxu0
      %1982 = vmatprep.mubr.bf16.mxu0 0
      %1983 = vmatmul.mubr.bf16.gmra.mrb[0].mxu0 %v1217
      %v1984 = vpop.f32.mrb[0].mxu0
      %v1985 = vadd.f32 0.0, %v1984
      %v1986 = vpop.f32.mrb[0].mxu0
      %v1987 = vpop.f32.mrb[0].mxu0
      %v1988 = vadd.f32 0.0, %v1987
      %v1989 = vpop.f32.mrb[0].mxu0
      %1990 = vmatprep.mubr.bf16.mxu0 0
      %1991 = vmatmul.mubr.bf16.gmra.mrb[0].mxu0 %v1220
      %v1992 = vpop.f32.mrb[0].mxu0
      %v1993 = vadd.f32 0.0, %v1992
      %v1994 = vpop.f32.mrb[0].mxu0
      %v1995 = vpop.f32.mrb[0].mxu0
      %v1996 = vadd.f32 0.0, %v1995
      %v1997 = vpop.f32.mrb[0].mxu0
      %1998 = vmatprep.mubr.bf16.mxu0 0
      %1999 = vmatmul.mubr.bf16.gmra.mrb[0].mxu0 %v1841
      %v2000 = vpop.f32.mrb[0].mxu0
      %v2001 = vadd.f32 0.0, %v2000
      %v2002 = vpop.f32.mrb[0].mxu0
      %v2003 = vpop.f32.mrb[0].mxu0
      %v2004 = vadd.f32 0.0, %v2003
      %v2005 = vpop.f32.mrb[0].mxu0
      %2006 = vdwg.mxu0
      %v2007 = vadd.f32 %v1797, %v1881
      %v2008 = vadd.f32 %v1798, %v1884
      %v2009 = vadd.f32 %v1799, %v1889
      %v2010 = vadd.f32 %v1800, %v1892
      %v2011 = vadd.f32 %v1801, %v1897
      %v2012 = vadd.f32 %v1802, %v1900
      %v2013 = vadd.f32 %v1803, %v1905
      %v2014 = vadd.f32 %v1804, %v1908
      %v2015 = vadd.f32 %v1805, %v1913
      %v2016 = vadd.f32 %v1806, %v1916
      %v2017 = vadd.f32 %v1807, %v1921
      %v2018 = vadd.f32 %v1808, %v1924
      %v2019 = vadd.f32 %v1809, %v1929
      %v2020 = vadd.f32 %v1810, %v1932
      %v2021 = vadd.f32 %v1811, %v1937
      %v2022 = vadd.f32 %v1812, %v1940
      %v2023 = vadd.f32 %v1813, %v1945
      %v2024 = vadd.f32 %v1814, %v1948
      %v2025 = vadd.f32 %v1815, %v1953
      %v2026 = vadd.f32 %v1816, %v1956
      %v2027 = vadd.f32 %v1817, %v1961
      %v2028 = vadd.f32 %v1818, %v1964
      %v2029 = vadd.f32 %v1819, %v1969
      %v2030 = vadd.f32 %v1820, %v1972
      %v2031 = vadd.f32 %v1821, %v1977
      %v2032 = vadd.f32 %v1822, %v1980
      %v2033 = vadd.f32 %v1823, %v1985
      %v2034 = vadd.f32 %v1824, %v1988
      %v2035 = vadd.f32 %v1825, %v1993
      %v2036 = vadd.f32 %v1826, %v1996
      %v2037 = vadd.f32 %v1827, %v2001
      %v2038 = vadd.f32 %v1828, %v2004
      %s2039 = scalar_lea.vmem %s3, 24
      %v2040 = vld [vmem:[%s2039] sm:$0xf]
      %v2042 = vsel %vm657, %v2040, 0
      %2044 = vmatprep.subr.bf16.mxu0 0
      %2045 = vmatpush1.bf16.msra.mxu0 %v2042
      %2046 = vmatprep.subr.bf16.mxu0 0
      %2047 = vmatpush1.bf16.msra.mxu0 0
      %2048 = vmatprep.subr.bf16.mxu0 0
      %2049 = vmatpush1.bf16.msra.mxu0 0
      %2050 = vmatprep.subr.bf16.mxu0 0
      %2051 = vmatpush1.bf16.msra.mxu0 0
      %2052 = vmatprep.subr.bf16.mxu0 0
      %2053 = vmatpush1.bf16.msra.mxu0 0
      %2054 = vmatprep.subr.bf16.mxu0 0
      %2055 = vmatpush1.bf16.msra.mxu0 0
      %2056 = vmatprep.subr.bf16.mxu0 0
      %2057 = vmatpush1.bf16.msra.mxu0 0
      %2058 = vmatprep.subr.bf16.mxu0 0
      %2059 = vmatpush1.bf16.msra.mxu0 0
      %2060 = vmatprep.subr.bf16.mxu0 0
      %2061 = vmatpush1.bf16.msra.mxu0 0
      %2062 = vmatprep.subr.bf16.mxu0 0
      %2063 = vmatpush1.bf16.msra.mxu0 0
      %2064 = vmatprep.subr.bf16.mxu0 0
      %2065 = vmatpush1.bf16.msra.mxu0 0
      %2066 = vmatprep.subr.bf16.mxu0 0
      %2067 = vmatpush1.bf16.msra.mxu0 0
      %2068 = vmatprep.subr.bf16.mxu0 0
      %2069 = vmatpush1.bf16.msra.mxu0 0
      %2070 = vmatprep.subr.bf16.mxu0 0
      %2071 = vmatpush1.bf16.msra.mxu0 0
      %2072 = vmatprep.subr.bf16.mxu0 0
      %2073 = vmatpush1.bf16.msra.mxu0 0
      %2074 = vmatprep.subr.bf16.mxu0 0
      %2075 = vmatpush1.bf16.msra.mxu0 0
      %2076 = vmatprep.mubr.bf16.mxu0 0
      %2077 = vmatmul.mubr.bf16.gmra.mrb[0].mxu0 %v826
      %v2078 = vpop.f32.mrb[0].mxu0
      %v2079 = vadd.f32 0.0, %v2078
      %v2080 = vpop.f32.mrb[0].mxu0
      %v2081 = vpop.f32.mrb[0].mxu0
      %v2082 = vadd.f32 0.0, %v2081
      %v2083 = vpop.f32.mrb[0].mxu0
      %2084 = vmatprep.mubr.bf16.mxu0 0
      %2085 = vmatmul.mubr.bf16.gmra.mrb[0].mxu0 %v829
      %v2086 = vpop.f32.mrb[0].mxu0
      %v2087 = vadd.f32 0.0, %v2086
      %v2088 = vpop.f32.mrb[0].mxu0
      %v2089 = vpop.f32.mrb[0].mxu0
      %v2090 = vadd.f32 0.0, %v2089
      %v2091 = vpop.f32.mrb[0].mxu0
      %2092 = vmatprep.mubr.bf16.mxu0 0
      %2093 = vmatmul.mubr.bf16.gmra.mrb[0].mxu0 %v832
      %v2094 = vpop.f32.mrb[0].mxu0
      %v2095 = vadd.f32 0.0, %v2094
      %v2096 = vpop.f32.mrb[0].mxu0
      %v2097 = vpop.f32.mrb[0].mxu0
      %v2098 = vadd.f32 0.0, %v2097
      %v2099 = vpop.f32.mrb[0].mxu0
      %2100 = vmatprep.mubr.bf16.mxu0 0
      %2101 = vmatmul.mubr.bf16.gmra.mrb[0].mxu0 %v835
      %v2102 = vpop.f32.mrb[0].mxu0
      %v2103 = vadd.f32 0.0, %v2102
      %v2104 = vpop.f32.mrb[0].mxu0
      %v2105 = vpop.f32.mrb[0].mxu0
      %v2106 = vadd.f32 0.0, %v2105
      %v2107 = vpop.f32.mrb[0].mxu0
      %2108 = vmatprep.mubr.bf16.mxu0 0
      %2109 = vmatmul.mubr.bf16.gmra.mrb[0].mxu0 %v838
      %v2110 = vpop.f32.mrb[0].mxu0
      %v2111 = vadd.f32 0.0, %v2110
      %v2112 = vpop.f32.mrb[0].mxu0
      %v2113 = vpop.f32.mrb[0].mxu0
      %v2114 = vadd.f32 0.0, %v2113
      %v2115 = vpop.f32.mrb[0].mxu0
      %2116 = vmatprep.mubr.bf16.mxu0 0
      %2117 = vmatmul.mubr.bf16.gmra.mrb[0].mxu0 %v841
      %v2118 = vpop.f32.mrb[0].mxu0
      %v2119 = vadd.f32 0.0, %v2118
      %v2120 = vpop.f32.mrb[0].mxu0
      %v2121 = vpop.f32.mrb[0].mxu0
      %v2122 = vadd.f32 0.0, %v2121
      %v2123 = vpop.f32.mrb[0].mxu0
      %2124 = vmatprep.mubr.bf16.mxu0 0
      %2125 = vmatmul.mubr.bf16.gmra.mrb[0].mxu0 %v844
      %v2126 = vpop.f32.mrb[0].mxu0
      %v2127 = vadd.f32 0.0, %v2126
      %v2128 = vpop.f32.mrb[0].mxu0
      %v2129 = vpop.f32.mrb[0].mxu0
      %v2130 = vadd.f32 0.0, %v2129
      %v2131 = vpop.f32.mrb[0].mxu0
      %2132 = vmatprep.mubr.bf16.mxu0 0
      %2133 = vmatmul.mubr.bf16.gmra.mrb[0].mxu0 %v847
      %v2134 = vpop.f32.mrb[0].mxu0
      %v2135 = vadd.f32 0.0, %v2134
      %v2136 = vpop.f32.mrb[0].mxu0
      %v2137 = vpop.f32.mrb[0].mxu0
      %v2138 = vadd.f32 0.0, %v2137
      %v2139 = vpop.f32.mrb[0].mxu0
      %2140 = vmatprep.mubr.bf16.mxu0 0
      %2141 = vmatmul.mubr.bf16.gmra.mrb[0].mxu0 %v850
      %v2142 = vpop.f32.mrb[0].mxu0
      %v2143 = vadd.f32 0.0, %v2142
      %v2144 = vpop.f32.mrb[0].mxu0
      %v2145 = vpop.f32.mrb[0].mxu0
      %v2146 = vadd.f32 0.0, %v2145
      %v2147 = vpop.f32.mrb[0].mxu0
      %2148 = vmatprep.mubr.bf16.mxu0 0
      %2149 = vmatmul.mubr.bf16.gmra.mrb[0].mxu0 %v853
      %v2150 = vpop.f32.mrb[0].mxu0
      %v2151 = vadd.f32 0.0, %v2150
      %v2152 = vpop.f32.mrb[0].mxu0
      %v2153 = vpop.f32.mrb[0].mxu0
      %v2154 = vadd.f32 0.0, %v2153
      %v2155 = vpop.f32.mrb[0].mxu0
      %2156 = vmatprep.mubr.bf16.mxu0 0
      %2157 = vmatmul.mubr.bf16.gmra.mrb[0].mxu0 %v856
      %v2158 = vpop.f32.mrb[0].mxu0
      %v2159 = vadd.f32 0.0, %v2158
      %v2160 = vpop.f32.mrb[0].mxu0
      %v2161 = vpop.f32.mrb[0].mxu0
      %v2162 = vadd.f32 0.0, %v2161
      %v2163 = vpop.f32.mrb[0].mxu0
      %2164 = vmatprep.mubr.bf16.mxu0 0
      %2165 = vmatmul.mubr.bf16.gmra.mrb[0].mxu0 %v859
      %v2166 = vpop.f32.mrb[0].mxu0
      %v2167 = vadd.f32 0.0, %v2166
      %v2168 = vpop.f32.mrb[0].mxu0
      %v2169 = vpop.f32.mrb[0].mxu0
      %v2170 = vadd.f32 0.0, %v2169
      %v2171 = vpop.f32.mrb[0].mxu0
      %2172 = vmatprep.mubr.bf16.mxu0 0
      %2173 = vmatmul.mubr.bf16.gmra.mrb[0].mxu0 %v862
      %v2174 = vpop.f32.mrb[0].mxu0
      %v2175 = vadd.f32 0.0, %v2174
      %v2176 = vpop.f32.mrb[0].mxu0
      %v2177 = vpop.f32.mrb[0].mxu0
      %v2178 = vadd.f32 0.0, %v2177
      %v2179 = vpop.f32.mrb[0].mxu0
      %2180 = vmatprep.mubr.bf16.mxu0 0
      %2181 = vmatmul.mubr.bf16.gmra.mrb[0].mxu0 %v865
      %v2182 = vpop.f32.mrb[0].mxu0
      %v2183 = vadd.f32 0.0, %v2182
      %v2184 = vpop.f32.mrb[0].mxu0
      %v2185 = vpop.f32.mrb[0].mxu0
      %v2186 = vadd.f32 0.0, %v2185
      %v2187 = vpop.f32.mrb[0].mxu0
      %2188 = vmatprep.mubr.bf16.mxu0 0
      %2189 = vmatmul.mubr.bf16.gmra.mrb[0].mxu0 %v1429
      %v2190 = vpop.f32.mrb[0].mxu0
      %v2191 = vadd.f32 0.0, %v2190
      %v2192 = vpop.f32.mrb[0].mxu0
      %v2193 = vpop.f32.mrb[0].mxu0
      %v2194 = vadd.f32 0.0, %v2193
      %v2195 = vpop.f32.mrb[0].mxu0
      %2196 = vmatprep.mubr.bf16.mxu0 0
      %2197 = vmatmul.mubr.bf16.gmra.mrb[0].mxu0 %v610
      %v2198 = vpop.f32.mrb[0].mxu0
      %v2199 = vadd.f32 0.0, %v2198
      %v2200 = vpop.f32.mrb[0].mxu0
      %v2201 = vpop.f32.mrb[0].mxu0
      %v2202 = vadd.f32 0.0, %v2201
      %v2203 = vpop.f32.mrb[0].mxu0
      %2204 = vdwg.mxu0
      %v2205 = vadd.f32 %v2007, %v2079
      %v2206 = vadd.f32 %v2008, %v2082
      %v2207 = vadd.f32 %v2009, %v2087
      %v2208 = vadd.f32 %v2010, %v2090
      %v2209 = vadd.f32 %v2011, %v2095
      %v2210 = vadd.f32 %v2012, %v2098
      %v2211 = vadd.f32 %v2013, %v2103
      %v2212 = vadd.f32 %v2014, %v2106
      %v2213 = vadd.f32 %v2015, %v2111
      %v2214 = vadd.f32 %v2016, %v2114
      %v2215 = vadd.f32 %v2017, %v2119
      %v2216 = vadd.f32 %v2018, %v2122
      %v2217 = vadd.f32 %v2019, %v2127
      %v2218 = vadd.f32 %v2020, %v2130
      %v2219 = vadd.f32 %v2021, %v2135
      %v2220 = vadd.f32 %v2022, %v2138
      %v2221 = vadd.f32 %v2023, %v2143
      %v2222 = vadd.f32 %v2024, %v2146
      %v2223 = vadd.f32 %v2025, %v2151
      %v2224 = vadd.f32 %v2026, %v2154
      %v2225 = vadd.f32 %v2027, %v2159
      %v2226 = vadd.f32 %v2028, %v2162
      %v2227 = vadd.f32 %v2029, %v2167
      %v2228 = vadd.f32 %v2030, %v2170
      %v2229 = vadd.f32 %v2031, %v2175
      %v2230 = vadd.f32 %v2032, %v2178
      %v2231 = vadd.f32 %v2033, %v2183
      %v2232 = vadd.f32 %v2034, %v2186
      %v2233 = vadd.f32 %v2035, %v2191
      %v2234 = vadd.f32 %v2036, %v2194
      %v2235 = vadd.f32 %v2037, %v2199
      %v2236 = vadd.f32 %v2038, %v2202
      %s2237 = scalar_lea.vmem %s3, 28
      %v2238 = vld [vmem:[%s2237] sm:$0xf]
      %v2240 = vsel %vm657, %v2238, 0
      %2242 = vmatprep.subr.bf16.mxu0 0
      %2243 = vmatpush1.bf16.msra.mxu0 %v2240
      %2244 = vmatprep.subr.bf16.mxu0 0
      %2245 = vmatpush1.bf16.msra.mxu0 0
      %2246 = vmatprep.subr.bf16.mxu0 0
      %2247 = vmatpush1.bf16.msra.mxu0 0
      %2248 = vmatprep.subr.bf16.mxu0 0
      %2249 = vmatpush1.bf16.msra.mxu0 0
      %2250 = vmatprep.subr.bf16.mxu0 0
      %2251 = vmatpush1.bf16.msra.mxu0 0
      %2252 = vmatprep.subr.bf16.mxu0 0
      %2253 = vmatpush1.bf16.msra.mxu0 0
      %2254 = vmatprep.subr.bf16.mxu0 0
      %2255 = vmatpush1.bf16.msra.mxu0 0
      %2256 = vmatprep.subr.bf16.mxu0 0
      %2257 = vmatpush1.bf16.msra.mxu0 0
      %2258 = vmatprep.subr.bf16.mxu0 0
      %2259 = vmatpush1.bf16.msra.mxu0 0
      %2260 = vmatprep.subr.bf16.mxu0 0
      %2261 = vmatpush1.bf16.msra.mxu0 0
      %2262 = vmatprep.subr.bf16.mxu0 0
      %2263 = vmatpush1.bf16.msra.mxu0 0
      %2264 = vmatprep.subr.bf16.mxu0 0
      %2265 = vmatpush1.bf16.msra.mxu0 0
      %2266 = vmatprep.subr.bf16.mxu0 0
      %2267 = vmatpush1.bf16.msra.mxu0 0
      %2268 = vmatprep.subr.bf16.mxu0 0
      %2269 = vmatpush1.bf16.msra.mxu0 0
      %2270 = vmatprep.subr.bf16.mxu0 0
      %2271 = vmatpush1.bf16.msra.mxu0 0
      %2272 = vmatprep.subr.bf16.mxu0 0
      %2273 = vmatpush1.bf16.msra.mxu0 0
      %2274 = vmatprep.mubr.bf16.mxu0 0
      %2275 = vmatmul.mubr.bf16.gmra.mrb[0].mxu0 %v616
      %v2276 = vpop.f32.mrb[0].mxu0
      %v2277 = vadd.f32 0.0, %v2276
      %v2278 = vpop.f32.mrb[0].mxu0
      %v2279 = vpop.f32.mrb[0].mxu0
      %v2280 = vadd.f32 0.0, %v2279
      %v2281 = vpop.f32.mrb[0].mxu0
      %2282 = vmatprep.mubr.bf16.mxu0 0
      %2283 = vmatmul.mubr.bf16.gmra.mrb[0].mxu0 %v619
      %v2284 = vpop.f32.mrb[0].mxu0
      %v2285 = vadd.f32 0.0, %v2284
      %v2286 = vpop.f32.mrb[0].mxu0
      %v2287 = vpop.f32.mrb[0].mxu0
      %v2288 = vadd.f32 0.0, %v2287
      %v2289 = vpop.f32.mrb[0].mxu0
      %2290 = vmatprep.mubr.bf16.mxu0 0
      %2291 = vmatmul.mubr.bf16.gmra.mrb[0].mxu0 %v622
      %v2292 = vpop.f32.mrb[0].mxu0
      %v2293 = vadd.f32 0.0, %v2292
      %v2294 = vpop.f32.mrb[0].mxu0
      %v2295 = vpop.f32.mrb[0].mxu0
      %v2296 = vadd.f32 0.0, %v2295
      %v2297 = vpop.f32.mrb[0].mxu0
      %2298 = vmatprep.mubr.bf16.mxu0 0
      %2299 = vmatmul.mubr.bf16.gmra.mrb[0].mxu0 %v625
      %v2300 = vpop.f32.mrb[0].mxu0
      %v2301 = vadd.f32 0.0, %v2300
      %v2302 = vpop.f32.mrb[0].mxu0
      %v2303 = vpop.f32.mrb[0].mxu0
      %v2304 = vadd.f32 0.0, %v2303
      %v2305 = vpop.f32.mrb[0].mxu0
      %2306 = vmatprep.mubr.bf16.mxu0 0
      %2307 = vmatmul.mubr.bf16.gmra.mrb[0].mxu0 %v628
      %v2308 = vpop.f32.mrb[0].mxu0
      %v2309 = vadd.f32 0.0, %v2308
      %v2310 = vpop.f32.mrb[0].mxu0
      %v2311 = vpop.f32.mrb[0].mxu0
      %v2312 = vadd.f32 0.0, %v2311
      %v2313 = vpop.f32.mrb[0].mxu0
      %2314 = vmatprep.mubr.bf16.mxu0 0
      %2315 = vmatmul.mubr.bf16.gmra.mrb[0].mxu0 %v631
      %v2316 = vpop.f32.mrb[0].mxu0
      %v2317 = vadd.f32 0.0, %v2316
      %v2318 = vpop.f32.mrb[0].mxu0
      %v2319 = vpop.f32.mrb[0].mxu0
      %v2320 = vadd.f32 0.0, %v2319
      %v2321 = vpop.f32.mrb[0].mxu0
      %2322 = vmatprep.mubr.bf16.mxu0 0
      %2323 = vmatmul.mubr.bf16.gmra.mrb[0].mxu0 %v634
      %v2324 = vpop.f32.mrb[0].mxu0
      %v2325 = vadd.f32 0.0, %v2324
      %v2326 = vpop.f32.mrb[0].mxu0
      %v2327 = vpop.f32.mrb[0].mxu0
      %v2328 = vadd.f32 0.0, %v2327
      %v2329 = vpop.f32.mrb[0].mxu0
      %2330 = vmatprep.mubr.bf16.mxu0 0
      %2331 = vmatmul.mubr.bf16.gmra.mrb[0].mxu0 %v637
      %v2332 = vpop.f32.mrb[0].mxu0
      %v2333 = vadd.f32 0.0, %v2332
      %v2334 = vpop.f32.mrb[0].mxu0
      %v2335 = vpop.f32.mrb[0].mxu0
      %v2336 = vadd.f32 0.0, %v2335
      %v2337 = vpop.f32.mrb[0].mxu0
      %2338 = vmatprep.mubr.bf16.mxu0 0
      %2339 = vmatmul.mubr.bf16.gmra.mrb[0].mxu0 %v640
      %v2340 = vpop.f32.mrb[0].mxu0
      %v2341 = vadd.f32 0.0, %v2340
      %v2342 = vpop.f32.mrb[0].mxu0
      %v2343 = vpop.f32.mrb[0].mxu0
      %v2344 = vadd.f32 0.0, %v2343
      %v2345 = vpop.f32.mrb[0].mxu0
      %2346 = vmatprep.mubr.bf16.mxu0 0
      %2347 = vmatmul.mubr.bf16.gmra.mrb[0].mxu0 %v643
      %v2348 = vpop.f32.mrb[0].mxu0
      %v2349 = vadd.f32 0.0, %v2348
      %v2350 = vpop.f32.mrb[0].mxu0
      %v2351 = vpop.f32.mrb[0].mxu0
      %v2352 = vadd.f32 0.0, %v2351
      %v2353 = vpop.f32.mrb[0].mxu0
      %2354 = vmatprep.mubr.bf16.mxu0 0
      %2355 = vmatmul.mubr.bf16.gmra.mrb[0].mxu0 %v646
      %v2356 = vpop.f32.mrb[0].mxu0
      %v2357 = vadd.f32 0.0, %v2356
      %v2358 = vpop.f32.mrb[0].mxu0
      %v2359 = vpop.f32.mrb[0].mxu0
      %v2360 = vadd.f32 0.0, %v2359
      %v2361 = vpop.f32.mrb[0].mxu0
      %2362 = vmatprep.mubr.bf16.mxu0 0
      %2363 = vmatmul.mubr.bf16.gmra.mrb[0].mxu0 %v649
      %v2364 = vpop.f32.mrb[0].mxu0
      %v2365 = vadd.f32 0.0, %v2364
      %v2366 = vpop.f32.mrb[0].mxu0
      %v2367 = vpop.f32.mrb[0].mxu0
      %v2368 = vadd.f32 0.0, %v2367
      %v2369 = vpop.f32.mrb[0].mxu0
      %2370 = vmatprep.mubr.bf16.mxu0 0
      %2371 = vmatmul.mubr.bf16.gmra.mrb[0].mxu0 %v652
      %v2372 = vpop.f32.mrb[0].mxu0
      %v2373 = vadd.f32 0.0, %v2372
      %v2374 = vpop.f32.mrb[0].mxu0
      %v2375 = vpop.f32.mrb[0].mxu0
      %v2376 = vadd.f32 0.0, %v2375
      %v2377 = vpop.f32.mrb[0].mxu0
      %2378 = vmatprep.mubr.bf16.mxu0 0
      %2379 = vmatmul.mubr.bf16.gmra.mrb[0].mxu0 %v655
      %v2380 = vpop.f32.mrb[0].mxu0
      %v2381 = vadd.f32 0.0, %v2380
      %v2382 = vpop.f32.mrb[0].mxu0
      %v2383 = vpop.f32.mrb[0].mxu0
      %v2384 = vadd.f32 0.0, %v2383
      %v2385 = vpop.f32.mrb[0].mxu0
      %2386 = vmatprep.mubr.bf16.mxu0 0
      %2387 = vmatmul.mubr.bf16.gmra.mrb[0].mxu0 %v1631
      %v2388 = vpop.f32.mrb[0].mxu0
      %v2389 = vadd.f32 0.0, %v2388
      %v2390 = vpop.f32.mrb[0].mxu0
      %v2391 = vpop.f32.mrb[0].mxu0
      %v2392 = vadd.f32 0.0, %v2391
      %v2393 = vpop.f32.mrb[0].mxu0
      %2394 = vmatprep.mubr.bf16.mxu0 0
      %2395 = vmatmul.mubr.bf16.gmra.mrb[0].mxu0 %v610
      %v2396 = vpop.f32.mrb[0].mxu0
      %v2397 = vadd.f32 0.0, %v2396
      %v2398 = vpop.f32.mrb[0].mxu0
      %v2399 = vpop.f32.mrb[0].mxu0
      %v2400 = vadd.f32 0.0, %v2399
      %v2401 = vpop.f32.mrb[0].mxu0
      %2402 = vdwg.mxu0
      %v2403 = vadd.f32 %v2205, %v2277
      %v2404 = vadd.f32 %v2206, %v2280
      %v2405 = vadd.f32 %v2207, %v2285
      %v2406 = vadd.f32 %v2208, %v2288
      %v2407 = vadd.f32 %v2209, %v2293
      %v2408 = vadd.f32 %v2210, %v2296
      %v2409 = vadd.f32 %v2211, %v2301
      %v2410 = vadd.f32 %v2212, %v2304
      %v2411 = vadd.f32 %v2213, %v2309
      %v2412 = vadd.f32 %v2214, %v2312
      %v2413 = vadd.f32 %v2215, %v2317
      %v2414 = vadd.f32 %v2216, %v2320
      %v2415 = vadd.f32 %v2217, %v2325
      %v2416 = vadd.f32 %v2218, %v2328
      %v2417 = vadd.f32 %v2219, %v2333
      %v2418 = vadd.f32 %v2220, %v2336
      %v2419 = vadd.f32 %v2221, %v2341
      %v2420 = vadd.f32 %v2222, %v2344
      %v2421 = vadd.f32 %v2223, %v2349
      %v2422 = vadd.f32 %v2224, %v2352
      %v2423 = vadd.f32 %v2225, %v2357
      %v2424 = vadd.f32 %v2226, %v2360
      %v2425 = vadd.f32 %v2227, %v2365
      %v2426 = vadd.f32 %v2228, %v2368
      %v2427 = vadd.f32 %v2229, %v2373
      %v2428 = vadd.f32 %v2230, %v2376
      %v2429 = vadd.f32 %v2231, %v2381
      %v2430 = vadd.f32 %v2232, %v2384
      %v2431 = vadd.f32 %v2233, %v2389
      %v2432 = vadd.f32 %v2234, %v2392
      %v2433 = vadd.f32 %v2235, %v2397
      %v2434 = vadd.f32 %v2236, %v2400
      %s2435 = scalar_lea.vmem %s3, 32
      %v2436 = vld [vmem:[%s2435] sm:$0xf]
      %v2438 = vsel %vm657, %v2436, 0
      %2440 = vmatprep.subr.bf16.mxu0 0
      %2441 = vmatpush1.bf16.msra.mxu0 %v2438
      %2442 = vmatprep.subr.bf16.mxu0 0
      %2443 = vmatpush1.bf16.msra.mxu0 0
      %2444 = vmatprep.subr.bf16.mxu0 0
      %2445 = vmatpush1.bf16.msra.mxu0 0
      %2446 = vmatprep.subr.bf16.mxu0 0
      %2447 = vmatpush1.bf16.msra.mxu0 0
      %2448 = vmatprep.subr.bf16.mxu0 0
      %2449 = vmatpush1.bf16.msra.mxu0 0
      %2450 = vmatprep.subr.bf16.mxu0 0
      %2451 = vmatpush1.bf16.msra.mxu0 0
      %2452 = vmatprep.subr.bf16.mxu0 0
      %2453 = vmatpush1.bf16.msra.mxu0 0
      %2454 = vmatprep.subr.bf16.mxu0 0
      %2455 = vmatpush1.bf16.msra.mxu0 0
      %2456 = vmatprep.subr.bf16.mxu0 0
      %2457 = vmatpush1.bf16.msra.mxu0 0
      %2458 = vmatprep.subr.bf16.mxu0 0
      %2459 = vmatpush1.bf16.msra.mxu0 0
      %2460 = vmatprep.subr.bf16.mxu0 0
      %2461 = vmatpush1.bf16.msra.mxu0 0
      %2462 = vmatprep.subr.bf16.mxu0 0
      %2463 = vmatpush1.bf16.msra.mxu0 0
      %2464 = vmatprep.subr.bf16.mxu0 0
      %2465 = vmatpush1.bf16.msra.mxu0 0
      %2466 = vmatprep.subr.bf16.mxu0 0
      %2467 = vmatpush1.bf16.msra.mxu0 0
      %2468 = vmatprep.subr.bf16.mxu0 0
      %2469 = vmatpush1.bf16.msra.mxu0 0
      %2470 = vmatprep.subr.bf16.mxu0 0
      %2471 = vmatpush1.bf16.msra.mxu0 0
      %2472 = vmatprep.mubr.bf16.mxu0 0
      %2473 = vmatmul.mubr.bf16.gmra.mrb[0].mxu0 %v1181
      %v2474 = vpop.f32.mrb[0].mxu0
      %v2475 = vadd.f32 0.0, %v2474
      %v2476 = vpop.f32.mrb[0].mxu0
      %v2477 = vpop.f32.mrb[0].mxu0
      %v2478 = vadd.f32 0.0, %v2477
      %v2479 = vpop.f32.mrb[0].mxu0
      %2480 = vmatprep.mubr.bf16.mxu0 0
      %2481 = vmatmul.mubr.bf16.gmra.mrb[0].mxu0 %v1184
      %v2482 = vpop.f32.mrb[0].mxu0
      %v2483 = vadd.f32 0.0, %v2482
      %v2484 = vpop.f32.mrb[0].mxu0
      %v2485 = vpop.f32.mrb[0].mxu0
      %v2486 = vadd.f32 0.0, %v2485
      %v2487 = vpop.f32.mrb[0].mxu0
      %2488 = vmatprep.mubr.bf16.mxu0 0
      %2489 = vmatmul.mubr.bf16.gmra.mrb[0].mxu0 %v1187
      %v2490 = vpop.f32.mrb[0].mxu0
      %v2491 = vadd.f32 0.0, %v2490
      %v2492 = vpop.f32.mrb[0].mxu0
      %v2493 = vpop.f32.mrb[0].mxu0
      %v2494 = vadd.f32 0.0, %v2493
      %v2495 = vpop.f32.mrb[0].mxu0
      %2496 = vmatprep.mubr.bf16.mxu0 0
      %2497 = vmatmul.mubr.bf16.gmra.mrb[0].mxu0 %v1190
      %v2498 = vpop.f32.mrb[0].mxu0
      %v2499 = vadd.f32 0.0, %v2498
      %v2500 = vpop.f32.mrb[0].mxu0
      %v2501 = vpop.f32.mrb[0].mxu0
      %v2502 = vadd.f32 0.0, %v2501
      %v2503 = vpop.f32.mrb[0].mxu0
      %2504 = vmatprep.mubr.bf16.mxu0 0
      %2505 = vmatmul.mubr.bf16.gmra.mrb[0].mxu0 %v1193
      %v2506 = vpop.f32.mrb[0].mxu0
      %v2507 = vadd.f32 0.0, %v2506
      %v2508 = vpop.f32.mrb[0].mxu0
      %v2509 = vpop.f32.mrb[0].mxu0
      %v2510 = vadd.f32 0.0, %v2509
      %v2511 = vpop.f32.mrb[0].mxu0
      %2512 = vmatprep.mubr.bf16.mxu0 0
      %2513 = vmatmul.mubr.bf16.gmra.mrb[0].mxu0 %v1196
      %v2514 = vpop.f32.mrb[0].mxu0
      %v2515 = vadd.f32 0.0, %v2514
      %v2516 = vpop.f32.mrb[0].mxu0
      %v2517 = vpop.f32.mrb[0].mxu0
      %v2518 = vadd.f32 0.0, %v2517
      %v2519 = vpop.f32.mrb[0].mxu0
      %2520 = vmatprep.mubr.bf16.mxu0 0
      %2521 = vmatmul.mubr.bf16.gmra.mrb[0].mxu0 %v1199
      %v2522 = vpop.f32.mrb[0].mxu0
      %v2523 = vadd.f32 0.0, %v2522
      %v2524 = vpop.f32.mrb[0].mxu0
      %v2525 = vpop.f32.mrb[0].mxu0
      %v2526 = vadd.f32 0.0, %v2525
      %v2527 = vpop.f32.mrb[0].mxu0
      %2528 = vmatprep.mubr.bf16.mxu0 0
      %2529 = vmatmul.mubr.bf16.gmra.mrb[0].mxu0 %v1202
      %v2530 = vpop.f32.mrb[0].mxu0
      %v2531 = vadd.f32 0.0, %v2530
      %v2532 = vpop.f32.mrb[0].mxu0
      %v2533 = vpop.f32.mrb[0].mxu0
      %v2534 = vadd.f32 0.0, %v2533
      %v2535 = vpop.f32.mrb[0].mxu0
      %2536 = vmatprep.mubr.bf16.mxu0 0
      %2537 = vmatmul.mubr.bf16.gmra.mrb[0].mxu0 %v1205
      %v2538 = vpop.f32.mrb[0].mxu0
      %v2539 = vadd.f32 0.0, %v2538
      %v2540 = vpop.f32.mrb[0].mxu0
      %v2541 = vpop.f32.mrb[0].mxu0
      %v2542 = vadd.f32 0.0, %v2541
      %v2543 = vpop.f32.mrb[0].mxu0
      %2544 = vmatprep.mubr.bf16.mxu0 0
      %2545 = vmatmul.mubr.bf16.gmra.mrb[0].mxu0 %v1208
      %v2546 = vpop.f32.mrb[0].mxu0
      %v2547 = vadd.f32 0.0, %v2546
      %v2548 = vpop.f32.mrb[0].mxu0
      %v2549 = vpop.f32.mrb[0].mxu0
      %v2550 = vadd.f32 0.0, %v2549
      %v2551 = vpop.f32.mrb[0].mxu0
      %2552 = vmatprep.mubr.bf16.mxu0 0
      %2553 = vmatmul.mubr.bf16.gmra.mrb[0].mxu0 %v1211
      %v2554 = vpop.f32.mrb[0].mxu0
      %v2555 = vadd.f32 0.0, %v2554
      %v2556 = vpop.f32.mrb[0].mxu0
      %v2557 = vpop.f32.mrb[0].mxu0
      %v2558 = vadd.f32 0.0, %v2557
      %v2559 = vpop.f32.mrb[0].mxu0
      %2560 = vmatprep.mubr.bf16.mxu0 0
      %2561 = vmatmul.mubr.bf16.gmra.mrb[0].mxu0 %v1214
      %v2562 = vpop.f32.mrb[0].mxu0
      %v2563 = vadd.f32 0.0, %v2562
      %v2564 = vpop.f32.mrb[0].mxu0
      %v2565 = vpop.f32.mrb[0].mxu0
      %v2566 = vadd.f32 0.0, %v2565
      %v2567 = vpop.f32.mrb[0].mxu0
      %2568 = vmatprep.mubr.bf16.mxu0 0
      %2569 = vmatmul.mubr.bf16.gmra.mrb[0].mxu0 %v1217
      %v2570 = vpop.f32.mrb[0].mxu0
      %v2571 = vadd.f32 0.0, %v2570
      %v2572 = vpop.f32.mrb[0].mxu0
      %v2573 = vpop.f32.mrb[0].mxu0
      %v2574 = vadd.f32 0.0, %v2573
      %v2575 = vpop.f32.mrb[0].mxu0
      %2576 = vmatprep.mubr.bf16.mxu0 0
      %2577 = vmatmul.mubr.bf16.gmra.mrb[0].mxu0 %v1220
      %v2578 = vpop.f32.mrb[0].mxu0
      %v2579 = vadd.f32 0.0, %v2578
      %v2580 = vpop.f32.mrb[0].mxu0
      %v2581 = vpop.f32.mrb[0].mxu0
      %v2582 = vadd.f32 0.0, %v2581
      %v2583 = vpop.f32.mrb[0].mxu0
      %2584 = vmatprep.mubr.bf16.mxu0 0
      %2585 = vmatmul.mubr.bf16.gmra.mrb[0].mxu0 %v1841
      %v2586 = vpop.f32.mrb[0].mxu0
      %v2587 = vadd.f32 0.0, %v2586
      %v2588 = vpop.f32.mrb[0].mxu0
      %v2589 = vpop.f32.mrb[0].mxu0
      %v2590 = vadd.f32 0.0, %v2589
      %v2591 = vpop.f32.mrb[0].mxu0
      %2592 = vmatprep.mubr.bf16.mxu0 0
      %2593 = vmatmul.mubr.bf16.gmra.mrb[0].mxu0 %v610
      %v2594 = vpop.f32.mrb[0].mxu0
      %v2595 = vadd.f32 0.0, %v2594
      %v2596 = vpop.f32.mrb[0].mxu0
      %v2597 = vpop.f32.mrb[0].mxu0
      %v2598 = vadd.f32 0.0, %v2597
      %v2599 = vpop.f32.mrb[0].mxu0
      %2600 = vdwg.mxu0
      %v2601 = vadd.f32 %v2403, %v2475
      %v2602 = vadd.f32 %v2404, %v2478
      %v2603 = vadd.f32 %v2405, %v2483
      %v2604 = vadd.f32 %v2406, %v2486
      %v2605 = vadd.f32 %v2407, %v2491
      %v2606 = vadd.f32 %v2408, %v2494
      %v2607 = vadd.f32 %v2409, %v2499
      %v2608 = vadd.f32 %v2410, %v2502
      %v2609 = vadd.f32 %v2411, %v2507
      %v2610 = vadd.f32 %v2412, %v2510
      %v2611 = vadd.f32 %v2413, %v2515
      %v2612 = vadd.f32 %v2414, %v2518
      %v2613 = vadd.f32 %v2415, %v2523
      %v2614 = vadd.f32 %v2416, %v2526
      %v2615 = vadd.f32 %v2417, %v2531
      %v2616 = vadd.f32 %v2418, %v2534
      %v2617 = vadd.f32 %v2419, %v2539
      %v2618 = vadd.f32 %v2420, %v2542
      %v2619 = vadd.f32 %v2421, %v2547
      %v2620 = vadd.f32 %v2422, %v2550
      %v2621 = vadd.f32 %v2423, %v2555
      %v2622 = vadd.f32 %v2424, %v2558
      %v2623 = vadd.f32 %v2425, %v2563
      %v2624 = vadd.f32 %v2426, %v2566
      %v2625 = vadd.f32 %v2427, %v2571
      %v2626 = vadd.f32 %v2428, %v2574
      %v2627 = vadd.f32 %v2429, %v2579
      %v2628 = vadd.f32 %v2430, %v2582
      %v2629 = vadd.f32 %v2431, %v2587
      %v2630 = vadd.f32 %v2432, %v2590
      %v2631 = vadd.f32 %v2433, %v2595
      %v2632 = vadd.f32 %v2434, %v2598
      %v2633 = vpack.c.bf16 %v2602, %v2601
      %v2634 = vpack.c.bf16 %v2604, %v2603
      %v2635 = vpack.c.bf16 %v2606, %v2605
      %v2636 = vpack.c.bf16 %v2608, %v2607
      %v2637 = vpack.c.bf16 %v2610, %v2609
      %v2638 = vpack.c.bf16 %v2612, %v2611
      %v2639 = vpack.c.bf16 %v2614, %v2613
      %v2640 = vpack.c.bf16 %v2616, %v2615
      %v2641 = vpack.c.bf16 %v2618, %v2617
      %v2642 = vpack.c.bf16 %v2620, %v2619
      %v2643 = vpack.c.bf16 %v2622, %v2621
      %v2644 = vpack.c.bf16 %v2624, %v2623
      %v2645 = vpack.c.bf16 %v2626, %v2625
      %v2646 = vpack.c.bf16 %v2628, %v2627
      %v2647 = vpack.c.bf16 %v2630, %v2629
      %v2648 = vpack.c.bf16 %v2632, %v2631
      %v2665 = vunpack.c.l.b16 %v2633
      %v2666 = vunpack.c.h.b16 %v2633
      %v2667 = vunpack.c.l.b16 %v2634
      %v2668 = vunpack.c.h.b16 %v2634
      %v2669 = vunpack.c.l.b16 %v2635
      %v2670 = vunpack.c.h.b16 %v2635
      %v2671 = vunpack.c.l.b16 %v2636
      %v2672 = vunpack.c.h.b16 %v2636
      %v2673 = vunpack.c.l.b16 %v2637
      %v2674 = vunpack.c.h.b16 %v2637
      %v2675 = vunpack.c.l.b16 %v2638
      %v2676 = vunpack.c.h.b16 %v2638
      %v2677 = vunpack.c.l.b16 %v2639
      %v2678 = vunpack.c.h.b16 %v2639
      %v2679 = vunpack.c.l.b16 %v2640
      %v2680 = vunpack.c.h.b16 %v2640
      %v2681 = vunpack.c.l.b16 %v2641
      %v2682 = vunpack.c.h.b16 %v2641
      %v2683 = vunpack.c.l.b16 %v2642
      %v2684 = vunpack.c.h.b16 %v2642
      %v2685 = vunpack.c.l.b16 %v2643
      %v2686 = vunpack.c.h.b16 %v2643
      %v2687 = vunpack.c.l.b16 %v2644
      %v2688 = vunpack.c.h.b16 %v2644
      %v2689 = vunpack.c.l.b16 %v2645
      %v2690 = vunpack.c.h.b16 %v2645
      %v2691 = vunpack.c.l.b16 %v2646
      %v2692 = vunpack.c.h.b16 %v2646
      %v2693 = vunpack.c.l.b16 %v2647
      %v2694 = vunpack.c.h.b16 %v2647
      %v2695 = vunpack.c.l.b16 %v2648
      %v2696 = vunpack.c.h.b16 %v2648
      %v2697 = vpack.c.b16 %v2665, %v2665
      %v2698 = vpack.c.b16 %v2666, %v2666
      %v2699 = vpack.c.b16 %v2667, %v2667
      %v2700 = vpack.c.b16 %v2668, %v2668
      %v2701 = vpack.c.b16 %v2669, %v2669
      %v2702 = vpack.c.b16 %v2670, %v2670
      %v2703 = vpack.c.b16 %v2671, %v2671
      %v2704 = vpack.c.b16 %v2672, %v2672
      %v2705 = vpack.c.b16 %v2673, %v2673
      %v2706 = vpack.c.b16 %v2674, %v2674
      %v2707 = vpack.c.b16 %v2675, %v2675
      %v2708 = vpack.c.b16 %v2676, %v2676
      %v2709 = vpack.c.b16 %v2677, %v2677
      %v2710 = vpack.c.b16 %v2678, %v2678
      %v2711 = vpack.c.b16 %v2679, %v2679
      %v2712 = vpack.c.b16 %v2680, %v2680
      %v2713 = vpack.c.b16 %v2681, %v2681
      %v2714 = vpack.c.b16 %v2682, %v2682
      %v2715 = vpack.c.b16 %v2683, %v2683
      %v2716 = vpack.c.b16 %v2684, %v2684
      %v2717 = vpack.c.b16 %v2685, %v2685
      %v2718 = vpack.c.b16 %v2686, %v2686
      %v2719 = vpack.c.b16 %v2687, %v2687
      %v2720 = vpack.c.b16 %v2688, %v2688
      %v2721 = vpack.c.b16 %v2689, %v2689
      %v2722 = vpack.c.b16 %v2690, %v2690
      %v2723 = vpack.c.b16 %v2691, %v2691
      %v2724 = vpack.c.b16 %v2692, %v2692
      %v2725 = vpack.c.b16 %v2693, %v2693
      %v2726 = vpack.c.b16 %v2694, %v2694
      %v2727 = vpack.c.b16 %v2695, %v2695
      %v2728 = vpack.c.b16 %v2696, %v2696
      %vm2761 = vcmask 60416
      %2762 = vst.msk [vmem:[%s231] sm:$0xf] %vm2761, %v2697
      %2763 = vst.msk [vmem:[%s231 + $0x4] sm:$0xf] %vm2761, %v2698
      %2764 = vst.msk [vmem:[%s231 + $0x8] sm:$0xf] %vm2761, %v2699
      %2765 = vst.msk [vmem:[%s231 + $0xc] sm:$0xf] %vm2761, %v2700
      %2766 = vst.msk [vmem:[%s231 + $0x10] sm:$0xf] %vm2761, %v2701
      %2767 = vst.msk [vmem:[%s231 + $0x14] sm:$0xf] %vm2761, %v2702
      %2768 = vst.msk [vmem:[%s231 + $0x18] sm:$0xf] %vm2761, %v2703
      %2769 = vst.msk [vmem:[%s231 + $0x1c] sm:$0xf] %vm2761, %v2704
      %2770 = vst.msk [vmem:[%s231 + $0x20] sm:$0xf] %vm2761, %v2705
      %2771 = vst.msk [vmem:[%s231 + $0x24] sm:$0xf] %vm2761, %v2706
      %2772 = vst.msk [vmem:[%s231 + $0x28] sm:$0xf] %vm2761, %v2707
      %2773 = vst.msk [vmem:[%s231 + $0x2c] sm:$0xf] %vm2761, %v2708
      %2774 = vst.msk [vmem:[%s231 + $0x30] sm:$0xf] %vm2761, %v2709
      %2775 = vst.msk [vmem:[%s231 + $0x34] sm:$0xf] %vm2761, %v2710
      %2776 = vst.msk [vmem:[%s231 + $0x38] sm:$0xf] %vm2761, %v2711
      %2777 = vst.msk [vmem:[%s231 + $0x3c] sm:$0xf] %vm2761, %v2712
      %2778 = vst.msk [vmem:[%s231 + $0x40] sm:$0xf] %vm2761, %v2713
      %2779 = vst.msk [vmem:[%s231 + $0x44] sm:$0xf] %vm2761, %v2714
      %2780 = vst.msk [vmem:[%s231 + $0x48] sm:$0xf] %vm2761, %v2715
      %2781 = vst.msk [vmem:[%s231 + $0x4c] sm:$0xf] %vm2761, %v2716
      %2782 = vst.msk [vmem:[%s231 + $0x50] sm:$0xf] %vm2761, %v2717
      %2783 = vst.msk [vmem:[%s231 + $0x54] sm:$0xf] %vm2761, %v2718
      %2784 = vst.msk [vmem:[%s231 + $0x58] sm:$0xf] %vm2761, %v2719
      %2785 = vst.msk [vmem:[%s231 + $0x5c] sm:$0xf] %vm2761, %v2720
      %2786 = vst.msk [vmem:[%s231 + $0x60] sm:$0xf] %vm2761, %v2721
      %2787 = vst.msk [vmem:[%s231 + $0x64] sm:$0xf] %vm2761, %v2722
      %2788 = vst.msk [vmem:[%s231 + $0x68] sm:$0xf] %vm2761, %v2723
      %2789 = vst.msk [vmem:[%s231 + $0x6c] sm:$0xf] %vm2761, %v2724
      %2790 = vst.msk [vmem:[%s231 + $0x70] sm:$0xf] %vm2761, %v2725
      %2791 = vst.msk [vmem:[%s231 + $0x74] sm:$0xf] %vm2761, %v2726
      %2792 = vst.msk [vmem:[%s231 + $0x78] sm:$0xf] %vm2761, %v2727
      %2793 = vst.msk [vmem:[%s231 + $0x7c] sm:$0xf] %vm2761, %v2728
      %v2794 = vsel %vm608, %v2601, 0.0
      %v2795 = vsel %vm608, %v2602, 0.0
      %v2796 = vadd.f32 %v2794, %v2795
      %v2797 = vsel %vm608, %v2603, 0.0
      %v2798 = vadd.f32 %v2796, %v2797
      %v2799 = vsel %vm608, %v2604, 0.0
      %v2800 = vadd.f32 %v2798, %v2799
      %v2801 = vsel %vm608, %v2605, 0.0
      %v2802 = vadd.f32 %v2800, %v2801
      %v2803 = vsel %vm608, %v2606, 0.0
      %v2804 = vadd.f32 %v2802, %v2803
      %v2805 = vsel %vm608, %v2607, 0.0
      %v2806 = vadd.f32 %v2804, %v2805
      %v2807 = vsel %vm608, %v2608, 0.0
      %v2808 = vadd.f32 %v2806, %v2807
      %v2809 = vsel %vm608, %v2609, 0.0
      %v2810 = vadd.f32 %v2808, %v2809
      %v2811 = vsel %vm608, %v2610, 0.0
      %v2812 = vadd.f32 %v2810, %v2811
      %v2813 = vsel %vm608, %v2611, 0.0
      %v2814 = vadd.f32 %v2812, %v2813
      %v2815 = vsel %vm608, %v2612, 0.0
      %v2816 = vadd.f32 %v2814, %v2815
      %v2817 = vsel %vm608, %v2613, 0.0
      %v2818 = vadd.f32 %v2816, %v2817
      %v2819 = vsel %vm608, %v2614, 0.0
      %v2820 = vadd.f32 %v2818, %v2819
      %v2821 = vsel %vm608, %v2615, 0.0
      %v2822 = vadd.f32 %v2820, %v2821
      %v2823 = vsel %vm608, %v2616, 0.0
      %v2824 = vadd.f32 %v2822, %v2823
      %v2825 = vsel %vm608, %v2617, 0.0
      %v2826 = vadd.f32 %v2824, %v2825
      %v2827 = vsel %vm608, %v2618, 0.0
      %v2828 = vadd.f32 %v2826, %v2827
      %v2829 = vsel %vm608, %v2619, 0.0
      %v2830 = vadd.f32 %v2828, %v2829
      %v2831 = vsel %vm608, %v2620, 0.0
      %v2832 = vadd.f32 %v2830, %v2831
      %v2833 = vsel %vm608, %v2621, 0.0
      %v2834 = vadd.f32 %v2832, %v2833
      %v2835 = vsel %vm608, %v2622, 0.0
      %v2836 = vadd.f32 %v2834, %v2835
      %v2837 = vsel %vm608, %v2623, 0.0
      %v2838 = vadd.f32 %v2836, %v2837
      %v2839 = vsel %vm608, %v2624, 0.0
      %v2840 = vadd.f32 %v2838, %v2839
      %v2841 = vsel %vm608, %v2625, 0.0
      %v2842 = vadd.f32 %v2840, %v2841
      %v2843 = vsel %vm608, %v2626, 0.0
      %v2844 = vadd.f32 %v2842, %v2843
      %v2845 = vsel %vm608, %v2627, 0.0
      %v2846 = vadd.f32 %v2844, %v2845
      %v2847 = vsel %vm608, %v2628, 0.0
      %v2848 = vadd.f32 %v2846, %v2847
      %v2849 = vsel %vm608, %v2629, 0.0
      %v2850 = vadd.f32 %v2848, %v2849
      %v2851 = vsel %vm608, %v2630, 0.0
      %v2852 = vadd.f32 %v2850, %v2851
      %v2853 = vsel %vm608, %v2631, 0.0
      %v2854 = vadd.f32 %v2852, %v2853
      %v2855 = vsel %vm608, %v2632, 0.0
      %v2856 = vadd.f32 %v2854, %v2855
      %v2857 = vrot.slane %v2856, 4
      %v2858 = vadd.f32 %v2856, %v2857
      %v2859 = vrot.slane %v2858, 2
      %v2860 = vadd.f32 %v2858, %v2859
      %v2861 = vrot.slane %v2860, 1
      %v2862 = vadd.f32 %v2860, %v2861
      %v2863 = vmul.f32 %v2601, %v2601
      %v2864 = vmul.f32 %v2602, %v2602
      %v2865 = vmul.f32 %v2603, %v2603
      %v2866 = vmul.f32 %v2604, %v2604
      %v2867 = vmul.f32 %v2605, %v2605
      %v2868 = vmul.f32 %v2606, %v2606
      %v2869 = vmul.f32 %v2607, %v2607
      %v2870 = vmul.f32 %v2608, %v2608
      %v2871 = vmul.f32 %v2609, %v2609
      %v2872 = vmul.f32 %v2610, %v2610
      %v2873 = vmul.f32 %v2611, %v2611
      %v2874 = vmul.f32 %v2612, %v2612
      %v2875 = vmul.f32 %v2613, %v2613
      %v2876 = vmul.f32 %v2614, %v2614
      %v2877 = vmul.f32 %v2615, %v2615
      %v2878 = vmul.f32 %v2616, %v2616
      %v2879 = vmul.f32 %v2617, %v2617
      %v2880 = vmul.f32 %v2618, %v2618
      %v2881 = vmul.f32 %v2619, %v2619
      %v2882 = vmul.f32 %v2620, %v2620
      %v2883 = vmul.f32 %v2621, %v2621
      %v2884 = vmul.f32 %v2622, %v2622
      %v2885 = vmul.f32 %v2623, %v2623
      %v2886 = vmul.f32 %v2624, %v2624
      %v2887 = vmul.f32 %v2625, %v2625
      %v2888 = vmul.f32 %v2626, %v2626
      %v2889 = vmul.f32 %v2627, %v2627
      %v2890 = vmul.f32 %v2628, %v2628
      %v2891 = vmul.f32 %v2629, %v2629
      %v2892 = vmul.f32 %v2630, %v2630
      %v2893 = vmul.f32 %v2631, %v2631
      %v2894 = vmul.f32 %v2632, %v2632
      %v2895 = vsel %vm608, %v2863, 0.0
      %v2896 = vsel %vm608, %v2864, 0.0
      %v2897 = vadd.f32 %v2895, %v2896
      %v2898 = vsel %vm608, %v2865, 0.0
      %v2899 = vadd.f32 %v2897, %v2898
      %v2900 = vsel %vm608, %v2866, 0.0
      %v2901 = vadd.f32 %v2899, %v2900
      %v2902 = vsel %vm608, %v2867, 0.0
      %v2903 = vadd.f32 %v2901, %v2902
      %v2904 = vsel %vm608, %v2868, 0.0
      %v2905 = vadd.f32 %v2903, %v2904
      %v2906 = vsel %vm608, %v2869, 0.0
      %v2907 = vadd.f32 %v2905, %v2906
      %v2908 = vsel %vm608, %v2870, 0.0
      %v2909 = vadd.f32 %v2907, %v2908
      %v2910 = vsel %vm608, %v2871, 0.0
      %v2911 = vadd.f32 %v2909, %v2910
      %v2912 = vsel %vm608, %v2872, 0.0
      %v2913 = vadd.f32 %v2911, %v2912
      %v2914 = vsel %vm608, %v2873, 0.0
      %v2915 = vadd.f32 %v2913, %v2914
      %v2916 = vsel %vm608, %v2874, 0.0
      %v2917 = vadd.f32 %v2915, %v2916
      %v2918 = vsel %vm608, %v2875, 0.0
      %v2919 = vadd.f32 %v2917, %v2918
      %v2920 = vsel %vm608, %v2876, 0.0
      %v2921 = vadd.f32 %v2919, %v2920
      %v2922 = vsel %vm608, %v2877, 0.0
      %v2923 = vadd.f32 %v2921, %v2922
      %v2924 = vsel %vm608, %v2878, 0.0
      %v2925 = vadd.f32 %v2923, %v2924
      %v2926 = vsel %vm608, %v2879, 0.0
      %v2927 = vadd.f32 %v2925, %v2926
      %v2928 = vsel %vm608, %v2880, 0.0
      %v2929 = vadd.f32 %v2927, %v2928
      %v2930 = vsel %vm608, %v2881, 0.0
      %v2931 = vadd.f32 %v2929, %v2930
      %v2932 = vsel %vm608, %v2882, 0.0
      %v2933 = vadd.f32 %v2931, %v2932
      %v2934 = vsel %vm608, %v2883, 0.0
      %v2935 = vadd.f32 %v2933, %v2934
      %v2936 = vsel %vm608, %v2884, 0.0
      %v2937 = vadd.f32 %v2935, %v2936
      %v2938 = vsel %vm608, %v2885, 0.0
      %v2939 = vadd.f32 %v2937, %v2938
      %v2940 = vsel %vm608, %v2886, 0.0
      %v2941 = vadd.f32 %v2939, %v2940
      %v2942 = vsel %vm608, %v2887, 0.0
      %v2943 = vadd.f32 %v2941, %v2942
      %v2944 = vsel %vm608, %v2888, 0.0
      %v2945 = vadd.f32 %v2943, %v2944
      %v2946 = vsel %vm608, %v2889, 0.0
      %v2947 = vadd.f32 %v2945, %v2946
      %v2948 = vsel %vm608, %v2890, 0.0
      %v2949 = vadd.f32 %v2947, %v2948
      %v2950 = vsel %vm608, %v2891, 0.0
      %v2951 = vadd.f32 %v2949, %v2950
      %v2952 = vsel %vm608, %v2892, 0.0
      %v2953 = vadd.f32 %v2951, %v2952
      %v2954 = vsel %vm608, %v2893, 0.0
      %v2955 = vadd.f32 %v2953, %v2954
      %v2956 = vsel %vm608, %v2894, 0.0
      %v2957 = vadd.f32 %v2955, %v2956
      %v2958 = vrot.slane %v2957, 4
      %v2959 = vadd.f32 %v2957, %v2958
      %v2960 = vrot.slane %v2959, 2
      %v2961 = vadd.f32 %v2959, %v2960
      %v2962 = vrot.slane %v2961, 1
      %v2963 = vadd.f32 %v2961, %v2962
      %v2964 = vsel %vm447, %v2862, %v2963
      %vm2965 = vcmask 58368
      %2966 = vst.msk [vmem:[%s235] sm:$0x3] %vm2965, %v2964
      %p2967 = scmp.lt.s32.totalorder %s17, 1
      %s2968 = scalar_select %p2967, %s17, 1
      %s2969 = smul.addr %s2968, 32
      %s2970 = smul.addr %s2969, 4
      %s2971 = scalar_lea.vmem %s4, %s2970
      %p2972 = scmp.lt.s32.totalorder %s17, 1
      %s2973 = scalar_select %p2972, %s17, 1
      %s2974 = smul.addr %s2973, 2
      %s2975 = scalar_lea.vmem %s5, %s2974
      // Predicated region
      $region37: #{preact_bottleneck.6} parent=35 // pred_check
        %p2976 = pneg %p124
      $region38: #{preact_bottleneck.6} parent=35 // pred_check_branch
        %2978 = sbr.rel (%p2976) target = $region40
      $region39: #{preact_bottleneck.6} parent=35 // pred_region
        _
      $region40: #{preact_bottleneck.6} parent=35 // pred_fallthru
        _
      // Predicated region
      $region41: #{preact_bottleneck.6} parent=35 // pred_check
        %p2979 = pneg %p150
      $region42: #{preact_bottleneck.6} parent=35 // pred_check_branch
        %2981 = sbr.rel (%p2979) target = $region44
      $region43: #{preact_bottleneck.6} parent=35 // pred_region
        _
      $region44: #{preact_bottleneck.6} parent=35 // pred_fallthru
        _
    $region36: #{preact_bottleneck.6} parent=5 // pred_fallthru
      _
    %p2982 = scmp.le.s32.totalorder 2, %s12
    // Predicated region
    $region45: #{preact_bottleneck.6} parent=5 // pred_check
      %p2983 = pneg %p2982
    $region46: #{preact_bottleneck.6} parent=5 // pred_check_branch
      %2985 = sbr.rel (%p2983) target = $region48
    $region47: #{preact_bottleneck.6} parent=5 // pred_region
      %s2986 = ssub.s32 %s12, 2
      // Predicated region
      $region49: #{preact_bottleneck.6} parent=47 // pred_check
        %p2987 = pneg %p130
      $region50: #{preact_bottleneck.6} parent=47 // pred_check_branch
        %2989 = sbr.rel (%p2987) target = $region52
      $region51: #{preact_bottleneck.6} parent=47 // pred_region
        %p2990 = scmp.lt.s32.totalorder %s18, 1
        %s2991 = scalar_select %p2990, %s18, 1
        %s2992 = smul.addr %s2991, 32
        %s2993 = smul.addr %s2992, 4
        %s2994 = scalar_lea.vmem %s4, %s2993
      $region52: #{preact_bottleneck.6} parent=47 // pred_fallthru
        _
      // Predicated region
      $region53: #{preact_bottleneck.6} parent=47 // pred_check
        %p2995 = pneg %p156
      $region54: #{preact_bottleneck.6} parent=47 // pred_check_branch
        %2997 = sbr.rel (%p2995) target = $region56
      $region55: #{preact_bottleneck.6} parent=47 // pred_region
        %p2998 = scmp.lt.s32.totalorder %s18, 1
        %s2999 = scalar_select %p2998, %s18, 1
        %s3000 = smul.addr %s2999, 2
        %s3001 = scalar_lea.vmem %s5, %s3000
      $region56: #{preact_bottleneck.6} parent=47 // pred_fallthru
        _
    $region48: #{preact_bottleneck.6} parent=5 // pred_fallthru
      _
  $region6: #{preact_bottleneck.6} parent=0 // loop_footer
    %s16 = sadd.s32 1, %s12
  $region7: #{preact_bottleneck.6} parent=0 // loop_footer_branch
    %11 = sbr.rel target = $region3
  $region8: #{preact_bottleneck.6} parent=0 // loop_exit
    _

</llo_original>
